<compile_context>
chip_gen: v5e
topology: v5e:2x2
jax: 0.10.0
libtpu: 0.0.40
codegen_flags: <defaults>
</compile_context>

<pallas_src>
import functools
import math

import numpy as np
import jax
import jax.numpy as jnp
from jax.experimental import pallas as pl
from jax.experimental.pallas import tpu as pltpu

PI = math.pi
LOG2 = math.log(2.0)


def _ssp(x):
    # ShiftedSoftplus: softplus(x) - log(2), numerically stable elementwise form.
    # TODO(synk): jnp.log1p would be marginally more accurate; kept jnp.log(1+..) (known-good lowering).
    return jnp.maximum(x, 0.0) + jnp.log(1.0 + jnp.exp(-jnp.abs(x))) - LOG2


def _vmem_limit_bytes():
    # Per-generation VMEM budget: ~80% of physical, leaving headroom for Mosaic internal scratch.
    try:
        cap = int(pltpu.get_tpu_info().vmem_capacity_bytes)
    except Exception:
        cap = 64 * 1024 * 1024
    return max(32 * 1024 * 1024, min(int(cap * 0.8), cap - 8 * 1024 * 1024))


# ----------------------------------------------------------------------------
# Fused kernel: edge prep + per-layer filter W (l==0), L interaction layers, readout (l==L-1)
# ----------------------------------------------------------------------------
def _fused_kernel(dist_ref, v0_ref, row_oh_ref, col_scat_ref, bat_scat_ref, offset_ref,
                  w1s_ref, b1s_ref, w2_ref, b2_ref, lin_w_ref,
                  l1w_ref, l1b_ref, l2w_ref, l2b_ref,
                  u1w_ref, u1b_ref, u2w_ref, u2b_ref,
                  u_ref,
                  v_scr, w_scr,
                  *, coeff, cutoff, num_layers, num_filters):
    l = pl.program_id(0)
    F = num_filters
    bf = jnp.bfloat16

    # ---- prologue (layer 0): edge preprocessing, filter MLP for ALL layers, node init ----
    @pl.when(l == 0)
    def _():
        dist = dist_ref[:, 0:1]                                          # (E, 1)
        demb = jnp.exp(coeff * (dist - offset_ref[...]) ** 2)            # (E, G) gaussian RBF
        C = 0.5 * (jnp.cos(dist * (PI / cutoff)) + 1.0)                  # (E, 1) cosine cutoff
        # one lane-dense (E,G)x(G,L*F) matmul instead of L narrow ones
        h_all = _ssp(jnp.dot(demb.astype(bf), w1s_ref[...],
                             preferred_element_type=jnp.float32) + b1s_ref[...])   # (E, L*F)
        h_all = h_all.astype(bf)
        for ll in range(num_layers):                                     # static unroll, runs once
            h = h_all[:, ll * F:(ll + 1) * F]
            W = (jnp.dot(h, w2_ref[ll], preferred_element_type=jnp.float32)
                 + b2_ref[ll]) * C                                       # cutoff folded in
            w_scr[ll] = W.astype(bf)
        v_scr[...] = v0_ref[...]

    v = v_scr[...]                                                       # (N, H) f32
    W = w_scr[l].astype(jnp.float32)                                     # (E, F)
    mbias = dist_ref[:, 1:2]                                             # (E, 1): 0 real / -1e9 padded

    # ---- update_e ----
    v_lin = jnp.dot(v.astype(bf), lin_w_ref[l], preferred_element_type=jnp.float32)   # (N, F)
    v_j = jnp.dot(row_oh_ref[...], v_lin.astype(bf),
                  preferred_element_type=jnp.float32)                                 # (E, F)
    e = v_j * W + mbias                                                                # (E, F)

    # ---- update_v: SoftmaxAggregation(t=1) over destination nodes ----
    # agg_i = sum_{e->i} e * exp(e) / sum_{e->i} exp(e); the global shift m cancels between
    # num and den.  num and den are scattered with ONE (N,E)x(E,2F) matmul (packed operand).
    # TODO(synk): a per-destination max-shift would be more robust if per-node logit ranges
    # ever sit ~88 below the global max; padded edges are already excluded from m via mbias.
    m = jnp.max(e, axis=0, keepdims=True)
    ex = jnp.exp(e - m)                                                                # (E, F)
    packed = jnp.concatenate([e * ex, ex], axis=-1).astype(bf)                         # (E, 2F)
    agg2 = jnp.dot(col_scat_ref[...], packed, preferred_element_type=jnp.float32)      # (N, 2F)
    num = agg2[:, :F]
    den = agg2[:, F:]
    # zero-in-degree / padded nodes: agg = 0 (matches PyG softmax-aggregation default)
    den = jnp.where(den > 0.0, den, 1.0)
    agg = num * pl.reciprocal(den, approx=True)                                        # (N, F)

    out = _ssp(jnp.dot(agg.astype(bf), l1w_ref[l],
                       preferred_element_type=jnp.float32) + l1b_ref[l])
    out = jnp.dot(out.astype(bf), l2w_ref[l], preferred_element_type=jnp.float32) + l2b_ref[l]
    v_new = v + out
    v_scr[...] = v_new

    # ---- epilogue (last layer): update_u readout ----
    @pl.when(l == pl.num_programs(0) - 1)
    def _():
        h2 = _ssp(jnp.dot(v_new.astype(bf), u1w_ref[...],
                          preferred_element_type=jnp.float32) + u1b_ref[...])
        y = jnp.dot(h2.astype(bf), u2w_ref[...],
                    preferred_element_type=jnp.float32) + u2b_ref[...]                 # (N, O)
        u_ref[...] = jnp.dot(bat_scat_ref[...], y, preferred_element_type=jnp.float32) # (B, O)


def custom_model_fused(dist2, v0, row_oh, col_scat, bat_scat, offset, p, u_params, coeff, cutoff):
    u1w, u1b, u2w, u2b = u_params
    L, G, F = p["w1"].shape
    N, H = v0.shape
    E = dist2.shape[0]
    B, O = bat_scat.shape[0], u2w.shape[1]
    bf = jnp.bfloat16

    # bf16 weights (f32 biases, f32 MXU accumulation in-kernel); w1 stacked along the output dim.
    w1s = jnp.transpose(p["w1"], (1, 0, 2)).reshape(G, L * F).astype(bf)   # (G, L*F)
    b1s = p["b1"].reshape(1, L * F)
    args = (dist2, v0, row_oh, col_scat, bat_scat, offset,
            w1s, b1s, p["w2"].astype(bf), p["b2"], p["lin_w"].astype(bf),
            p["l1w"].astype(bf), p["l1b"], p["l2w"].astype(bf), p["l2b"],
            u1w.astype(bf), u1b, u2w.astype(bf), u2b)

    def fullspec(arr):
        shp = tuple(arr.shape)
        zeros = (0,) * len(shp)
        # fully resident; constant block index -> fetched once across the layer grid
        # TODO(synk): pipeline_mode=pl.Buffered(1) would halve input VMEM if single-buffering of
        # constant-index blocks is supported by this jax version; kept default for safety.
        return pl.BlockSpec(shp, lambda l, z=zeros: z)

    kernel = functools.partial(_fused_kernel, coeff=float(coeff), cutoff=float(cutoff),
                               num_layers=int(L), num_filters=int(F))
    return pl.pallas_call(
        kernel,
        out_shape=jax.ShapeDtypeStruct((B, O), jnp.float32),
        grid=(L,),
        in_specs=[fullspec(a) for a in args],
        out_specs=pl.BlockSpec((B, O), lambda l: (0, 0)),
        scratch_shapes=[pltpu.VMEM((N, H), jnp.float32),     # node features across layers
                        pltpu.VMEM((L, E, F), jnp.bfloat16)],  # hoisted per-layer filters W*C
        compiler_params=pltpu.CompilerParams(
            dimension_semantics=("arbitrary",),               # layers are a sequential accumulation
            vmem_limit_bytes=_vmem_limit_bytes()),
        # TODO(synk): for large graphs (esp. v7x 64 MiB VMEM) tile the E dimension (emit_pipeline
        # over E-tiles with destination-sorted edges + block-local one-hots) and split E across the
        # two v7x TensorCores; not needed at these resident sizes.
    )(*args)


# ----------------------------------------------------------------------------
# Deterministic parameter init (shapes from the module's __init__)
# ----------------------------------------------------------------------------
def xavier_uniform(key, fan_in, fan_out):
    bound = math.sqrt(6.0 / (fan_in + fan_out))
    return jax.random.uniform(key, (fan_in, fan_out), jnp.float32, -bound, bound)


def init_params(key, num_layers, hidden, nfilters, ngauss, out_channels):
    keys = jax.random.split(key, num_layers * 5 + 3)
    ki = iter(keys)
    layers = {k: [] for k in ("lin_w", "w1", "b1", "w2", "b2", "l1w", "l1b", "l2w", "l2b")}
    for _ in range(num_layers):
        layers["lin_w"].append(xavier_uniform(next(ki), hidden, nfilters))     # update_e.lin (no bias)
        layers["w1"].append(xavier_uniform(next(ki), ngauss, nfilters))        # update_e.mlp[0]
        layers["b1"].append(jnp.zeros((1, nfilters), jnp.float32))
        layers["w2"].append(xavier_uniform(next(ki), nfilters, nfilters))      # update_e.mlp[2]
        layers["b2"].append(jnp.zeros((1, nfilters), jnp.float32))
        layers["l1w"].append(xavier_uniform(next(ki), nfilters, hidden))       # update_v.lin1
        layers["l1b"].append(jnp.zeros((1, hidden), jnp.float32))
        layers["l2w"].append(xavier_uniform(next(ki), hidden, hidden))         # update_v.lin2
        layers["l2b"].append(jnp.zeros((1, hidden), jnp.float32))
        # TODO(synk): update_v.fc_all is defined in __init__ but never used in forward; omitted.
    p = {k: jnp.stack(v) for k, v in layers.items()}
    emb_w = jax.random.normal(next(ki), (100, hidden), jnp.float32)            # Embedding(100, H)
    u1w = xavier_uniform(next(ki), hidden, hidden // 2)                        # update_u.lin1
    u1b = jnp.zeros((1, hidden // 2), jnp.float32)
    u2w = xavier_uniform(next(ki), hidden // 2, out_channels)                  # update_u.lin2
    u2b = jnp.zeros((1, out_channels), jnp.float32)
    return p, emb_w, (u1w, u1b, u2w, u2b)


# ----------------------------------------------------------------------------
# Full Custom_Model.forward equivalent
# ----------------------------------------------------------------------------
def custom_model_forward(z, pos, batch, params, cutoff=10.0, num_gaussians=16):
    p_layers, emb_w, u_params = params
    N_real = z.shape[0]
    batch_np = np.asarray(batch)
    B = int(batch_np.max()) + 1

    # radius_graph on concrete data (glue; data-dependent edge count).
    pos_np = np.asarray(pos)
    d2 = ((pos_np[:, None, :] - pos_np[None, :, :]) ** 2).sum(-1)
    mask = (d2 <= cutoff ** 2) & (batch_np[:, None] == batch_np[None, :]) & ~np.eye(N_real, dtype=bool)
    row_np, col_np = np.nonzero(mask)
    E_real = int(row_np.shape[0])

    # lane-dense padding: E and N to multiples of 128 (padded indices -> all-zero one-hot rows).
    E = max(128, int(math.ceil(E_real / 128)) * 128)
    N = max(128, int(math.ceil(N_real / 128)) * 128)

    row_pad = np.full(E, -1, np.int32); row_pad[:E_real] = row_np.astype(np.int32)
    col_pad = np.full(E, -1, np.int32); col_pad[:E_real] = col_np.astype(np.int32)
    row_g = np.where(row_pad >= 0, row_pad, 0).astype(np.int32)
    col_g = np.where(col_pad >= 0, col_pad, 0).astype(np.int32)

    # dist for padded edges is harmless (their one-hot rows/columns are all zero); the second
    # column carries a -1e9 logit bias so padded edges never pin the softmax max-shift.
    pr = jnp.take(pos, jnp.asarray(row_g), axis=0)
    pc = jnp.take(pos, jnp.asarray(col_g), axis=0)
    dist = jnp.sqrt(jnp.sum((pr - pc) ** 2, axis=-1, keepdims=True))                # (E, 1)
    mask_bias = jnp.asarray((row_pad < 0).astype(np.float32) * -1e9).reshape(E, 1)  # (E, 1)
    dist2 = jnp.concatenate([dist, mask_bias], axis=-1)                             # (E, 2)

    # one-hot gather/scatter operators: bf16 (exact for 0/1; f32 MXU accumulation in-kernel).
    row_oh = jax.nn.one_hot(jnp.asarray(row_pad), N, dtype=jnp.bfloat16)        # (E, N)
    col_scat = jax.nn.one_hot(jnp.asarray(col_pad), N, dtype=jnp.bfloat16).T    # (N, E)
    batch_pad = np.full(N, -1, np.int32); batch_pad[:N_real] = batch_np.astype(np.int32)
    bat_scat = jax.nn.one_hot(jnp.asarray(batch_pad), B, dtype=jnp.float32).T   # (B, N)

    # gaussian RBF constants
    offset = jnp.linspace(0.0, cutoff, num_gaussians).reshape(1, -1).astype(jnp.float32)
    step = cutoff / (num_gaussians - 1)
    coeff = -0.5 / step ** 2

    # init_v embedding lookup (glue); padded nodes get zero features (excluded from readout).
    v0_real = jnp.take(emb_w, z, axis=0)
    v0 = jnp.zeros((N, emb_w.shape[1]), jnp.float32).at[:N_real].set(v0_real)

    u = custom_model_fused(dist2, v0, row_oh, col_scat, bat_scat, offset,
                           p_layers, u_params, coeff, cutoff)

    aux_loss_all = 0.0
    opt_aux = True
    node_sim_loss = 69.0  # "euclidean_distance_matrix" constant in the reference forward
    return u, aux_loss_all, opt_aux, node_sim_loss


if __name__ == "__main__":
    key = jax.random.PRNGKey(0)
    k_z, k_pos, k_params = jax.random.split(key, 3)

    # Small, consistent hyperparameters (num_filters = var_effective_patch_dim * var_num_patches)
    hidden_channels = 32
    num_filters = 32
    num_gaussians = 16
    num_layers = 3
    out_channels = 1
    cutoff = 10.0

    # Two molecules: 8 and 6 atoms
    sizes = [8, 6]
    N = sum(sizes)
    batch = np.concatenate([np.full(s, i, np.int32) for i, s in enumerate(sizes)])
    z = jax.random.randint(k_z, (N,), 1, 10, dtype=jnp.int32)
    pos = jax.random.uniform(k_pos, (N, 3), jnp.float32, 0.0, 3.0)

    params = init_params(k_params, num_layers, hidden_channels, num_filters,
                         num_gaussians, out_channels)

    u, aux_loss_all, opt_aux, node_sim_loss = custom_model_forward(
        z, pos, batch, params, cutoff=cutoff, num_gaussians=num_gaussians)
    u = jax.block_until_ready(u)

    assert u.shape == (len(sizes), out_channels)
    assert bool(jnp.all(jnp.isfinite(u)))
    print("KERNEL_OK")
</pallas_src>

<mosaic_0001>
module attributes {stable_mosaic.version = 11 : i64} {
  func.func @_fused_kernel(%arg0: i32, %arg1: memref<128x2xf32, #tpu.memory_space<vmem>>, %arg2: memref<128x32xf32, #tpu.memory_space<vmem>>, %arg3: memref<128x128xbf16, #tpu.memory_space<vmem>>, %arg4: memref<128x128xbf16, #tpu.memory_space<vmem>>, %arg5: memref<2x128xf32, #tpu.memory_space<vmem>>, %arg6: memref<1x16xf32, #tpu.memory_space<vmem>>, %arg7: memref<16x96xbf16, #tpu.memory_space<vmem>>, %arg8: memref<1x96xf32, #tpu.memory_space<vmem>>, %arg9: memref<3x32x32xbf16, #tpu.memory_space<vmem>>, %arg10: memref<3x1x32xf32, #tpu.memory_space<vmem>>, %arg11: memref<3x32x32xbf16, #tpu.memory_space<vmem>>, %arg12: memref<3x32x32xbf16, #tpu.memory_space<vmem>>, %arg13: memref<3x1x32xf32, #tpu.memory_space<vmem>>, %arg14: memref<3x32x32xbf16, #tpu.memory_space<vmem>>, %arg15: memref<3x1x32xf32, #tpu.memory_space<vmem>>, %arg16: memref<32x16xbf16, #tpu.memory_space<vmem>>, %arg17: memref<1x16xf32, #tpu.memory_space<vmem>>, %arg18: memref<16x1xbf16, #tpu.memory_space<vmem>>, %arg19: memref<1x1xf32, #tpu.memory_space<vmem>>, %arg20: memref<2x1xf32, #tpu.memory_space<vmem>>, %arg21: memref<128x32xf32, #tpu.memory_space<vmem>>, %arg22: memref<3x128x32xbf16, #tpu.memory_space<vmem>>) attributes {dimension_semantics = [#tpu.dimension_semantics<arbitrary>], iteration_bounds = array<i64: 3>, scalar_prefetch = 0 : i64, scratch_operands = 2 : i64, tpu.core_type = #tpu.core_type<tc>, window_params = [{pipeline_mode = #tpu.pipeline_mode<synchronous>, transform_indices = @transform_0, window_bounds = array<i64: 128, 2>}, {pipeline_mode = #tpu.pipeline_mode<synchronous>, transform_indices = @transform_1, window_bounds = array<i64: 128, 32>}, {pipeline_mode = #tpu.pipeline_mode<synchronous>, transform_indices = @transform_2, window_bounds = array<i64: 128, 128>}, {pipeline_mode = #tpu.pipeline_mode<synchronous>, transform_indices = @transform_3, window_bounds = array<i64: 128, 128>}, {pipeline_mode = #tpu.pipeline_mode<synchronous>, transform_indices = @transform_4, window_bounds = array<i64: 2, 128>}, {pipeline_mode = #tpu.pipeline_mode<synchronous>, transform_indices = @transform_5, window_bounds = array<i64: 1, 16>}, {pipeline_mode = #tpu.pipeline_mode<synchronous>, transform_indices = @transform_6, window_bounds = array<i64: 16, 96>}, {pipeline_mode = #tpu.pipeline_mode<synchronous>, transform_indices = @transform_7, window_bounds = array<i64: 1, 96>}, {pipeline_mode = #tpu.pipeline_mode<synchronous>, transform_indices = @transform_8, window_bounds = array<i64: 3, 32, 32>}, {pipeline_mode = #tpu.pipeline_mode<synchronous>, transform_indices = @transform_9, window_bounds = array<i64: 3, 1, 32>}, {pipeline_mode = #tpu.pipeline_mode<synchronous>, transform_indices = @transform_10, window_bounds = array<i64: 3, 32, 32>}, {pipeline_mode = #tpu.pipeline_mode<synchronous>, transform_indices = @transform_11, window_bounds = array<i64: 3, 32, 32>}, {pipeline_mode = #tpu.pipeline_mode<synchronous>, transform_indices = @transform_12, window_bounds = array<i64: 3, 1, 32>}, {pipeline_mode = #tpu.pipeline_mode<synchronous>, transform_indices = @transform_13, window_bounds = array<i64: 3, 32, 32>}, {pipeline_mode = #tpu.pipeline_mode<synchronous>, transform_indices = @transform_14, window_bounds = array<i64: 3, 1, 32>}, {pipeline_mode = #tpu.pipeline_mode<synchronous>, transform_indices = @transform_15, window_bounds = array<i64: 32, 16>}, {pipeline_mode = #tpu.pipeline_mode<synchronous>, transform_indices = @transform_16, window_bounds = array<i64: 1, 16>}, {pipeline_mode = #tpu.pipeline_mode<synchronous>, transform_indices = @transform_17, window_bounds = array<i64: 16, 1>}, {pipeline_mode = #tpu.pipeline_mode<synchronous>, transform_indices = @transform_18, window_bounds = array<i64: 1, 1>}, {pipeline_mode = #tpu.pipeline_mode<synchronous>, transform_indices = @transform_19, window_bounds = array<i64: 2, 1>}]} {
    %c0_i32 = arith.constant 0 : i32
    %0 = arith.cmpi eq, %arg0, %c0_i32 : i32
    %1 = arith.extui %0 : i1 to i32
    %c0_i32_0 = arith.constant 0 : i32
    %2 = arith.cmpi ne, %1, %c0_i32_0 : i32
    scf.if %2 {
      %c0_33 = arith.constant 0 : index
      %c0_34 = arith.constant 0 : index
      %75 = vector.load %arg1[%c0_33, %c0_34] : memref<128x2xf32, #tpu.memory_space<vmem>>, vector<128x1xf32>
      %c0_35 = arith.constant 0 : index
      %c0_36 = arith.constant 0 : index
      %76 = vector.load %arg6[%c0_35, %c0_36] : memref<1x16xf32, #tpu.memory_space<vmem>>, vector<1x16xf32>
      %77 = vector.broadcast %75 : vector<128x1xf32> to vector<128x16xf32>
      %78 = vector.broadcast %76 : vector<1x16xf32> to vector<128x16xf32>
      %79 = arith.subf %77, %78 : vector<128x16xf32>
      %80 = arith.mulf %79, %79 : vector<128x16xf32>
      %cst_37 = arith.constant -1.125000e+00 : f32
      %81 = vector.broadcast %cst_37 : f32 to vector<128x16xf32>
      %82 = arith.mulf %81, %80 : vector<128x16xf32>
      %83 = math.exp %82 : vector<128x16xf32>
      %cst_38 = arith.constant 0.314159274 : f32
      %84 = vector.broadcast %cst_38 : f32 to vector<128x1xf32>
      %85 = arith.mulf %75, %84 : vector<128x1xf32>
      %86 = math.cos %85 : vector<128x1xf32>
      %cst_39 = arith.constant 1.000000e+00 : f32
      %87 = vector.broadcast %cst_39 : f32 to vector<128x1xf32>
      %88 = arith.addf %86, %87 : vector<128x1xf32>
      %cst_40 = arith.constant 5.000000e-01 : f32
      %89 = vector.broadcast %cst_40 : f32 to vector<128x1xf32>
      %90 = arith.mulf %89, %88 : vector<128x1xf32>
      %91 = arith.truncf %83 : vector<128x16xf32> to vector<128x16xbf16>
      %c0_41 = arith.constant 0 : index
      %c0_42 = arith.constant 0 : index
      %92 = vector.load %arg7[%c0_41, %c0_42] : memref<16x96xbf16, #tpu.memory_space<vmem>>, vector<16x96xbf16>
      %cst_43 = arith.constant dense<0.000000e+00> : vector<128x96xf32>
      %93 = tpu.matmul %91, %92, %cst_43 {dimension_numbers = #tpu.dot_dimension_numbers<[1], [0], [0], [1], [0, 0, 1, 1], [], []>} : vector<128x16xbf16>, vector<16x96xbf16>, vector<128x96xf32> -> vector<128x96xf32>
      %c0_44 = arith.constant 0 : index
      %c0_45 = arith.constant 0 : index
      %94 = vector.load %arg8[%c0_44, %c0_45] : memref<1x96xf32, #tpu.memory_space<vmem>>, vector<1x96xf32>
      %95 = vector.broadcast %94 : vector<1x96xf32> to vector<128x96xf32>
      %96 = arith.addf %93, %95 : vector<128x96xf32>
      %cst_46 = arith.constant 0.000000e+00 : f32
      %97 = vector.broadcast %cst_46 : f32 to vector<128x96xf32>
      %98 = arith.maximumf %96, %97 : vector<128x96xf32>
      %99 = math.absf %96 : vector<128x96xf32>
      %cst_47 = arith.constant 0.000000e+00 : f32
      %100 = vector.broadcast %cst_47 : f32 to vector<128x96xf32>
      %101 = arith.subf %100, %99 : vector<128x96xf32>
      %102 = math.exp %101 : vector<128x96xf32>
      %cst_48 = arith.constant 1.000000e+00 : f32
      %103 = vector.broadcast %cst_48 : f32 to vector<128x96xf32>
      %104 = arith.addf %103, %102 : vector<128x96xf32>
      %105 = math.log %104 : vector<128x96xf32>
      %106 = arith.addf %98, %105 : vector<128x96xf32>
      %cst_49 = arith.constant 0.693147182 : f32
      %107 = vector.broadcast %cst_49 : f32 to vector<128x96xf32>
      %108 = arith.subf %106, %107 : vector<128x96xf32>
      %109 = arith.truncf %108 : vector<128x96xf32> to vector<128x96xbf16>
      %110 = vector.extract_strided_slice %109 {offsets = [0, 0], sizes = [128, 32], strides = [1, 1]} : vector<128x96xbf16> to vector<128x32xbf16>
      %c0_50 = arith.constant 0 : index
      %c0_51 = arith.constant 0 : index
      %c0_52 = arith.constant 0 : index
      %111 = vector.load %arg9[%c0_50, %c0_51, %c0_52] : memref<3x32x32xbf16, #tpu.memory_space<vmem>>, vector<1x32x32xbf16>
      %112 = vector.shape_cast %111 : vector<1x32x32xbf16> to vector<32x32xbf16>
      %cst_53 = arith.constant dense<0.000000e+00> : vector<128x32xf32>
      %113 = tpu.matmul %110, %112, %cst_53 {dimension_numbers = #tpu.dot_dimension_numbers<[1], [0], [0], [1], [0, 0, 1, 1], [], []>} : vector<128x32xbf16>, vector<32x32xbf16>, vector<128x32xf32> -> vector<128x32xf32>
      %c0_54 = arith.constant 0 : index
      %c0_55 = arith.constant 0 : index
      %c0_56 = arith.constant 0 : index
      %114 = vector.load %arg10[%c0_54, %c0_55, %c0_56] : memref<3x1x32xf32, #tpu.memory_space<vmem>>, vector<1x1x32xf32>
      %115 = vector.shape_cast %114 : vector<1x1x32xf32> to vector<1x32xf32>
      %116 = vector.broadcast %115 : vector<1x32xf32> to vector<128x32xf32>
      %117 = arith.addf %113, %116 : vector<128x32xf32>
      %118 = vector.broadcast %90 : vector<128x1xf32> to vector<128x32xf32>
      %119 = arith.mulf %117, %118 : vector<128x32xf32>
      %120 = arith.truncf %119 : vector<128x32xf32> to vector<128x32xbf16>
      %c0_57 = arith.constant 0 : index
      %c0_58 = arith.constant 0 : index
      %c0_59 = arith.constant 0 : index
      %121 = vector.load %arg22[%c0_57, %c0_58, %c0_59] : memref<3x128x32xbf16, #tpu.memory_space<vmem>>, vector<1x128x32xbf16>
      %122 = vector.shape_cast %121 : vector<1x128x32xbf16> to vector<128x32xbf16>
      %123 = vector.shape_cast %120 : vector<128x32xbf16> to vector<1x128x32xbf16>
      tpu.vector_store %arg22[%c0_57, %c0_58, %c0_59], %123 {strides = array<i32>} : memref<3x128x32xbf16, #tpu.memory_space<vmem>>, vector<1x128x32xbf16>,
      %124 = vector.extract_strided_slice %109 {offsets = [0, 32], sizes = [128, 32], strides = [1, 1]} : vector<128x96xbf16> to vector<128x32xbf16>
      %c1_60 = arith.constant 1 : index
      %c0_61 = arith.constant 0 : index
      %c0_62 = arith.constant 0 : index
      %125 = vector.load %arg9[%c1_60, %c0_61, %c0_62] : memref<3x32x32xbf16, #tpu.memory_space<vmem>>, vector<1x32x32xbf16>
      %126 = vector.shape_cast %125 : vector<1x32x32xbf16> to vector<32x32xbf16>
      %cst_63 = arith.constant dense<0.000000e+00> : vector<128x32xf32>
      %127 = tpu.matmul %124, %126, %cst_63 {dimension_numbers = #tpu.dot_dimension_numbers<[1], [0], [0], [1], [0, 0, 1, 1], [], []>} : vector<128x32xbf16>, vector<32x32xbf16>, vector<128x32xf32> -> vector<128x32xf32>
      %c1_64 = arith.constant 1 : index
      %c0_65 = arith.constant 0 : index
      %c0_66 = arith.constant 0 : index
      %128 = vector.load %arg10[%c1_64, %c0_65, %c0_66] : memref<3x1x32xf32, #tpu.memory_space<vmem>>, vector<1x1x32xf32>
      %129 = vector.shape_cast %128 : vector<1x1x32xf32> to vector<1x32xf32>
      %130 = vector.broadcast %129 : vector<1x32xf32> to vector<128x32xf32>
      %131 = arith.addf %127, %130 : vector<128x32xf32>
      %132 = vector.broadcast %90 : vector<128x1xf32> to vector<128x32xf32>
      %133 = arith.mulf %131, %132 : vector<128x32xf32>
      %134 = arith.truncf %133 : vector<128x32xf32> to vector<128x32xbf16>
      %c1_67 = arith.constant 1 : index
      %c0_68 = arith.constant 0 : index
      %c0_69 = arith.constant 0 : index
      %135 = vector.load %arg22[%c1_67, %c0_68, %c0_69] : memref<3x128x32xbf16, #tpu.memory_space<vmem>>, vector<1x128x32xbf16>
      %136 = vector.shape_cast %135 : vector<1x128x32xbf16> to vector<128x32xbf16>
      %137 = vector.shape_cast %134 : vector<128x32xbf16> to vector<1x128x32xbf16>
      tpu.vector_store %arg22[%c1_67, %c0_68, %c0_69], %137 {strides = array<i32>} : memref<3x128x32xbf16, #tpu.memory_space<vmem>>, vector<1x128x32xbf16>,
      %138 = vector.extract_strided_slice %109 {offsets = [0, 64], sizes = [128, 32], strides = [1, 1]} : vector<128x96xbf16> to vector<128x32xbf16>
      %c2 = arith.constant 2 : index
      %c0_70 = arith.constant 0 : index
      %c0_71 = arith.constant 0 : index
      %139 = vector.load %arg9[%c2, %c0_70, %c0_71] : memref<3x32x32xbf16, #tpu.memory_space<vmem>>, vector<1x32x32xbf16>
      %140 = vector.shape_cast %139 : vector<1x32x32xbf16> to vector<32x32xbf16>
      %cst_72 = arith.constant dense<0.000000e+00> : vector<128x32xf32>
      %141 = tpu.matmul %138, %140, %cst_72 {dimension_numbers = #tpu.dot_dimension_numbers<[1], [0], [0], [1], [0, 0, 1, 1], [], []>} : vector<128x32xbf16>, vector<32x32xbf16>, vector<128x32xf32> -> vector<128x32xf32>
      %c2_73 = arith.constant 2 : index
      %c0_74 = arith.constant 0 : index
      %c0_75 = arith.constant 0 : index
      %142 = vector.load %arg10[%c2_73, %c0_74, %c0_75] : memref<3x1x32xf32, #tpu.memory_space<vmem>>, vector<1x1x32xf32>
      %143 = vector.shape_cast %142 : vector<1x1x32xf32> to vector<1x32xf32>
      %144 = vector.broadcast %143 : vector<1x32xf32> to vector<128x32xf32>
      %145 = arith.addf %141, %144 : vector<128x32xf32>
      %146 = vector.broadcast %90 : vector<128x1xf32> to vector<128x32xf32>
      %147 = arith.mulf %145, %146 : vector<128x32xf32>
      %148 = arith.truncf %147 : vector<128x32xf32> to vector<128x32xbf16>
      %c2_76 = arith.constant 2 : index
      %c0_77 = arith.constant 0 : index
      %c0_78 = arith.constant 0 : index
      %149 = vector.load %arg22[%c2_76, %c0_77, %c0_78] : memref<3x128x32xbf16, #tpu.memory_space<vmem>>, vector<1x128x32xbf16>
      %150 = vector.shape_cast %149 : vector<1x128x32xbf16> to vector<128x32xbf16>
      %151 = vector.shape_cast %148 : vector<128x32xbf16> to vector<1x128x32xbf16>
      tpu.vector_store %arg22[%c2_76, %c0_77, %c0_78], %151 {strides = array<i32>} : memref<3x128x32xbf16, #tpu.memory_space<vmem>>, vector<1x128x32xbf16>,
      %c0_79 = arith.constant 0 : index
      %c0_80 = arith.constant 0 : index
      %152 = vector.load %arg2[%c0_79, %c0_80] : memref<128x32xf32, #tpu.memory_space<vmem>>, vector<128x32xf32>
      %c0_81 = arith.constant 0 : index
      %c0_82 = arith.constant 0 : index
      %153 = vector.load %arg21[%c0_81, %c0_82] : memref<128x32xf32, #tpu.memory_space<vmem>>, vector<128x32xf32>
      tpu.vector_store %arg21[%c0_81, %c0_82], %152 {strides = array<i32>} : memref<128x32xf32, #tpu.memory_space<vmem>>, vector<128x32xf32>,
    } else {
    }
    %c0 = arith.constant 0 : index
    %c0_1 = arith.constant 0 : index
    %3 = vector.load %arg21[%c0, %c0_1] : memref<128x32xf32, #tpu.memory_space<vmem>>, vector<128x32xf32>
    %4 = arith.index_cast %arg0 : i32 to index
    %c0_2 = arith.constant 0 : index
    %c0_3 = arith.constant 0 : index
    %5 = vector.load %arg22[%4, %c0_2, %c0_3] : memref<3x128x32xbf16, #tpu.memory_space<vmem>>, vector<1x128x32xbf16>
    %6 = vector.shape_cast %5 : vector<1x128x32xbf16> to vector<128x32xbf16>
    %7 = arith.extf %6 : vector<128x32xbf16> to vector<128x32xf32>
    %c0_4 = arith.constant 0 : index
    %c1 = arith.constant 1 : index
    %8 = vector.load %arg1[%c0_4, %c1] : memref<128x2xf32, #tpu.memory_space<vmem>>, vector<128x1xf32>
    %9 = arith.truncf %3 : vector<128x32xf32> to vector<128x32xbf16>
    %10 = arith.index_cast %arg0 : i32 to index
    %c0_5 = arith.constant 0 : index
    %c0_6 = arith.constant 0 : index
    %11 = vector.load %arg11[%10, %c0_5, %c0_6] : memref<3x32x32xbf16, #tpu.memory_space<vmem>>, vector<1x32x32xbf16>
    %12 = vector.shape_cast %11 : vector<1x32x32xbf16> to vector<32x32xbf16>
    %cst = arith.constant dense<0.000000e+00> : vector<128x32xf32>
    %13 = tpu.matmul %9, %12, %cst {dimension_numbers = #tpu.dot_dimension_numbers<[1], [0], [0], [1], [0, 0, 1, 1], [], []>} : vector<128x32xbf16>, vector<32x32xbf16>, vector<128x32xf32> -> vector<128x32xf32>
    %c0_7 = arith.constant 0 : index
    %c0_8 = arith.constant 0 : index
    %14 = vector.load %arg3[%c0_7, %c0_8] : memref<128x128xbf16, #tpu.memory_space<vmem>>, vector<128x128xbf16>
    %15 = arith.truncf %13 : vector<128x32xf32> to vector<128x32xbf16>
    %cst_9 = arith.constant dense<0.000000e+00> : vector<128x32xf32>
    %16 = tpu.matmul %14, %15, %cst_9 {dimension_numbers = #tpu.dot_dimension_numbers<[1], [0], [0], [1], [0, 0, 1, 1], [], []>} : vector<128x128xbf16>, vector<128x32xbf16>, vector<128x32xf32> -> vector<128x32xf32>
    %17 = arith.mulf %16, %7 : vector<128x32xf32>
    %18 = vector.broadcast %8 : vector<128x1xf32> to vector<128x32xf32>
    %19 = arith.addf %17, %18 : vector<128x32xf32>
    %cst_10 = arith.constant dense<0xFF800000> : vector<32xf32>
    %20 = vector.multi_reduction <maximumf>, %19, %cst_10 [0] : vector<128x32xf32> to vector<32xf32>
    %21 = vector.shape_cast %20 : vector<32xf32> to vector<1x32xf32>
    %22 = vector.broadcast %21 : vector<1x32xf32> to vector<128x32xf32>
    %23 = arith.subf %19, %22 : vector<128x32xf32>
    %24 = math.exp %23 : vector<128x32xf32>
    %25 = arith.mulf %19, %24 : vector<128x32xf32>
    %26 = tpu.concatenate %25, %24 in 1 : vector<128x32xf32>, vector<128x32xf32> -> vector<128x64xf32>
    %27 = arith.truncf %26 : vector<128x64xf32> to vector<128x64xbf16>
    %c0_11 = arith.constant 0 : index
    %c0_12 = arith.constant 0 : index
    %28 = vector.load %arg4[%c0_11, %c0_12] : memref<128x128xbf16, #tpu.memory_space<vmem>>, vector<128x128xbf16>
    %cst_13 = arith.constant dense<0.000000e+00> : vector<128x64xf32>
    %29 = tpu.matmul %28, %27, %cst_13 {dimension_numbers = #tpu.dot_dimension_numbers<[1], [0], [0], [1], [0, 0, 1, 1], [], []>} : vector<128x128xbf16>, vector<128x64xbf16>, vector<128x64xf32> -> vector<128x64xf32>
    %30 = vector.extract_strided_slice %29 {offsets = [0, 0], sizes = [128, 32], strides = [1, 1]} : vector<128x64xf32> to vector<128x32xf32>
    %31 = vector.extract_strided_slice %29 {offsets = [0, 32], sizes = [128, 32], strides = [1, 1]} : vector<128x64xf32> to vector<128x32xf32>
    %cst_14 = arith.constant 0.000000e+00 : f32
    %32 = vector.broadcast %cst_14 : f32 to vector<128x32xf32>
    %33 = arith.cmpf ogt, %31, %32 : vector<128x32xf32>
    %cst_15 = arith.constant 1.000000e+00 : f32
    %34 = vector.broadcast %cst_15 : f32 to vector<128x32xf32>
    %35 = arith.select %33, %31, %34 : vector<128x32xi1>, vector<128x32xf32>
    %36 = tpu.reciprocal %35 {approx = true} : vector<128x32xf32> -> vector<128x32xf32>
    %37 = arith.mulf %30, %36 : vector<128x32xf32>
    %38 = arith.truncf %37 : vector<128x32xf32> to vector<128x32xbf16>
    %39 = arith.index_cast %arg0 : i32 to index
    %c0_16 = arith.constant 0 : index
    %c0_17 = arith.constant 0 : index
    %40 = vector.load %arg12[%39, %c0_16, %c0_17] : memref<3x32x32xbf16, #tpu.memory_space<vmem>>, vector<1x32x32xbf16>
    %41 = vector.shape_cast %40 : vector<1x32x32xbf16> to vector<32x32xbf16>
    %cst_18 = arith.constant dense<0.000000e+00> : vector<128x32xf32>
    %42 = tpu.matmul %38, %41, %cst_18 {dimension_numbers = #tpu.dot_dimension_numbers<[1], [0], [0], [1], [0, 0, 1, 1], [], []>} : vector<128x32xbf16>, vector<32x32xbf16>, vector<128x32xf32> -> vector<128x32xf32>
    %43 = arith.index_cast %arg0 : i32 to index
    %c0_19 = arith.constant 0 : index
    %c0_20 = arith.constant 0 : index
    %44 = vector.load %arg13[%43, %c0_19, %c0_20] : memref<3x1x32xf32, #tpu.memory_space<vmem>>, vector<1x1x32xf32>
    %45 = vector.shape_cast %44 : vector<1x1x32xf32> to vector<1x32xf32>
    %46 = vector.broadcast %45 : vector<1x32xf32> to vector<128x32xf32>
    %47 = arith.addf %42, %46 : vector<128x32xf32>
    %cst_21 = arith.constant 0.000000e+00 : f32
    %48 = vector.broadcast %cst_21 : f32 to vector<128x32xf32>
    %49 = arith.maximumf %47, %48 : vector<128x32xf32>
    %50 = math.absf %47 : vector<128x32xf32>
    %cst_22 = arith.constant 0.000000e+00 : f32
    %51 = vector.broadcast %cst_22 : f32 to vector<128x32xf32>
    %52 = arith.subf %51, %50 : vector<128x32xf32>
    %53 = math.exp %52 : vector<128x32xf32>
    %cst_23 = arith.constant 1.000000e+00 : f32
    %54 = vector.broadcast %cst_23 : f32 to vector<128x32xf32>
    %55 = arith.addf %54, %53 : vector<128x32xf32>
    %56 = math.log %55 : vector<128x32xf32>
    %57 = arith.addf %49, %56 : vector<128x32xf32>
    %cst_24 = arith.constant 0.693147182 : f32
    %58 = vector.broadcast %cst_24 : f32 to vector<128x32xf32>
    %59 = arith.subf %57, %58 : vector<128x32xf32>
    %60 = arith.truncf %59 : vector<128x32xf32> to vector<128x32xbf16>
    %61 = arith.index_cast %arg0 : i32 to index
    %c0_25 = arith.constant 0 : index
    %c0_26 = arith.constant 0 : index
    %62 = vector.load %arg14[%61, %c0_25, %c0_26] : memref<3x32x32xbf16, #tpu.memory_space<vmem>>, vector<1x32x32xbf16>
    %63 = vector.shape_cast %62 : vector<1x32x32xbf16> to vector<32x32xbf16>
    %cst_27 = arith.constant dense<0.000000e+00> : vector<128x32xf32>
    %64 = tpu.matmul %60, %63, %cst_27 {dimension_numbers = #tpu.dot_dimension_numbers<[1], [0], [0], [1], [0, 0, 1, 1], [], []>} : vector<128x32xbf16>, vector<32x32xbf16>, vector<128x32xf32> -> vector<128x32xf32>
    %65 = arith.index_cast %arg0 : i32 to index
    %c0_28 = arith.constant 0 : index
    %c0_29 = arith.constant 0 : index
    %66 = vector.load %arg15[%65, %c0_28, %c0_29] : memref<3x1x32xf32, #tpu.memory_space<vmem>>, vector<1x1x32xf32>
    %67 = vector.shape_cast %66 : vector<1x1x32xf32> to vector<1x32xf32>
    %68 = vector.broadcast %67 : vector<1x32xf32> to vector<128x32xf32>
    %69 = arith.addf %64, %68 : vector<128x32xf32>
    %70 = arith.addf %3, %69 : vector<128x32xf32>
    %c0_30 = arith.constant 0 : index
    %c0_31 = arith.constant 0 : index
    %71 = vector.load %arg21[%c0_30, %c0_31] : memref<128x32xf32, #tpu.memory_space<vmem>>, vector<128x32xf32>
    tpu.vector_store %arg21[%c0_30, %c0_31], %70 {strides = array<i32>} : memref<128x32xf32, #tpu.memory_space<vmem>>, vector<128x32xf32>,
    %c2_i32 = arith.constant 2 : i32
    %72 = arith.cmpi eq, %arg0, %c2_i32 : i32
    %73 = arith.extui %72 : i1 to i32
    %c0_i32_32 = arith.constant 0 : i32
    %74 = arith.cmpi ne, %73, %c0_i32_32 : i32
    scf.if %74 {
      %75 = arith.truncf %70 : vector<128x32xf32> to vector<128x32xbf16>
      %c0_33 = arith.constant 0 : index
      %c0_34 = arith.constant 0 : index
      %76 = vector.load %arg16[%c0_33, %c0_34] : memref<32x16xbf16, #tpu.memory_space<vmem>>, vector<32x16xbf16>
      %cst_35 = arith.constant dense<0.000000e+00> : vector<128x16xf32>
      %77 = tpu.matmul %75, %76, %cst_35 {dimension_numbers = #tpu.dot_dimension_numbers<[1], [0], [0], [1], [0, 0, 1, 1], [], []>} : vector<128x32xbf16>, vector<32x16xbf16>, vector<128x16xf32> -> vector<128x16xf32>
      %c0_36 = arith.constant 0 : index
      %c0_37 = arith.constant 0 : index
      %78 = vector.load %arg17[%c0_36, %c0_37] : memref<1x16xf32, #tpu.memory_space<vmem>>, vector<1x16xf32>
      %79 = vector.broadcast %78 : vector<1x16xf32> to vector<128x16xf32>
      %80 = arith.addf %77, %79 : vector<128x16xf32>
      %cst_38 = arith.constant 0.000000e+00 : f32
      %81 = vector.broadcast %cst_38 : f32 to vector<128x16xf32>
      %82 = arith.maximumf %80, %81 : vector<128x16xf32>
      %83 = math.absf %80 : vector<128x16xf32>
      %cst_39 = arith.constant 0.000000e+00 : f32
      %84 = vector.broadcast %cst_39 : f32 to vector<128x16xf32>
      %85 = arith.subf %84, %83 : vector<128x16xf32>
      %86 = math.exp %85 : vector<128x16xf32>
      %cst_40 = arith.constant 1.000000e+00 : f32
      %87 = vector.broadcast %cst_40 : f32 to vector<128x16xf32>
      %88 = arith.addf %87, %86 : vector<128x16xf32>
      %89 = math.log %88 : vector<128x16xf32>
      %90 = arith.addf %82, %89 : vector<128x16xf32>
      %cst_41 = arith.constant 0.693147182 : f32
      %91 = vector.broadcast %cst_41 : f32 to vector<128x16xf32>
      %92 = arith.subf %90, %91 : vector<128x16xf32>
      %93 = arith.truncf %92 : vector<128x16xf32> to vector<128x16xbf16>
      %c0_42 = arith.constant 0 : index
      %c0_43 = arith.constant 0 : index
      %94 = vector.load %arg18[%c0_42, %c0_43] : memref<16x1xbf16, #tpu.memory_space<vmem>>, vector<16x1xbf16>
      %cst_44 = arith.constant dense<0.000000e+00> : vector<128x1xf32>
      %95 = tpu.matmul %93, %94, %cst_44 {dimension_numbers = #tpu.dot_dimension_numbers<[1], [0], [0], [1], [0, 0, 1, 1], [], []>} : vector<128x16xbf16>, vector<16x1xbf16>, vector<128x1xf32> -> vector<128x1xf32>
      %c0_45 = arith.constant 0 : index
      %c0_46 = arith.constant 0 : index
      %96 = vector.load %arg19[%c0_45, %c0_46] : memref<1x1xf32, #tpu.memory_space<vmem>>, vector<1x1xf32>
      %97 = vector.broadcast %96 : vector<1x1xf32> to vector<128x1xf32>
      %98 = arith.addf %95, %97 : vector<128x1xf32>
      %c0_47 = arith.constant 0 : index
      %c0_48 = arith.constant 0 : index
      %99 = vector.load %arg5[%c0_47, %c0_48] : memref<2x128xf32, #tpu.memory_space<vmem>>, vector<2x128xf32>
      %cst_49 = arith.constant dense<0.000000e+00> : vector<2x1xf32>
      %100 = tpu.matmul %99, %98, %cst_49 {dimension_numbers = #tpu.dot_dimension_numbers<[1], [0], [0], [1], [0, 0, 1, 1], [], []>} : vector<2x128xf32>, vector<128x1xf32>, vector<2x1xf32> -> vector<2x1xf32>
      %c0_50 = arith.constant 0 : index
      %c0_51 = arith.constant 0 : index
      %101 = vector.load %arg20[%c0_50, %c0_51] : memref<2x1xf32, #tpu.memory_space<vmem>>, vector<2x1xf32>
      tpu.vector_store %arg20[%c0_50, %c0_51], %100 {strides = array<i32>} : memref<2x1xf32, #tpu.memory_space<vmem>>, vector<2x1xf32>,
    } else {
    }
    return
  }
  func.func @transform_0(%arg0: i32) -> (i32, i32) {
    %c0_i32 = arith.constant 0 : i32
    %c0_i32_0 = arith.constant 0 : i32
    %c0_i32_1 = arith.constant 0 : i32
    return %c0_i32, %c0_i32_0 : i32, i32
  }
  func.func @transform_1(%arg0: i32) -> (i32, i32) {
    %c0_i32 = arith.constant 0 : i32
    %c0_i32_0 = arith.constant 0 : i32
    %c0_i32_1 = arith.constant 0 : i32
    return %c0_i32, %c0_i32_0 : i32, i32
  }
  func.func @transform_2(%arg0: i32) -> (i32, i32) {
    %c0_i32 = arith.constant 0 : i32
    %c0_i32_0 = arith.constant 0 : i32
    %c0_i32_1 = arith.constant 0 : i32
    return %c0_i32, %c0_i32_0 : i32, i32
  }
  func.func @transform_3(%arg0: i32) -> (i32, i32) {
    %c0_i32 = arith.constant 0 : i32
    %c0_i32_0 = arith.constant 0 : i32
    %c0_i32_1 = arith.constant 0 : i32
    return %c0_i32, %c0_i32_0 : i32, i32
  }
  func.func @transform_4(%arg0: i32) -> (i32, i32) {
    %c0_i32 = arith.constant 0 : i32
    %c0_i32_0 = arith.constant 0 : i32
    %c0_i32_1 = arith.constant 0 : i32
    return %c0_i32, %c0_i32_0 : i32, i32
  }
  func.func @transform_5(%arg0: i32) -> (i32, i32) {
    %c0_i32 = arith.constant 0 : i32
    %c0_i32_0 = arith.constant 0 : i32
    %c0_i32_1 = arith.constant 0 : i32
    return %c0_i32, %c0_i32_0 : i32, i32
  }
  func.func @transform_6(%arg0: i32) -> (i32, i32) {
    %c0_i32 = arith.constant 0 : i32
    %c0_i32_0 = arith.constant 0 : i32
    %c0_i32_1 = arith.constant 0 : i32
    return %c0_i32, %c0_i32_0 : i32, i32
  }
  func.func @transform_7(%arg0: i32) -> (i32, i32) {
    %c0_i32 = arith.constant 0 : i32
    %c0_i32_0 = arith.constant 0 : i32
    %c0_i32_1 = arith.constant 0 : i32
    return %c0_i32, %c0_i32_0 : i32, i32
  }
  func.func @transform_8(%arg0: i32) -> (i32, i32, i32) {
    %c0_i32 = arith.constant 0 : i32
    %c0_i32_0 = arith.constant 0 : i32
    %c0_i32_1 = arith.constant 0 : i32
    %c0_i32_2 = arith.constant 0 : i32
    return %c0_i32, %c0_i32_0, %c0_i32_1 : i32, i32, i32
  }
  func.func @transform_9(%arg0: i32) -> (i32, i32, i32) {
    %c0_i32 = arith.constant 0 : i32
    %c0_i32_0 = arith.constant 0 : i32
    %c0_i32_1 = arith.constant 0 : i32
    %c0_i32_2 = arith.constant 0 : i32
    return %c0_i32, %c0_i32_0, %c0_i32_1 : i32, i32, i32
  }
  func.func @transform_10(%arg0: i32) -> (i32, i32, i32) {
    %c0_i32 = arith.constant 0 : i32
    %c0_i32_0 = arith.constant 0 : i32
    %c0_i32_1 = arith.constant 0 : i32
    %c0_i32_2 = arith.constant 0 : i32
    return %c0_i32, %c0_i32_0, %c0_i32_1 : i32, i32, i32
  }
  func.func @transform_11(%arg0: i32) -> (i32, i32, i32) {
    %c0_i32 = arith.constant 0 : i32
    %c0_i32_0 = arith.constant 0 : i32
    %c0_i32_1 = arith.constant 0 : i32
    %c0_i32_2 = arith.constant 0 : i32
    return %c0_i32, %c0_i32_0, %c0_i32_1 : i32, i32, i32
  }
  func.func @transform_12(%arg0: i32) -> (i32, i32, i32) {
    %c0_i32 = arith.constant 0 : i32
    %c0_i32_0 = arith.constant 0 : i32
    %c0_i32_1 = arith.constant 0 : i32
    %c0_i32_2 = arith.constant 0 : i32
    return %c0_i32, %c0_i32_0, %c0_i32_1 : i32, i32, i32
  }
  func.func @transform_13(%arg0: i32) -> (i32, i32, i32) {
    %c0_i32 = arith.constant 0 : i32
    %c0_i32_0 = arith.constant 0 : i32
    %c0_i32_1 = arith.constant 0 : i32
    %c0_i32_2 = arith.constant 0 : i32
    return %c0_i32, %c0_i32_0, %c0_i32_1 : i32, i32, i32
  }
  func.func @transform_14(%arg0: i32) -> (i32, i32, i32) {
    %c0_i32 = arith.constant 0 : i32
    %c0_i32_0 = arith.constant 0 : i32
    %c0_i32_1 = arith.constant 0 : i32
    %c0_i32_2 = arith.constant 0 : i32
    return %c0_i32, %c0_i32_0, %c0_i32_1 : i32, i32, i32
  }
  func.func @transform_15(%arg0: i32) -> (i32, i32) {
    %c0_i32 = arith.constant 0 : i32
    %c0_i32_0 = arith.constant 0 : i32
    %c0_i32_1 = arith.constant 0 : i32
    return %c0_i32, %c0_i32_0 : i32, i32
  }
  func.func @transform_16(%arg0: i32) -> (i32, i32) {
    %c0_i32 = arith.constant 0 : i32
    %c0_i32_0 = arith.constant 0 : i32
    %c0_i32_1 = arith.constant 0 : i32
    return %c0_i32, %c0_i32_0 : i32, i32
  }
  func.func @transform_17(%arg0: i32) -> (i32, i32) {
    %c0_i32 = arith.constant 0 : i32
    %c0_i32_0 = arith.constant 0 : i32
    %c0_i32_1 = arith.constant 0 : i32
    return %c0_i32, %c0_i32_0 : i32, i32
  }
  func.func @transform_18(%arg0: i32) -> (i32, i32) {
    %c0_i32 = arith.constant 0 : i32
    %c0_i32_0 = arith.constant 0 : i32
    %c0_i32_1 = arith.constant 0 : i32
    return %c0_i32, %c0_i32_0 : i32, i32
  }
  func.func @transform_19(%arg0: i32) -> (i32, i32) {
    %c0_i32 = arith.constant 0 : i32
    %c0_i32_0 = arith.constant 0 : i32
    %c0_i32_1 = arith.constant 0 : i32
    return %c0_i32, %c0_i32_0 : i32, i32
  }
}

</mosaic_0001>

<llo_original>
// kernel: tpu_custom_call.1
$region0: #{tpu_custom_call.1}
  #allocation0 [shape = 'u32[]', space=smem, size = 0x4, offset = 0x4, fixed_abs, tag = 'smem constant byte address 0x4 - core index']
  #allocation1 [shape = 'u32[72,128]{1,0:T(1,128)}', space=vmem, size = 0x9000, scoped, tag = 'internal scratch']
  #allocation2 [shape = 'f32[128,32]{1,0:T(8,128)}', space=vmem, size = 0x10000, scoped, tag = 'scratch operand']
  #allocation3 [shape = 'bf16[3,128,32]{2,1,0:T(8,128)(2,1)}', space=vmem, size = 0x18000, scoped, tag = 'scratch operand']
  #allocation4 [shape = 'f32[1,1]{1,0:T(1,128)S(1)}', space=vmem, size = 0x200, scoped, tag = 'scoped memory for tpu_custom_call.1']
  %s0 = inlined_call_operand.vmem [shape: f32[128,2], index: 0, kind: input, shape index: {}]
  %s1 = inlined_call_operand.vmem [shape: f32[128,32], index: 1, kind: input, shape index: {}]
  %s2 = inlined_call_operand.vmem [shape: bf16[128,128], index: 2, kind: input, shape index: {}]
  %s3 = inlined_call_operand.vmem [shape: bf16[128,128], index: 3, kind: input, shape index: {}]
  %s4 = inlined_call_operand.hbm [shape: f32[2,128], index: 4, kind: input, shape index: {}]
  %s5 = inlined_call_operand.vmem [shape: f32[1,16], index: 5, kind: input, shape index: {}]
  %s6 = inlined_call_operand.vmem [shape: bf16[16,96], index: 6, kind: input, shape index: {}]
  %s7 = inlined_call_operand.hbm [shape: f32[1,96], index: 7, kind: input, shape index: {}]
  %s8 = inlined_call_operand.vmem [shape: bf16[3,32,32], index: 8, kind: input, shape index: {}]
  %s9 = inlined_call_operand.vmem [shape: f32[3,1,32], index: 9, kind: input, shape index: {}]
  %s10 = inlined_call_operand.vmem [shape: bf16[3,32,32], index: 10, kind: input, shape index: {}]
  %s11 = inlined_call_operand.vmem [shape: bf16[3,32,32], index: 11, kind: input, shape index: {}]
  %s12 = inlined_call_operand.vmem [shape: f32[3,1,32], index: 12, kind: input, shape index: {}]
  %s13 = inlined_call_operand.hbm [shape: bf16[3,32,32], index: 13, kind: input, shape index: {}]
  %s14 = inlined_call_operand.vmem [shape: f32[3,1,32], index: 14, kind: input, shape index: {}]
  %s15 = inlined_call_operand.vmem [shape: bf16[32,16], index: 15, kind: input, shape index: {}]
  %s16 = inlined_call_operand.vmem [shape: f32[1,16], index: 16, kind: input, shape index: {}]
  %s17 = inlined_call_operand.vmem [shape: bf16[16,1], index: 17, kind: input, shape index: {}]
  %s18 = inlined_call_operand.<no memory space> [shape: f32[1,1], index: 18, kind: input, shape index: {}]
  %s19 = inlined_call_operand.vmem [shape: f32[2,1], index: 19, kind: output, shape index: {}]
  %s20 = sld [smem:[#allocation0]]
  $region129: #{tpu_custom_call.1} parent=0
    _
  %s22 = ssub.s32 1, %s20
  %s23 = scalar_select 0, %s22, %s20
  %v24 = vstv %s18
  %25 = vst [vmem:[#allocation4] sm:$0x1] %v24
  $region1: #{tpu_custom_call.1} parent=0
    #allocation5 [shape = 'u8[1024]{0}', space=vmem, size = 0x400, scoped, tag = 'input window, operand 4, single buffered']
    #allocation6 [shape = 's32[2]{0}', space=sflag, size = 0x8, scoped, tag = 'scoped memory for tpu_custom_call.1']
    #allocation7 [shape = 'u8[512]{0}', space=vmem, size = 0x400, scoped, tag = 'input window, operand 7, single buffered']
    #allocation8 [shape = 's32[1]{0}', space=sflag, size = 0x4, scoped, tag = 'scoped memory for tpu_custom_call.1']
    #allocation9 [shape = 'u8[24576]{0}', space=vmem, size = 0x6000, scoped, tag = 'input window, operand 13, single buffered']
    %26 = vsyncpa [#allocation6], 0
    %27 = vsyncpa [#allocation8], 0
    loop: start=0, step=1, limit=5
    $region2: #{tpu_custom_call.1} parent=1 // loop_pre_header
      _
    $region3: #{tpu_custom_call.1} parent=1 // loop_header
      %s29 = sphi 0, %s33
      %p30 = scmp.ge.s32.totalorder %s29, 5
      %s37 = sphi 0, %s37
      %s39 = sphi 0, %s37
      %s40 = sphi 0, %s39
      %s54 = sphi 0, %s40
      %s58 = sphi 0, %s58
      %s60 = sphi 0, %s58
      %s61 = sphi 0, %s60
      %s75 = sphi 0, %s61
      %s79 = sphi 0, %s79
      %s81 = sphi 0, %s79
      %s82 = sphi 0, %s81
      %s96 = sphi 0, %s82
      %s100 = sphi 0, %s100
      %s102 = sphi 0, %s100
      %s103 = sphi 0, %s102
      %s117 = sphi 0, %s103
      %s121 = sphi 0, %s121
      %s123 = sphi 0, %s121
      %s124 = sphi 0, %s123
      %s138 = sphi 0, %s124
      %s142 = sphi 0, %s142
      %s144 = sphi 0, %s142
      %s145 = sphi 0, %s144
      %s159 = sphi 0, %s145
      %s163 = sphi 0, %s163
      %s165 = sphi 0, %s163
      %s166 = sphi 0, %s165
      %s180 = sphi 0, %s166
      %s184 = sphi 0, %s184
      %s186 = sphi 0, %s184
      %s187 = sphi 0, %s186
      %s201 = sphi 0, %s187
      %s205 = sphi 0, %s205
      %s207 = sphi 0, %s205
      %s208 = sphi 0, %s207
      %s222 = sphi 0, %s208
      %s226 = sphi 0, %s226
      %s228 = sphi 0, %s226
      %s229 = sphi 0, %s228
      %s243 = sphi 0, %s229
      %s247 = sphi 0, %s247
      %s249 = sphi 0, %s247
      %s250 = sphi 0, %s249
      %s264 = sphi 0, %s250
      %s268 = sphi 0, %s268
      %s270 = sphi 0, %s268
      %s271 = sphi 0, %s270
      %s285 = sphi 0, %s271
      %s289 = sphi 0, %s289
      %s291 = sphi 0, %s289
      %s292 = sphi 0, %s291
      %s306 = sphi 0, %s292
      %s310 = sphi 0, %s310
      %s312 = sphi 0, %s310
      %s313 = sphi 0, %s312
      %s327 = sphi 0, %s313
      %s331 = sphi 0, %s331
      %s333 = sphi 0, %s331
      %s334 = sphi 0, %s333
      %s348 = sphi 0, %s334
      %s352 = sphi 0, %s352
      %s354 = sphi 0, %s352
      %s355 = sphi 0, %s354
      %s369 = sphi 0, %s355
      %s373 = sphi 0, %s373
      %s375 = sphi 0, %s373
      %s376 = sphi 0, %s375
      %s390 = sphi 0, %s376
      %s394 = sphi 0, %s394
      %s396 = sphi 0, %s394
      %s397 = sphi 0, %s396
      %s411 = sphi 0, %s397
      %s415 = sphi 0, %s415
      %s417 = sphi 0, %s415
      %s418 = sphi 0, %s417
      %s432 = sphi 0, %s418
      %s436 = sphi 0, %s436
      %s438 = sphi 0, %s436
      %s439 = sphi 0, %s438
      %s453 = sphi 0, %s439
    $region4: #{tpu_custom_call.1} parent=1 // loop_header_branch
      %32 = sbr.rel (%p30) target = $region8
    $region5: #{tpu_custom_call.1} parent=1 // loop_body
      %s34 = ssub.s32 %s29, 1
      %s35 = ssub.s32 %s29, 2
      %s36 = sadd.s32 %s29, 1
      %s38 = sadd.s32 %s37, 1
      %p41 = scmp.eq.s32.totalorder %s29, 2
      %p42 = scmp.ne.s32.totalorder %s37, %s39
      %p43 = scmp.eq.s32.totalorder %s29, 0
      %p44 = por %p42, %p43
      %p45 = scmp.ne.s32.totalorder %s37, %s39
      %p46 = scmp.eq.s32.totalorder %s34, 2
      %p47 = por %p45, %p46
      %p48 = scmp.ne.s32.totalorder %s39, %s40
      %p49 = scmp.eq.s32.totalorder %s34, 0
      %p50 = por %p48, %p49
      %p51 = scmp.ne.s32.totalorder %s39, %s40
      %p52 = scmp.eq.s32.totalorder %s35, 2
      %p53 = por %p51, %p52
      %p55 = scmp.ne.s32.totalorder %s40, %s54
      %p56 = scmp.eq.s32.totalorder %s35, 0
      %p57 = por %p55, %p56
      %s59 = sadd.s32 %s58, 1
      %p62 = scmp.eq.s32.totalorder %s29, 2
      %p63 = scmp.ne.s32.totalorder %s58, %s60
      %p64 = scmp.eq.s32.totalorder %s29, 0
      %p65 = por %p63, %p64
      %p66 = scmp.ne.s32.totalorder %s58, %s60
      %p67 = scmp.eq.s32.totalorder %s34, 2
      %p68 = por %p66, %p67
      %p69 = scmp.ne.s32.totalorder %s60, %s61
      %p70 = scmp.eq.s32.totalorder %s34, 0
      %p71 = por %p69, %p70
      %p72 = scmp.ne.s32.totalorder %s60, %s61
      %p73 = scmp.eq.s32.totalorder %s35, 2
      %p74 = por %p72, %p73
      %p76 = scmp.ne.s32.totalorder %s61, %s75
      %p77 = scmp.eq.s32.totalorder %s35, 0
      %p78 = por %p76, %p77
      %s80 = sadd.s32 %s79, 1
      %p83 = scmp.eq.s32.totalorder %s29, 2
      %p84 = scmp.ne.s32.totalorder %s79, %s81
      %p85 = scmp.eq.s32.totalorder %s29, 0
      %p86 = por %p84, %p85
      %p87 = scmp.ne.s32.totalorder %s79, %s81
      %p88 = scmp.eq.s32.totalorder %s34, 2
      %p89 = por %p87, %p88
      %p90 = scmp.ne.s32.totalorder %s81, %s82
      %p91 = scmp.eq.s32.totalorder %s34, 0
      %p92 = por %p90, %p91
      %p93 = scmp.ne.s32.totalorder %s81, %s82
      %p94 = scmp.eq.s32.totalorder %s35, 2
      %p95 = por %p93, %p94
      %p97 = scmp.ne.s32.totalorder %s82, %s96
      %p98 = scmp.eq.s32.totalorder %s35, 0
      %p99 = por %p97, %p98
      %s101 = sadd.s32 %s100, 1
      %p104 = scmp.eq.s32.totalorder %s29, 2
      %p105 = scmp.ne.s32.totalorder %s100, %s102
      %p106 = scmp.eq.s32.totalorder %s29, 0
      %p107 = por %p105, %p106
      %p108 = scmp.ne.s32.totalorder %s100, %s102
      %p109 = scmp.eq.s32.totalorder %s34, 2
      %p110 = por %p108, %p109
      %p111 = scmp.ne.s32.totalorder %s102, %s103
      %p112 = scmp.eq.s32.totalorder %s34, 0
      %p113 = por %p111, %p112
      %p114 = scmp.ne.s32.totalorder %s102, %s103
      %p115 = scmp.eq.s32.totalorder %s35, 2
      %p116 = por %p114, %p115
      %p118 = scmp.ne.s32.totalorder %s103, %s117
      %p119 = scmp.eq.s32.totalorder %s35, 0
      %p120 = por %p118, %p119
      %s122 = sadd.s32 %s121, 1
      %p125 = scmp.eq.s32.totalorder %s29, 2
      %p126 = scmp.ne.s32.totalorder %s121, %s123
      %p127 = scmp.eq.s32.totalorder %s29, 0
      %p128 = por %p126, %p127
      %p129 = scmp.ne.s32.totalorder %s121, %s123
      %p130 = scmp.eq.s32.totalorder %s34, 2
      %p131 = por %p129, %p130
      %p132 = scmp.ne.s32.totalorder %s123, %s124
      %p133 = scmp.eq.s32.totalorder %s34, 0
      %p134 = por %p132, %p133
      %p135 = scmp.ne.s32.totalorder %s123, %s124
      %p136 = scmp.eq.s32.totalorder %s35, 2
      %p137 = por %p135, %p136
      %p139 = scmp.ne.s32.totalorder %s124, %s138
      %p140 = scmp.eq.s32.totalorder %s35, 0
      %p141 = por %p139, %p140
      %s143 = sadd.s32 %s142, 1
      %p146 = scmp.eq.s32.totalorder %s29, 2
      %p147 = scmp.ne.s32.totalorder %s142, %s144
      %p148 = scmp.eq.s32.totalorder %s29, 0
      %p149 = por %p147, %p148
      %p150 = scmp.ne.s32.totalorder %s142, %s144
      %p151 = scmp.eq.s32.totalorder %s34, 2
      %p152 = por %p150, %p151
      %p153 = scmp.ne.s32.totalorder %s144, %s145
      %p154 = scmp.eq.s32.totalorder %s34, 0
      %p155 = por %p153, %p154
      %p156 = scmp.ne.s32.totalorder %s144, %s145
      %p157 = scmp.eq.s32.totalorder %s35, 2
      %p158 = por %p156, %p157
      %p160 = scmp.ne.s32.totalorder %s145, %s159
      %p161 = scmp.eq.s32.totalorder %s35, 0
      %p162 = por %p160, %p161
      %s164 = sadd.s32 %s163, 1
      %p167 = scmp.eq.s32.totalorder %s29, 2
      %p168 = scmp.ne.s32.totalorder %s163, %s165
      %p169 = scmp.eq.s32.totalorder %s29, 0
      %p170 = por %p168, %p169
      %p171 = scmp.ne.s32.totalorder %s163, %s165
      %p172 = scmp.eq.s32.totalorder %s34, 2
      %p173 = por %p171, %p172
      %p174 = scmp.ne.s32.totalorder %s165, %s166
      %p175 = scmp.eq.s32.totalorder %s34, 0
      %p176 = por %p174, %p175
      %p177 = scmp.ne.s32.totalorder %s165, %s166
      %p178 = scmp.eq.s32.totalorder %s35, 2
      %p179 = por %p177, %p178
      %p181 = scmp.ne.s32.totalorder %s166, %s180
      %p182 = scmp.eq.s32.totalorder %s35, 0
      %p183 = por %p181, %p182
      %s185 = sadd.s32 %s184, 1
      %p188 = scmp.eq.s32.totalorder %s29, 2
      %p189 = scmp.ne.s32.totalorder %s184, %s186
      %p190 = scmp.eq.s32.totalorder %s29, 0
      %p191 = por %p189, %p190
      %p192 = scmp.ne.s32.totalorder %s184, %s186
      %p193 = scmp.eq.s32.totalorder %s34, 2
      %p194 = por %p192, %p193
      %p195 = scmp.ne.s32.totalorder %s186, %s187
      %p196 = scmp.eq.s32.totalorder %s34, 0
      %p197 = por %p195, %p196
      %p198 = scmp.ne.s32.totalorder %s186, %s187
      %p199 = scmp.eq.s32.totalorder %s35, 2
      %p200 = por %p198, %p199
      %p202 = scmp.ne.s32.totalorder %s187, %s201
      %p203 = scmp.eq.s32.totalorder %s35, 0
      %p204 = por %p202, %p203
      %s206 = sadd.s32 %s205, 1
      %p209 = scmp.eq.s32.totalorder %s29, 2
      %p210 = scmp.ne.s32.totalorder %s205, %s207
      %p211 = scmp.eq.s32.totalorder %s29, 0
      %p212 = por %p210, %p211
      %p213 = scmp.ne.s32.totalorder %s205, %s207
      %p214 = scmp.eq.s32.totalorder %s34, 2
      %p215 = por %p213, %p214
      %p216 = scmp.ne.s32.totalorder %s207, %s208
      %p217 = scmp.eq.s32.totalorder %s34, 0
      %p218 = por %p216, %p217
      %p219 = scmp.ne.s32.totalorder %s207, %s208
      %p220 = scmp.eq.s32.totalorder %s35, 2
      %p221 = por %p219, %p220
      %p223 = scmp.ne.s32.totalorder %s208, %s222
      %p224 = scmp.eq.s32.totalorder %s35, 0
      %p225 = por %p223, %p224
      %s227 = sadd.s32 %s226, 1
      %p230 = scmp.eq.s32.totalorder %s29, 2
      %p231 = scmp.ne.s32.totalorder %s226, %s228
      %p232 = scmp.eq.s32.totalorder %s29, 0
      %p233 = por %p231, %p232
      %p234 = scmp.ne.s32.totalorder %s226, %s228
      %p235 = scmp.eq.s32.totalorder %s34, 2
      %p236 = por %p234, %p235
      %p237 = scmp.ne.s32.totalorder %s228, %s229
      %p238 = scmp.eq.s32.totalorder %s34, 0
      %p239 = por %p237, %p238
      %p240 = scmp.ne.s32.totalorder %s228, %s229
      %p241 = scmp.eq.s32.totalorder %s35, 2
      %p242 = por %p240, %p241
      %p244 = scmp.ne.s32.totalorder %s229, %s243
      %p245 = scmp.eq.s32.totalorder %s35, 0
      %p246 = por %p244, %p245
      %s248 = sadd.s32 %s247, 1
      %p251 = scmp.eq.s32.totalorder %s29, 2
      %p252 = scmp.ne.s32.totalorder %s247, %s249
      %p253 = scmp.eq.s32.totalorder %s29, 0
      %p254 = por %p252, %p253
      %p255 = scmp.ne.s32.totalorder %s247, %s249
      %p256 = scmp.eq.s32.totalorder %s34, 2
      %p257 = por %p255, %p256
      %p258 = scmp.ne.s32.totalorder %s249, %s250
      %p259 = scmp.eq.s32.totalorder %s34, 0
      %p260 = por %p258, %p259
      %p261 = scmp.ne.s32.totalorder %s249, %s250
      %p262 = scmp.eq.s32.totalorder %s35, 2
      %p263 = por %p261, %p262
      %p265 = scmp.ne.s32.totalorder %s250, %s264
      %p266 = scmp.eq.s32.totalorder %s35, 0
      %p267 = por %p265, %p266
      %s269 = sadd.s32 %s268, 1
      %p272 = scmp.eq.s32.totalorder %s29, 2
      %p273 = scmp.ne.s32.totalorder %s268, %s270
      %p274 = scmp.eq.s32.totalorder %s29, 0
      %p275 = por %p273, %p274
      %p276 = scmp.ne.s32.totalorder %s268, %s270
      %p277 = scmp.eq.s32.totalorder %s34, 2
      %p278 = por %p276, %p277
      %p279 = scmp.ne.s32.totalorder %s270, %s271
      %p280 = scmp.eq.s32.totalorder %s34, 0
      %p281 = por %p279, %p280
      %p282 = scmp.ne.s32.totalorder %s270, %s271
      %p283 = scmp.eq.s32.totalorder %s35, 2
      %p284 = por %p282, %p283
      %p286 = scmp.ne.s32.totalorder %s271, %s285
      %p287 = scmp.eq.s32.totalorder %s35, 0
      %p288 = por %p286, %p287
      %s290 = sadd.s32 %s289, 1
      %p293 = scmp.eq.s32.totalorder %s29, 2
      %p294 = scmp.ne.s32.totalorder %s289, %s291
      %p295 = scmp.eq.s32.totalorder %s29, 0
      %p296 = por %p294, %p295
      %p297 = scmp.ne.s32.totalorder %s289, %s291
      %p298 = scmp.eq.s32.totalorder %s34, 2
      %p299 = por %p297, %p298
      %p300 = scmp.ne.s32.totalorder %s291, %s292
      %p301 = scmp.eq.s32.totalorder %s34, 0
      %p302 = por %p300, %p301
      %p303 = scmp.ne.s32.totalorder %s291, %s292
      %p304 = scmp.eq.s32.totalorder %s35, 2
      %p305 = por %p303, %p304
      %p307 = scmp.ne.s32.totalorder %s292, %s306
      %p308 = scmp.eq.s32.totalorder %s35, 0
      %p309 = por %p307, %p308
      %s311 = sadd.s32 %s310, 1
      %p314 = scmp.eq.s32.totalorder %s29, 2
      %p315 = scmp.ne.s32.totalorder %s310, %s312
      %p316 = scmp.eq.s32.totalorder %s29, 0
      %p317 = por %p315, %p316
      %p318 = scmp.ne.s32.totalorder %s310, %s312
      %p319 = scmp.eq.s32.totalorder %s34, 2
      %p320 = por %p318, %p319
      %p321 = scmp.ne.s32.totalorder %s312, %s313
      %p322 = scmp.eq.s32.totalorder %s34, 0
      %p323 = por %p321, %p322
      %p324 = scmp.ne.s32.totalorder %s312, %s313
      %p325 = scmp.eq.s32.totalorder %s35, 2
      %p326 = por %p324, %p325
      %p328 = scmp.ne.s32.totalorder %s313, %s327
      %p329 = scmp.eq.s32.totalorder %s35, 0
      %p330 = por %p328, %p329
      %s332 = sadd.s32 %s331, 1
      %p335 = scmp.eq.s32.totalorder %s29, 2
      %p336 = scmp.ne.s32.totalorder %s331, %s333
      %p337 = scmp.eq.s32.totalorder %s29, 0
      %p338 = por %p336, %p337
      %p339 = scmp.ne.s32.totalorder %s331, %s333
      %p340 = scmp.eq.s32.totalorder %s34, 2
      %p341 = por %p339, %p340
      %p342 = scmp.ne.s32.totalorder %s333, %s334
      %p343 = scmp.eq.s32.totalorder %s34, 0
      %p344 = por %p342, %p343
      %p345 = scmp.ne.s32.totalorder %s333, %s334
      %p346 = scmp.eq.s32.totalorder %s35, 2
      %p347 = por %p345, %p346
      %p349 = scmp.ne.s32.totalorder %s334, %s348
      %p350 = scmp.eq.s32.totalorder %s35, 0
      %p351 = por %p349, %p350
      %s353 = sadd.s32 %s352, 1
      %p356 = scmp.eq.s32.totalorder %s29, 2
      %p357 = scmp.ne.s32.totalorder %s352, %s354
      %p358 = scmp.eq.s32.totalorder %s29, 0
      %p359 = por %p357, %p358
      %p360 = scmp.ne.s32.totalorder %s352, %s354
      %p361 = scmp.eq.s32.totalorder %s34, 2
      %p362 = por %p360, %p361
      %p363 = scmp.ne.s32.totalorder %s354, %s355
      %p364 = scmp.eq.s32.totalorder %s34, 0
      %p365 = por %p363, %p364
      %p366 = scmp.ne.s32.totalorder %s354, %s355
      %p367 = scmp.eq.s32.totalorder %s35, 2
      %p368 = por %p366, %p367
      %p370 = scmp.ne.s32.totalorder %s355, %s369
      %p371 = scmp.eq.s32.totalorder %s35, 0
      %p372 = por %p370, %p371
      %s374 = sadd.s32 %s373, 1
      %p377 = scmp.eq.s32.totalorder %s29, 2
      %p378 = scmp.ne.s32.totalorder %s373, %s375
      %p379 = scmp.eq.s32.totalorder %s29, 0
      %p380 = por %p378, %p379
      %p381 = scmp.ne.s32.totalorder %s373, %s375
      %p382 = scmp.eq.s32.totalorder %s34, 2
      %p383 = por %p381, %p382
      %p384 = scmp.ne.s32.totalorder %s375, %s376
      %p385 = scmp.eq.s32.totalorder %s34, 0
      %p386 = por %p384, %p385
      %p387 = scmp.ne.s32.totalorder %s375, %s376
      %p388 = scmp.eq.s32.totalorder %s35, 2
      %p389 = por %p387, %p388
      %p391 = scmp.ne.s32.totalorder %s376, %s390
      %p392 = scmp.eq.s32.totalorder %s35, 0
      %p393 = por %p391, %p392
      %s395 = sadd.s32 %s394, 1
      %p398 = scmp.eq.s32.totalorder %s29, 2
      %p399 = scmp.ne.s32.totalorder %s394, %s396
      %p400 = scmp.eq.s32.totalorder %s29, 0
      %p401 = por %p399, %p400
      %p402 = scmp.ne.s32.totalorder %s394, %s396
      %p403 = scmp.eq.s32.totalorder %s34, 2
      %p404 = por %p402, %p403
      %p405 = scmp.ne.s32.totalorder %s396, %s397
      %p406 = scmp.eq.s32.totalorder %s34, 0
      %p407 = por %p405, %p406
      %p408 = scmp.ne.s32.totalorder %s396, %s397
      %p409 = scmp.eq.s32.totalorder %s35, 2
      %p410 = por %p408, %p409
      %p412 = scmp.ne.s32.totalorder %s397, %s411
      %p413 = scmp.eq.s32.totalorder %s35, 0
      %p414 = por %p412, %p413
      %s416 = sadd.s32 %s415, 1
      %p419 = scmp.eq.s32.totalorder %s29, 2
      %p420 = scmp.ne.s32.totalorder %s415, %s417
      %p421 = scmp.eq.s32.totalorder %s29, 0
      %p422 = por %p420, %p421
      %p423 = scmp.ne.s32.totalorder %s415, %s417
      %p424 = scmp.eq.s32.totalorder %s34, 2
      %p425 = por %p423, %p424
      %p426 = scmp.ne.s32.totalorder %s417, %s418
      %p427 = scmp.eq.s32.totalorder %s34, 0
      %p428 = por %p426, %p427
      %p429 = scmp.ne.s32.totalorder %s417, %s418
      %p430 = scmp.eq.s32.totalorder %s35, 2
      %p431 = por %p429, %p430
      %p433 = scmp.ne.s32.totalorder %s418, %s432
      %p434 = scmp.eq.s32.totalorder %s35, 0
      %p435 = por %p433, %p434
      %s437 = sadd.s32 %s436, 1
      %p440 = scmp.eq.s32.totalorder %s29, 2
      %p441 = scmp.ne.s32.totalorder %s436, %s438
      %p442 = scmp.eq.s32.totalorder %s29, 0
      %p443 = por %p441, %p442
      %p444 = scmp.ne.s32.totalorder %s436, %s438
      %p445 = scmp.eq.s32.totalorder %s34, 2
      %p446 = por %p444, %p445
      %p447 = scmp.ne.s32.totalorder %s438, %s439
      %p448 = scmp.eq.s32.totalorder %s34, 0
      %p449 = por %p447, %p448
      %p450 = scmp.ne.s32.totalorder %s438, %s439
      %p451 = scmp.eq.s32.totalorder %s35, 2
      %p452 = por %p450, %p451
      %p454 = scmp.ne.s32.totalorder %s439, %s453
      %p455 = scmp.eq.s32.totalorder %s35, 0
      %p456 = por %p454, %p455
      %p457 = scmp.le.s32.totalorder 1, %s29
      %p458 = scmp.lt.s32.totalorder %s29, 4
      %p459 = pnand %p457, %p458
      %p460 = pneg %p459
      // Predicated region
      $region9: #{tpu_custom_call.1} parent=5 // pred_check
        _
      $region10: #{tpu_custom_call.1} parent=5 // pred_check_branch
        %462 = sbr.rel (%p459) target = $region12
      $region11: #{tpu_custom_call.1} parent=5 // pred_region
        %s463 = ssub.s32 %s29, 1
        // Predicated region
        $region13: #{tpu_custom_call.1} parent=11 // pred_check
          %p464 = pneg %p50
        $region14: #{tpu_custom_call.1} parent=11 // pred_check_branch
          %466 = sbr.rel (%p464) target = $region16
        $region15: #{tpu_custom_call.1} parent=11 // pred_region
          _
        $region16: #{tpu_custom_call.1} parent=11 // pred_fallthru
          _
        // Predicated region
        $region17: #{tpu_custom_call.1} parent=11 // pred_check
          %p467 = pneg %p71
        $region18: #{tpu_custom_call.1} parent=11 // pred_check_branch
          %469 = sbr.rel (%p467) target = $region20
        $region19: #{tpu_custom_call.1} parent=11 // pred_region
          _
        $region20: #{tpu_custom_call.1} parent=11 // pred_fallthru
          _
        // Predicated region
        $region21: #{tpu_custom_call.1} parent=11 // pred_check
          %p470 = pneg %p92
        $region22: #{tpu_custom_call.1} parent=11 // pred_check_branch
          %472 = sbr.rel (%p470) target = $region24
        $region23: #{tpu_custom_call.1} parent=11 // pred_region
          _
        $region24: #{tpu_custom_call.1} parent=11 // pred_fallthru
          _
        // Predicated region
        $region25: #{tpu_custom_call.1} parent=11 // pred_check
          %p473 = pneg %p113
        $region26: #{tpu_custom_call.1} parent=11 // pred_check_branch
          %475 = sbr.rel (%p473) target = $region28
        $region27: #{tpu_custom_call.1} parent=11 // pred_region
          _
        $region28: #{tpu_custom_call.1} parent=11 // pred_fallthru
          _
        // Predicated region
        $region29: #{tpu_custom_call.1} parent=11 // pred_check
          %p476 = pneg %p134
        $region30: #{tpu_custom_call.1} parent=11 // pred_check_branch
          %478 = sbr.rel (%p476) target = $region32
        $region31: #{tpu_custom_call.1} parent=11 // pred_region
          %480 = vsyncadd [#allocation6], 0
          %s482 = sshll.u32 %s4, 4
          %s483 = int_to_ptr.hbm [resolvable:$true] %s482
          %s484 = sshll.u32 [#allocation5], 4
          %s485 = int_to_ptr.vmem [resolvable:$true] %s484
          %487 = dma.hbm_to_vmem [thread:$0]  %s483, 32, %s485, [#allocation6]
        $region32: #{tpu_custom_call.1} parent=11 // pred_fallthru
          _
        // Predicated region
        $region33: #{tpu_custom_call.1} parent=11 // pred_check
          %p488 = pneg %p155
        $region34: #{tpu_custom_call.1} parent=11 // pred_check_branch
          %490 = sbr.rel (%p488) target = $region36
        $region35: #{tpu_custom_call.1} parent=11 // pred_region
          _
        $region36: #{tpu_custom_call.1} parent=11 // pred_fallthru
          _
        // Predicated region
        $region37: #{tpu_custom_call.1} parent=11 // pred_check
          %p491 = pneg %p176
        $region38: #{tpu_custom_call.1} parent=11 // pred_check_branch
          %493 = sbr.rel (%p491) target = $region40
        $region39: #{tpu_custom_call.1} parent=11 // pred_region
          _
        $region40: #{tpu_custom_call.1} parent=11 // pred_fallthru
          _
        // Predicated region
        $region41: #{tpu_custom_call.1} parent=11 // pred_check
          %p494 = pneg %p197
        $region42: #{tpu_custom_call.1} parent=11 // pred_check_branch
          %496 = sbr.rel (%p494) target = $region44
        $region43: #{tpu_custom_call.1} parent=11 // pred_region
          %498 = vsyncadd [#allocation8], 0
          %s500 = sshll.u32 %s7, 4
          %s501 = int_to_ptr.hbm [resolvable:$true] %s500
          %s502 = sshll.u32 [#allocation7], 4
          %s503 = int_to_ptr.vmem [resolvable:$true] %s502
          %505 = dma.hbm_to_vmem [thread:$0]  %s501, 16, %s503, [#allocation8]
        $region44: #{tpu_custom_call.1} parent=11 // pred_fallthru
          _
        // Predicated region
        $region45: #{tpu_custom_call.1} parent=11 // pred_check
          %p506 = pneg %p218
        $region46: #{tpu_custom_call.1} parent=11 // pred_check_branch
          %508 = sbr.rel (%p506) target = $region48
        $region47: #{tpu_custom_call.1} parent=11 // pred_region
          _
        $region48: #{tpu_custom_call.1} parent=11 // pred_fallthru
          _
        // Predicated region
        $region49: #{tpu_custom_call.1} parent=11 // pred_check
          %p509 = pneg %p239
        $region50: #{tpu_custom_call.1} parent=11 // pred_check_branch
          %511 = sbr.rel (%p509) target = $region52
        $region51: #{tpu_custom_call.1} parent=11 // pred_region
          _
        $region52: #{tpu_custom_call.1} parent=11 // pred_fallthru
          _
        // Predicated region
        $region53: #{tpu_custom_call.1} parent=11 // pred_check
          %p512 = pneg %p260
        $region54: #{tpu_custom_call.1} parent=11 // pred_check_branch
          %514 = sbr.rel (%p512) target = $region56
        $region55: #{tpu_custom_call.1} parent=11 // pred_region
          _
        $region56: #{tpu_custom_call.1} parent=11 // pred_fallthru
          _
        // Predicated region
        $region57: #{tpu_custom_call.1} parent=11 // pred_check
          %p515 = pneg %p281
        $region58: #{tpu_custom_call.1} parent=11 // pred_check_branch
          %517 = sbr.rel (%p515) target = $region60
        $region59: #{tpu_custom_call.1} parent=11 // pred_region
          _
        $region60: #{tpu_custom_call.1} parent=11 // pred_fallthru
          _
        // Predicated region
        $region61: #{tpu_custom_call.1} parent=11 // pred_check
          %p518 = pneg %p302
        $region62: #{tpu_custom_call.1} parent=11 // pred_check_branch
          %520 = sbr.rel (%p518) target = $region64
        $region63: #{tpu_custom_call.1} parent=11 // pred_region
          _
        $region64: #{tpu_custom_call.1} parent=11 // pred_fallthru
          _
        // Predicated region
        $region65: #{tpu_custom_call.1} parent=11 // pred_check
          %p521 = pneg %p323
        $region66: #{tpu_custom_call.1} parent=11 // pred_check_branch
          %523 = sbr.rel (%p521) target = $region68
        $region67: #{tpu_custom_call.1} parent=11 // pred_region
          %525 = vsyncadd [#allocation8], 0
          %s526 = sshll.u32 %s13, 4
          %s527 = int_to_ptr.hbm [resolvable:$true] %s526
          %s528 = sshll.u32 [#allocation9], 4
          %s529 = int_to_ptr.vmem [resolvable:$true] %s528
          %534 = dma.hbm_to_vmem [thread:$0]  %s527, 768, %s529, [#allocation8], 64, 64, 4
        $region68: #{tpu_custom_call.1} parent=11 // pred_fallthru
          _
        // Predicated region
        $region69: #{tpu_custom_call.1} parent=11 // pred_check
          %p535 = pneg %p344
        $region70: #{tpu_custom_call.1} parent=11 // pred_check_branch
          %537 = sbr.rel (%p535) target = $region72
        $region71: #{tpu_custom_call.1} parent=11 // pred_region
          _
        $region72: #{tpu_custom_call.1} parent=11 // pred_fallthru
          _
        // Predicated region
        $region73: #{tpu_custom_call.1} parent=11 // pred_check
          %p538 = pneg %p365
        $region74: #{tpu_custom_call.1} parent=11 // pred_check_branch
          %540 = sbr.rel (%p538) target = $region76
        $region75: #{tpu_custom_call.1} parent=11 // pred_region
          _
        $region76: #{tpu_custom_call.1} parent=11 // pred_fallthru
          _
        // Predicated region
        $region77: #{tpu_custom_call.1} parent=11 // pred_check
          %p541 = pneg %p386
        $region78: #{tpu_custom_call.1} parent=11 // pred_check_branch
          %543 = sbr.rel (%p541) target = $region80
        $region79: #{tpu_custom_call.1} parent=11 // pred_region
          _
        $region80: #{tpu_custom_call.1} parent=11 // pred_fallthru
          _
        // Predicated region
        $region81: #{tpu_custom_call.1} parent=11 // pred_check
          %p544 = pneg %p407
        $region82: #{tpu_custom_call.1} parent=11 // pred_check_branch
          %546 = sbr.rel (%p544) target = $region84
        $region83: #{tpu_custom_call.1} parent=11 // pred_region
          _
        $region84: #{tpu_custom_call.1} parent=11 // pred_fallthru
          _
        // Predicated region
        $region85: #{tpu_custom_call.1} parent=11 // pred_check
          %p547 = pneg %p428
        $region86: #{tpu_custom_call.1} parent=11 // pred_check_branch
          %549 = sbr.rel (%p547) target = $region88
        $region87: #{tpu_custom_call.1} parent=11 // pred_region
          _
        $region88: #{tpu_custom_call.1} parent=11 // pred_fallthru
          _
      $region12: #{tpu_custom_call.1} parent=5 // pred_fallthru
        _
      %p550 = scmp.lt.s32.totalorder %s29, 3
      // Predicated region
      $region89: #{tpu_custom_call.1} parent=5 // pred_check
        %p551 = pneg %p550
      $region90: #{tpu_custom_call.1} parent=5 // pred_check_branch
        %553 = sbr.rel (%p551) target = $region92
      $region91: #{tpu_custom_call.1} parent=5 // pred_region
        _
      $region92: #{tpu_custom_call.1} parent=5 // pred_fallthru
        _
      %p554 = scmp.le.s32.totalorder 1, %s29
      %p555 = scmp.lt.s32.totalorder %s29, 4
      %p556 = pnand %p554, %p555
      %p557 = pneg %p556
      // Predicated region
      $region93: #{tpu_custom_call.1} parent=5 // pred_check
        _
      $region94: #{tpu_custom_call.1} parent=5 // pred_check_branch
        %559 = sbr.rel (%p556) target = $region96
      $region95: #{tpu_custom_call.1} parent=5 // pred_region
        %s560 = ssub.s32 %s29, 1
        // Predicated region
        $region97: #{tpu_custom_call.1} parent=95 // pred_check
          %p561 = pneg %p134
        $region98: #{tpu_custom_call.1} parent=95 // pred_check_branch
          %563 = sbr.rel (%p561) target = $region100
        $region99: #{tpu_custom_call.1} parent=95 // pred_region
          %565 = dma.done [#allocation6], 32
        $region100: #{tpu_custom_call.1} parent=95 // pred_fallthru
          _
        // Predicated region
        $region101: #{tpu_custom_call.1} parent=95 // pred_check
          %p566 = pneg %p197
        $region102: #{tpu_custom_call.1} parent=95 // pred_check_branch
          %568 = sbr.rel (%p566) target = $region104
        $region103: #{tpu_custom_call.1} parent=95 // pred_region
          %570 = dma.done [#allocation8], 16
        $region104: #{tpu_custom_call.1} parent=95 // pred_fallthru
          _
        // Predicated region
        $region105: #{tpu_custom_call.1} parent=95 // pred_check
          %p571 = pneg %p323
        $region106: #{tpu_custom_call.1} parent=95 // pred_check_branch
          %573 = sbr.rel (%p571) target = $region108
        $region107: #{tpu_custom_call.1} parent=95 // pred_region
          %575 = dma.done [#allocation8], 768
        $region108: #{tpu_custom_call.1} parent=95 // pred_fallthru
          _
        %p576 = pneg %p50
        %p577 = pneg %p47
        %p578 = pneg %p71
        %p579 = pneg %p68
        %p580 = pneg %p92
        %p581 = pneg %p89
        %p582 = pneg %p113
        %p583 = pneg %p110
        %p584 = pneg %p134
        %p585 = pneg %p131
        %p586 = pneg %p155
        %p587 = pneg %p152
        %p588 = pneg %p176
        %p589 = pneg %p173
        %p590 = pneg %p197
        %p591 = pneg %p194
        %p592 = pneg %p218
        %p593 = pneg %p215
        %p594 = pneg %p239
        %p595 = pneg %p236
        %p596 = pneg %p260
        %p597 = pneg %p257
        %p598 = pneg %p281
        %p599 = pneg %p278
        %p600 = pneg %p302
        %p601 = pneg %p299
        %p602 = pneg %p323
        %p603 = pneg %p320
        %p604 = pneg %p344
        %p605 = pneg %p341
        %p606 = pneg %p365
        %p607 = pneg %p362
        %p608 = pneg %p386
        %p609 = pneg %p383
        %p610 = pneg %p407
        %p611 = pneg %p404
        %p612 = pneg %p428
        %p613 = pneg %p425
        %p614 = pneg %p449
        %p615 = pneg %p446
        %p617 = scmp.eq.s32.totalorder %s34, 0
        // Predicated region
        $region109: #{tpu_custom_call.1} parent=95 // pred_check
          %p618 = pneg %p617
        $region110: #{tpu_custom_call.1} parent=95 // pred_check_branch
          %620 = sbr.rel (%p618) target = $region112
        $region111: #{tpu_custom_call.1} parent=95 // pred_region
          %v621 = vld [vmem:[%s0] sm:$0xff]
          %v622 = vld [vmem:[%s0 + $0x8] sm:$0xff]
          %v623 = vld [vmem:[%s0 + $0x10] sm:$0xff]
          %v624 = vld [vmem:[%s0 + $0x18] sm:$0xff]
          %v625 = vld [vmem:[%s0 + $0x20] sm:$0xff]
          %v626 = vld [vmem:[%s0 + $0x28] sm:$0xff]
          %v627 = vld [vmem:[%s0 + $0x30] sm:$0xff]
          %v628 = vld [vmem:[%s0 + $0x38] sm:$0xff]
          %v629 = vld [vmem:[%s0 + $0x40] sm:$0xff]
          %v630 = vld [vmem:[%s0 + $0x48] sm:$0xff]
          %v631 = vld [vmem:[%s0 + $0x50] sm:$0xff]
          %v632 = vld [vmem:[%s0 + $0x58] sm:$0xff]
          %v633 = vld [vmem:[%s0 + $0x60] sm:$0xff]
          %v634 = vld [vmem:[%s0 + $0x68] sm:$0xff]
          %v635 = vld [vmem:[%s0 + $0x70] sm:$0xff]
          %v636 = vld [vmem:[%s0 + $0x78] sm:$0xff]
          %v637 = vld [vmem:[%s5] sm:$0x1]
          %639 = vset.pattern.permute.xlu0 0
          %640 = vperm.xlu0 %639, %v621
          %v641 = vpop.permute.xlu0 %640
          %644 = vset.pattern.permute.xlu0 0
          %645 = vperm.xlu0 %644, %v622
          %v646 = vpop.permute.xlu0 %645
          %649 = vset.pattern.permute.xlu0 0
          %650 = vperm.xlu0 %649, %v623
          %v651 = vpop.permute.xlu0 %650
          %654 = vset.pattern.permute.xlu0 0
          %655 = vperm.xlu0 %654, %v624
          %v656 = vpop.permute.xlu0 %655
          %659 = vset.pattern.permute.xlu0 0
          %660 = vperm.xlu0 %659, %v625
          %v661 = vpop.permute.xlu0 %660
          %664 = vset.pattern.permute.xlu0 0
          %665 = vperm.xlu0 %664, %v626
          %v666 = vpop.permute.xlu0 %665
          %669 = vset.pattern.permute.xlu0 0
          %670 = vperm.xlu0 %669, %v627
          %v671 = vpop.permute.xlu0 %670
          %674 = vset.pattern.permute.xlu0 0
          %675 = vperm.xlu0 %674, %v628
          %v676 = vpop.permute.xlu0 %675
          %679 = vset.pattern.permute.xlu0 0
          %680 = vperm.xlu0 %679, %v629
          %v681 = vpop.permute.xlu0 %680
          %684 = vset.pattern.permute.xlu0 0
          %685 = vperm.xlu0 %684, %v630
          %v686 = vpop.permute.xlu0 %685
          %689 = vset.pattern.permute.xlu0 0
          %690 = vperm.xlu0 %689, %v631
          %v691 = vpop.permute.xlu0 %690
          %694 = vset.pattern.permute.xlu0 0
          %695 = vperm.xlu0 %694, %v632
          %v696 = vpop.permute.xlu0 %695
          %699 = vset.pattern.permute.xlu0 0
          %700 = vperm.xlu0 %699, %v633
          %v701 = vpop.permute.xlu0 %700
          %704 = vset.pattern.permute.xlu0 0
          %705 = vperm.xlu0 %704, %v634
          %v706 = vpop.permute.xlu0 %705
          %709 = vset.pattern.permute.xlu0 0
          %710 = vperm.xlu0 %709, %v635
          %v711 = vpop.permute.xlu0 %710
          %714 = vset.pattern.permute.xlu0 0
          %715 = vperm.xlu0 %714, %v636
          %v716 = vpop.permute.xlu0 %715
          %v719 = vperm.slane %v637, 0
          %v721 = vsub.f32 %v641, %v719
          %v722 = vsub.f32 %v646, %v719
          %v723 = vsub.f32 %v651, %v719
          %v724 = vsub.f32 %v656, %v719
          %v725 = vsub.f32 %v661, %v719
          %v726 = vsub.f32 %v666, %v719
          %v727 = vsub.f32 %v671, %v719
          %v728 = vsub.f32 %v676, %v719
          %v729 = vsub.f32 %v681, %v719
          %v730 = vsub.f32 %v686, %v719
          %v731 = vsub.f32 %v691, %v719
          %v732 = vsub.f32 %v696, %v719
          %v733 = vsub.f32 %v701, %v719
          %v734 = vsub.f32 %v706, %v719
          %v735 = vsub.f32 %v711, %v719
          %v736 = vsub.f32 %v716, %v719
          %v737 = vmul.f32 %v721, %v721
          %v738 = vmul.f32 %v722, %v722
          %v739 = vmul.f32 %v723, %v723
          %v740 = vmul.f32 %v724, %v724
          %v741 = vmul.f32 %v725, %v725
          %v742 = vmul.f32 %v726, %v726
          %v743 = vmul.f32 %v727, %v727
          %v744 = vmul.f32 %v728, %v728
          %v745 = vmul.f32 %v729, %v729
          %v746 = vmul.f32 %v730, %v730
          %v747 = vmul.f32 %v731, %v731
          %v748 = vmul.f32 %v732, %v732
          %v749 = vmul.f32 %v733, %v733
          %v750 = vmul.f32 %v734, %v734
          %v751 = vmul.f32 %v735, %v735
          %v752 = vmul.f32 %v736, %v736
          %v753 = vmul.f32 %v737, -1.125
          %v754 = vmul.f32 %v738, -1.125
          %v755 = vmul.f32 %v739, -1.125
          %v756 = vmul.f32 %v740, -1.125
          %v757 = vmul.f32 %v741, -1.125
          %v758 = vmul.f32 %v742, -1.125
          %v759 = vmul.f32 %v743, -1.125
          %v760 = vmul.f32 %v744, -1.125
          %v761 = vmul.f32 %v745, -1.125
          %v762 = vmul.f32 %v746, -1.125
          %v763 = vmul.f32 %v747, -1.125
          %v764 = vmul.f32 %v748, -1.125
          %v765 = vmul.f32 %v749, -1.125
          %v766 = vmul.f32 %v750, -1.125
          %v767 = vmul.f32 %v751, -1.125
          %v768 = vmul.f32 %v752, -1.125
          %v769 = vmul.f32 %v753, 1.442695
          %v770 = vpow.pop %v769
          %v771 = vmul.f32 %v754, 1.442695
          %v772 = vpow.pop %v771
          %v773 = vmul.f32 %v755, 1.442695
          %v774 = vpow.pop %v773
          %v775 = vmul.f32 %v756, 1.442695
          %v776 = vpow.pop %v775
          %v777 = vmul.f32 %v757, 1.442695
          %v778 = vpow.pop %v777
          %v779 = vmul.f32 %v758, 1.442695
          %v780 = vpow.pop %v779
          %v781 = vmul.f32 %v759, 1.442695
          %v782 = vpow.pop %v781
          %v783 = vmul.f32 %v760, 1.442695
          %v784 = vpow.pop %v783
          %v785 = vmul.f32 %v761, 1.442695
          %v786 = vpow.pop %v785
          %v787 = vmul.f32 %v762, 1.442695
          %v788 = vpow.pop %v787
          %v789 = vmul.f32 %v763, 1.442695
          %v790 = vpow.pop %v789
          %v791 = vmul.f32 %v764, 1.442695
          %v792 = vpow.pop %v791
          %v793 = vmul.f32 %v765, 1.442695
          %v794 = vpow.pop %v793
          %v795 = vmul.f32 %v766, 1.442695
          %v796 = vpow.pop %v795
          %v797 = vmul.f32 %v767, 1.442695
          %v798 = vpow.pop %v797
          %v799 = vmul.f32 %v768, 1.442695
          %v800 = vpow.pop %v799
          %v801 = vmul.f32 %v621, 0.31415927
          %v802 = vmul.f32 %v622, 0.31415927
          %v803 = vmul.f32 %v623, 0.31415927
          %v804 = vmul.f32 %v624, 0.31415927
          %v805 = vmul.f32 %v625, 0.31415927
          %v806 = vmul.f32 %v626, 0.31415927
          %v807 = vmul.f32 %v627, 0.31415927
          %v808 = vmul.f32 %v628, 0.31415927
          %v809 = vmul.f32 %v629, 0.31415927
          %v810 = vmul.f32 %v630, 0.31415927
          %v811 = vmul.f32 %v631, 0.31415927
          %v812 = vmul.f32 %v632, 0.31415927
          %v813 = vmul.f32 %v633, 0.31415927
          %v814 = vmul.f32 %v634, 0.31415927
          %v815 = vmul.f32 %v635, 0.31415927
          %v816 = vmul.f32 %v636, 0.31415927
          %v817 = vand.u32 2147483647, %v801
          %vm818 = vcmp.le.f32.partialorder %v817, 0.7853982
          %vm819 = vcmp.lt.s32.totalorder %v801, 0
          %v820 = vand.u32 %v801, 2139095040
          %v821 = vshrl.u32 %v820, 23
          %v822 = vsub.s32 %v821, 127
          %v823 = vand.u32 2147483647, %v801
          %v824 = vand.u32 %v823, 8388607
          %v825 = vor.u32 %v824, 8388608
          %v826 = vsub.s32 0, %v825
          %v827 = vadd.s32 %v822, 1
          %vm828 = vcmp.gt.s32.totalorder %v827, 0
          %v829 = vsel %vm828, %v827, 0
          %v830 = vshrl.u32 %v829, 5
          %v831 = vand.u32 %v829, 31
          %v832 = vsub.s32 32, %v831
          %v833 = vshrl.u32 683565275, %v832
          %v834 = vshll.u32 683565275, %v831
          %v835 = vshrl.u32 2475754826, %v832
          %v836 = vor.u32 %v834, %v835
          %v837 = vshll.u32 2475754826, %v831
          %v838 = vshrl.u32 2131351028, %v832
          %v839 = vor.u32 %v837, %v838
          %v840 = vshll.u32 2131351028, %v831
          %v841 = vshrl.u32 2102212464, %v832
          %v842 = vor.u32 %v840, %v841
          %v843 = vshll.u32 2102212464, %v831
          %v844 = vshrl.u32 920167782, %v832
          %v845 = vor.u32 %v843, %v844
          %v846 = vshll.u32 920167782, %v831
          %v847 = vshrl.u32 1326507024, %v832
          %v848 = vor.u32 %v846, %v847
          %vm849 = vcmp.lt.s32.totalorder %v830, 1
          %vm850 = vcmp.lt.s32.totalorder %v830, 2
          %vm851 = vcmp.lt.s32.totalorder %v830, 3
          %vm852 = vcmp.lt.s32.totalorder %v830, 4
          %v853 = vsel %vm849, %v833, %v836
          %v854 = vsel %vm852, %v842, 2102212464
          %v855 = vsel %vm851, %v839, %v854
          %v856 = vsel %vm850, %v853, %v855
          %v857 = vsel %vm849, %v836, %v839
          %v858 = vsel %vm852, %v845, 920167782
          %v859 = vsel %vm851, %v842, %v858
          %v860 = vsel %vm850, %v857, %v859
          %v861 = vsel %vm849, %v839, %v842
          %v862 = vsel %vm852, %v848, 1326507024
          %v863 = vsel %vm851, %v845, %v862
          %v864 = vsel %vm850, %v861, %v863
          %v865 = vshll.u32 %v825, 8
          %v866 = vand.u32 %v865, 65535
          %v867 = vshrl.u32 %v865, 16
          %v868 = vand.u32 %v864, 65535
          %v869 = vshrl.u32 %v864, 16
          %v870 = vmul.u32 %v866, %v868
          %v871 = vmul.u32 %v866, %v869
          %v872 = vmul.u32 %v867, %v868
          %v873 = vmul.u32 %v867, %v869
          %v874 = vshll.u32 %v871, 16
          %v875 = vshrl.u32 %v871, 16
          %v876 = vshll.u32 %v872, 16
          %v877 = vshrl.u32 %v872, 16
          %vm878 = vc.u32 %v870, %v874
          %v879 = vsel %vm878, 1, 0
          %v880 = vadd.s32 %v870, %v874
          %v881 = vadd.s32 %v873, %v879
          %vm882 = vc.u32 %v880, %v876
          %v883 = vsel %vm882, 1, 0
          %v884 = vadd.s32 %v880, %v876
          %v885 = vadd.s32 %v881, %v883
          %v886 = vadd.s32 %v885, %v875
          %v887 = vadd.s32 %v886, %v877
          %v888 = vand.u32 %v865, 65535
          %v889 = vshrl.u32 %v865, 16
          %v890 = vand.u32 %v860, 65535
          %v891 = vshrl.u32 %v860, 16
          %v892 = vmul.u32 %v888, %v890
          %v893 = vmul.u32 %v888, %v891
          %v894 = vmul.u32 %v889, %v890
          %v895 = vmul.u32 %v889, %v891
          %v896 = vshll.u32 %v893, 16
          %v897 = vshrl.u32 %v893, 16
          %v898 = vshll.u32 %v894, 16
          %v899 = vshrl.u32 %v894, 16
          %vm900 = vc.u32 %v892, %v896
          %v901 = vsel %vm900, 1, 0
          %v902 = vadd.s32 %v892, %v896
          %v903 = vadd.s32 %v895, %v901
          %vm904 = vc.u32 %v902, %v898
          %v905 = vsel %vm904, 1, 0
          %v906 = vadd.s32 %v902, %v898
          %v907 = vadd.s32 %v903, %v905
          %v908 = vadd.s32 %v907, %v897
          %v909 = vadd.s32 %v908, %v899
          %v910 = vmul.u32 %v865, %v856
          %v911 = vadd.s32 %v887, %v906
          %vm912 = vc.u32 %v887, %v906
          %v913 = vadd.s32 %v909, 1
          %v914 = vsel %vm912, %v913, %v909
          %v915 = vadd.s32 %v910, %v914
          %v916 = vadd.s32 %v915, 536870912
          %v917 = vshrl.u32 %v916, 30
          %v918 = vshll.u32 %v917, 30
          %v919 = vsub.s32 %v915, %v918
          %vm920 = vcmp.lt.s32.totalorder %v919, 0
          %v921 = vsub.s32 0, %v919
          %v922 = vsel %vm920, %v921, %v919
          %v923 = vclz %v922
          %v924 = vsub.s32 %v923, 2
          %vm925 = vcmp.gt.s32.totalorder 0, %v924
          %v926 = vsel %vm925, 0, %v924
          %v927 = vsub.s32 32, %v926
          %v928 = vshll.u32 %v919, %v926
          %v929 = vshrl.u32 %v911, %v927
          %v930 = vor.u32 %v928, %v929
          %v931 = vsub.s32 4294967266, %v926
          %v932 = vadd.s32 %v931, 127
          %v933 = vshll.u32 %v932, 23
          %v934 = vor.u32 4788187, %v933
          %v935 = vand.u32 2147483647, %v934
          %v937 = vcvt.s32.f32 %v930
          %v938 = vmul.f32 %v937, %v935
          %v939 = vxor.u32 %v938, 2147483648
          %v940 = vsel %vm819, %v939, %v938
          %v941 = vsub.s32 4, %v917
          %v942 = vsel %vm819, %v941, %v917
          %v943 = vsel %vm818, %v801, %v940
          %v944 = vsel %vm818, 0, %v942
          %v945 = vmul.f32 %v943, %v943
          %v946 = vmul.f32 %v945, -0.001358992
          %v947 = vadd.f32 %v946, 0.041655596
          %v948 = vmul.f32 %v945, %v947
          %v949 = vadd.f32 %v948, -0.4999988
          %v950 = vmul.f32 %v945, %v949
          %v951 = vadd.f32 1.0, %v950
          %v952 = vmul.f32 %v943, %v943
          %v953 = vmul.f32 %v952, -0.00019511016
          %v954 = vadd.f32 %v953, 0.008332121
          %v955 = vmul.f32 %v952, %v954
          %v956 = vadd.f32 %v955, -0.16666654
          %v957 = vmul.f32 %v952, %v956
          %v958 = vadd.f32 %v957, 1.0
          %v959 = vmul.f32 %v958, %v943
          %vm960 = vweird.f32 %v801
          %v961 = vand.u32 %v944, 3
          %vm962 = vcmp.lt.s32.totalorder %v961, 2
          %vm963 = vcmp.eq.s32.totalorder %v961, 0
          %v964 = vxor.u32 %v959, 2147483648
          %v965 = vsel %vm963, %v951, %v964
          %vm966 = vcmp.eq.s32.totalorder %v961, 2
          %v967 = vxor.u32 %v951, 2147483648
          %v968 = vsel %vm966, %v967, %v959
          %v969 = vsel %vm962, %v965, %v968
          %v970 = vsel %vm960, nan, %v969
          %v971 = vand.u32 2147483647, %v802
          %vm972 = vcmp.le.f32.partialorder %v971, 0.7853982
          %vm973 = vcmp.lt.s32.totalorder %v802, 0
          %v974 = vand.u32 %v802, 2139095040
          %v975 = vshrl.u32 %v974, 23
          %v976 = vsub.s32 %v975, 127
          %v977 = vand.u32 2147483647, %v802
          %v978 = vand.u32 %v977, 8388607
          %v979 = vor.u32 %v978, 8388608
          %v980 = vsub.s32 0, %v979
          %v981 = vadd.s32 %v976, 1
          %vm982 = vcmp.gt.s32.totalorder %v981, 0
          %v983 = vsel %vm982, %v981, 0
          %v984 = vshrl.u32 %v983, 5
          %v985 = vand.u32 %v983, 31
          %v986 = vsub.s32 32, %v985
          %v987 = vshrl.u32 683565275, %v986
          %v988 = vshll.u32 683565275, %v985
          %v989 = vshrl.u32 2475754826, %v986
          %v990 = vor.u32 %v988, %v989
          %v991 = vshll.u32 2475754826, %v985
          %v992 = vshrl.u32 2131351028, %v986
          %v993 = vor.u32 %v991, %v992
          %v994 = vshll.u32 2131351028, %v985
          %v995 = vshrl.u32 2102212464, %v986
          %v996 = vor.u32 %v994, %v995
          %v997 = vshll.u32 2102212464, %v985
          %v998 = vshrl.u32 920167782, %v986
          %v999 = vor.u32 %v997, %v998
          %v1000 = vshll.u32 920167782, %v985
          %v1001 = vshrl.u32 1326507024, %v986
          %v1002 = vor.u32 %v1000, %v1001
          %vm1003 = vcmp.lt.s32.totalorder %v984, 1
          %vm1004 = vcmp.lt.s32.totalorder %v984, 2
          %vm1005 = vcmp.lt.s32.totalorder %v984, 3
          %vm1006 = vcmp.lt.s32.totalorder %v984, 4
          %v1007 = vsel %vm1003, %v987, %v990
          %v1008 = vsel %vm1006, %v996, 2102212464
          %v1009 = vsel %vm1005, %v993, %v1008
          %v1010 = vsel %vm1004, %v1007, %v1009
          %v1011 = vsel %vm1003, %v990, %v993
          %v1012 = vsel %vm1006, %v999, 920167782
          %v1013 = vsel %vm1005, %v996, %v1012
          %v1014 = vsel %vm1004, %v1011, %v1013
          %v1015 = vsel %vm1003, %v993, %v996
          %v1016 = vsel %vm1006, %v1002, 1326507024
          %v1017 = vsel %vm1005, %v999, %v1016
          %v1018 = vsel %vm1004, %v1015, %v1017
          %v1019 = vshll.u32 %v979, 8
          %v1020 = vand.u32 %v1019, 65535
          %v1021 = vshrl.u32 %v1019, 16
          %v1022 = vand.u32 %v1018, 65535
          %v1023 = vshrl.u32 %v1018, 16
          %v1024 = vmul.u32 %v1020, %v1022
          %v1025 = vmul.u32 %v1020, %v1023
          %v1026 = vmul.u32 %v1021, %v1022
          %v1027 = vmul.u32 %v1021, %v1023
          %v1028 = vshll.u32 %v1025, 16
          %v1029 = vshrl.u32 %v1025, 16
          %v1030 = vshll.u32 %v1026, 16
          %v1031 = vshrl.u32 %v1026, 16
          %vm1032 = vc.u32 %v1024, %v1028
          %v1033 = vsel %vm1032, 1, 0
          %v1034 = vadd.s32 %v1024, %v1028
          %v1035 = vadd.s32 %v1027, %v1033
          %vm1036 = vc.u32 %v1034, %v1030
          %v1037 = vsel %vm1036, 1, 0
          %v1038 = vadd.s32 %v1034, %v1030
          %v1039 = vadd.s32 %v1035, %v1037
          %v1040 = vadd.s32 %v1039, %v1029
          %v1041 = vadd.s32 %v1040, %v1031
          %v1042 = vand.u32 %v1019, 65535
          %v1043 = vshrl.u32 %v1019, 16
          %v1044 = vand.u32 %v1014, 65535
          %v1045 = vshrl.u32 %v1014, 16
          %v1046 = vmul.u32 %v1042, %v1044
          %v1047 = vmul.u32 %v1042, %v1045
          %v1048 = vmul.u32 %v1043, %v1044
          %v1049 = vmul.u32 %v1043, %v1045
          %v1050 = vshll.u32 %v1047, 16
          %v1051 = vshrl.u32 %v1047, 16
          %v1052 = vshll.u32 %v1048, 16
          %v1053 = vshrl.u32 %v1048, 16
          %vm1054 = vc.u32 %v1046, %v1050
          %v1055 = vsel %vm1054, 1, 0
          %v1056 = vadd.s32 %v1046, %v1050
          %v1057 = vadd.s32 %v1049, %v1055
          %vm1058 = vc.u32 %v1056, %v1052
          %v1059 = vsel %vm1058, 1, 0
          %v1060 = vadd.s32 %v1056, %v1052
          %v1061 = vadd.s32 %v1057, %v1059
          %v1062 = vadd.s32 %v1061, %v1051
          %v1063 = vadd.s32 %v1062, %v1053
          %v1064 = vmul.u32 %v1019, %v1010
          %v1065 = vadd.s32 %v1041, %v1060
          %vm1066 = vc.u32 %v1041, %v1060
          %v1067 = vadd.s32 %v1063, 1
          %v1068 = vsel %vm1066, %v1067, %v1063
          %v1069 = vadd.s32 %v1064, %v1068
          %v1070 = vadd.s32 %v1069, 536870912
          %v1071 = vshrl.u32 %v1070, 30
          %v1072 = vshll.u32 %v1071, 30
          %v1073 = vsub.s32 %v1069, %v1072
          %vm1074 = vcmp.lt.s32.totalorder %v1073, 0
          %v1075 = vsub.s32 0, %v1073
          %v1076 = vsel %vm1074, %v1075, %v1073
          %v1077 = vclz %v1076
          %v1078 = vsub.s32 %v1077, 2
          %vm1079 = vcmp.gt.s32.totalorder 0, %v1078
          %v1080 = vsel %vm1079, 0, %v1078
          %v1081 = vsub.s32 32, %v1080
          %v1082 = vshll.u32 %v1073, %v1080
          %v1083 = vshrl.u32 %v1065, %v1081
          %v1084 = vor.u32 %v1082, %v1083
          %v1085 = vsub.s32 4294967266, %v1080
          %v1086 = vadd.s32 %v1085, 127
          %v1087 = vshll.u32 %v1086, 23
          %v1088 = vor.u32 4788187, %v1087
          %v1089 = vand.u32 2147483647, %v1088
          %v1091 = vcvt.s32.f32 %v1084
          %v1092 = vmul.f32 %v1091, %v1089
          %v1093 = vxor.u32 %v1092, 2147483648
          %v1094 = vsel %vm973, %v1093, %v1092
          %v1095 = vsub.s32 4, %v1071
          %v1096 = vsel %vm973, %v1095, %v1071
          %v1097 = vsel %vm972, %v802, %v1094
          %v1098 = vsel %vm972, 0, %v1096
          %v1099 = vmul.f32 %v1097, %v1097
          %v1100 = vmul.f32 %v1099, -0.001358992
          %v1101 = vadd.f32 %v1100, 0.041655596
          %v1102 = vmul.f32 %v1099, %v1101
          %v1103 = vadd.f32 %v1102, -0.4999988
          %v1104 = vmul.f32 %v1099, %v1103
          %v1105 = vadd.f32 1.0, %v1104
          %v1106 = vmul.f32 %v1097, %v1097
          %v1107 = vmul.f32 %v1106, -0.00019511016
          %v1108 = vadd.f32 %v1107, 0.008332121
          %v1109 = vmul.f32 %v1106, %v1108
          %v1110 = vadd.f32 %v1109, -0.16666654
          %v1111 = vmul.f32 %v1106, %v1110
          %v1112 = vadd.f32 %v1111, 1.0
          %v1113 = vmul.f32 %v1112, %v1097
          %vm1114 = vweird.f32 %v802
          %v1115 = vand.u32 %v1098, 3
          %vm1116 = vcmp.lt.s32.totalorder %v1115, 2
          %vm1117 = vcmp.eq.s32.totalorder %v1115, 0
          %v1118 = vxor.u32 %v1113, 2147483648
          %v1119 = vsel %vm1117, %v1105, %v1118
          %vm1120 = vcmp.eq.s32.totalorder %v1115, 2
          %v1121 = vxor.u32 %v1105, 2147483648
          %v1122 = vsel %vm1120, %v1121, %v1113
          %v1123 = vsel %vm1116, %v1119, %v1122
          %v1124 = vsel %vm1114, nan, %v1123
          %v1125 = vand.u32 2147483647, %v803
          %vm1126 = vcmp.le.f32.partialorder %v1125, 0.7853982
          %vm1127 = vcmp.lt.s32.totalorder %v803, 0
          %v1128 = vand.u32 %v803, 2139095040
          %v1129 = vshrl.u32 %v1128, 23
          %v1130 = vsub.s32 %v1129, 127
          %v1131 = vand.u32 2147483647, %v803
          %v1132 = vand.u32 %v1131, 8388607
          %v1133 = vor.u32 %v1132, 8388608
          %v1134 = vsub.s32 0, %v1133
          %v1135 = vadd.s32 %v1130, 1
          %vm1136 = vcmp.gt.s32.totalorder %v1135, 0
          %v1137 = vsel %vm1136, %v1135, 0
          %v1138 = vshrl.u32 %v1137, 5
          %v1139 = vand.u32 %v1137, 31
          %v1140 = vsub.s32 32, %v1139
          %v1141 = vshrl.u32 683565275, %v1140
          %v1142 = vshll.u32 683565275, %v1139
          %v1143 = vshrl.u32 2475754826, %v1140
          %v1144 = vor.u32 %v1142, %v1143
          %v1145 = vshll.u32 2475754826, %v1139
          %v1146 = vshrl.u32 2131351028, %v1140
          %v1147 = vor.u32 %v1145, %v1146
          %v1148 = vshll.u32 2131351028, %v1139
          %v1149 = vshrl.u32 2102212464, %v1140
          %v1150 = vor.u32 %v1148, %v1149
          %v1151 = vshll.u32 2102212464, %v1139
          %v1152 = vshrl.u32 920167782, %v1140
          %v1153 = vor.u32 %v1151, %v1152
          %v1154 = vshll.u32 920167782, %v1139
          %v1155 = vshrl.u32 1326507024, %v1140
          %v1156 = vor.u32 %v1154, %v1155
          %vm1157 = vcmp.lt.s32.totalorder %v1138, 1
          %vm1158 = vcmp.lt.s32.totalorder %v1138, 2
          %vm1159 = vcmp.lt.s32.totalorder %v1138, 3
          %vm1160 = vcmp.lt.s32.totalorder %v1138, 4
          %v1161 = vsel %vm1157, %v1141, %v1144
          %v1162 = vsel %vm1160, %v1150, 2102212464
          %v1163 = vsel %vm1159, %v1147, %v1162
          %v1164 = vsel %vm1158, %v1161, %v1163
          %v1165 = vsel %vm1157, %v1144, %v1147
          %v1166 = vsel %vm1160, %v1153, 920167782
          %v1167 = vsel %vm1159, %v1150, %v1166
          %v1168 = vsel %vm1158, %v1165, %v1167
          %v1169 = vsel %vm1157, %v1147, %v1150
          %v1170 = vsel %vm1160, %v1156, 1326507024
          %v1171 = vsel %vm1159, %v1153, %v1170
          %v1172 = vsel %vm1158, %v1169, %v1171
          %v1173 = vshll.u32 %v1133, 8
          %v1174 = vand.u32 %v1173, 65535
          %v1175 = vshrl.u32 %v1173, 16
          %v1176 = vand.u32 %v1172, 65535
          %v1177 = vshrl.u32 %v1172, 16
          %v1178 = vmul.u32 %v1174, %v1176
          %v1179 = vmul.u32 %v1174, %v1177
          %v1180 = vmul.u32 %v1175, %v1176
          %v1181 = vmul.u32 %v1175, %v1177
          %v1182 = vshll.u32 %v1179, 16
          %v1183 = vshrl.u32 %v1179, 16
          %v1184 = vshll.u32 %v1180, 16
          %v1185 = vshrl.u32 %v1180, 16
          %vm1186 = vc.u32 %v1178, %v1182
          %v1187 = vsel %vm1186, 1, 0
          %v1188 = vadd.s32 %v1178, %v1182
          %v1189 = vadd.s32 %v1181, %v1187
          %vm1190 = vc.u32 %v1188, %v1184
          %v1191 = vsel %vm1190, 1, 0
          %v1192 = vadd.s32 %v1188, %v1184
          %v1193 = vadd.s32 %v1189, %v1191
          %v1194 = vadd.s32 %v1193, %v1183
          %v1195 = vadd.s32 %v1194, %v1185
          %v1196 = vand.u32 %v1173, 65535
          %v1197 = vshrl.u32 %v1173, 16
          %v1198 = vand.u32 %v1168, 65535
          %v1199 = vshrl.u32 %v1168, 16
          %v1200 = vmul.u32 %v1196, %v1198
          %v1201 = vmul.u32 %v1196, %v1199
          %v1202 = vmul.u32 %v1197, %v1198
          %v1203 = vmul.u32 %v1197, %v1199
          %v1204 = vshll.u32 %v1201, 16
          %v1205 = vshrl.u32 %v1201, 16
          %v1206 = vshll.u32 %v1202, 16
          %v1207 = vshrl.u32 %v1202, 16
          %vm1208 = vc.u32 %v1200, %v1204
          %v1209 = vsel %vm1208, 1, 0
          %v1210 = vadd.s32 %v1200, %v1204
          %v1211 = vadd.s32 %v1203, %v1209
          %vm1212 = vc.u32 %v1210, %v1206
          %v1213 = vsel %vm1212, 1, 0
          %v1214 = vadd.s32 %v1210, %v1206
          %v1215 = vadd.s32 %v1211, %v1213
          %v1216 = vadd.s32 %v1215, %v1205
          %v1217 = vadd.s32 %v1216, %v1207
          %v1218 = vmul.u32 %v1173, %v1164
          %v1219 = vadd.s32 %v1195, %v1214
          %vm1220 = vc.u32 %v1195, %v1214
          %v1221 = vadd.s32 %v1217, 1
          %v1222 = vsel %vm1220, %v1221, %v1217
          %v1223 = vadd.s32 %v1218, %v1222
          %v1224 = vadd.s32 %v1223, 536870912
          %v1225 = vshrl.u32 %v1224, 30
          %v1226 = vshll.u32 %v1225, 30
          %v1227 = vsub.s32 %v1223, %v1226
          %vm1228 = vcmp.lt.s32.totalorder %v1227, 0
          %v1229 = vsub.s32 0, %v1227
          %v1230 = vsel %vm1228, %v1229, %v1227
          %v1231 = vclz %v1230
          %v1232 = vsub.s32 %v1231, 2
          %vm1233 = vcmp.gt.s32.totalorder 0, %v1232
          %v1234 = vsel %vm1233, 0, %v1232
          %v1235 = vsub.s32 32, %v1234
          %v1236 = vshll.u32 %v1227, %v1234
          %v1237 = vshrl.u32 %v1219, %v1235
          %v1238 = vor.u32 %v1236, %v1237
          %v1239 = vsub.s32 4294967266, %v1234
          %v1240 = vadd.s32 %v1239, 127
          %v1241 = vshll.u32 %v1240, 23
          %v1242 = vor.u32 4788187, %v1241
          %v1243 = vand.u32 2147483647, %v1242
          %v1245 = vcvt.s32.f32 %v1238
          %v1246 = vmul.f32 %v1245, %v1243
          %v1247 = vxor.u32 %v1246, 2147483648
          %v1248 = vsel %vm1127, %v1247, %v1246
          %v1249 = vsub.s32 4, %v1225
          %v1250 = vsel %vm1127, %v1249, %v1225
          %v1251 = vsel %vm1126, %v803, %v1248
          %v1252 = vsel %vm1126, 0, %v1250
          %v1253 = vmul.f32 %v1251, %v1251
          %v1254 = vmul.f32 %v1253, -0.001358992
          %v1255 = vadd.f32 %v1254, 0.041655596
          %v1256 = vmul.f32 %v1253, %v1255
          %v1257 = vadd.f32 %v1256, -0.4999988
          %v1258 = vmul.f32 %v1253, %v1257
          %v1259 = vadd.f32 1.0, %v1258
          %v1260 = vmul.f32 %v1251, %v1251
          %v1261 = vmul.f32 %v1260, -0.00019511016
          %v1262 = vadd.f32 %v1261, 0.008332121
          %v1263 = vmul.f32 %v1260, %v1262
          %v1264 = vadd.f32 %v1263, -0.16666654
          %v1265 = vmul.f32 %v1260, %v1264
          %v1266 = vadd.f32 %v1265, 1.0
          %v1267 = vmul.f32 %v1266, %v1251
          %vm1268 = vweird.f32 %v803
          %v1269 = vand.u32 %v1252, 3
          %vm1270 = vcmp.lt.s32.totalorder %v1269, 2
          %vm1271 = vcmp.eq.s32.totalorder %v1269, 0
          %v1272 = vxor.u32 %v1267, 2147483648
          %v1273 = vsel %vm1271, %v1259, %v1272
          %vm1274 = vcmp.eq.s32.totalorder %v1269, 2
          %v1275 = vxor.u32 %v1259, 2147483648
          %v1276 = vsel %vm1274, %v1275, %v1267
          %v1277 = vsel %vm1270, %v1273, %v1276
          %v1278 = vsel %vm1268, nan, %v1277
          %v1279 = vand.u32 2147483647, %v804
          %vm1280 = vcmp.le.f32.partialorder %v1279, 0.7853982
          %vm1281 = vcmp.lt.s32.totalorder %v804, 0
          %v1282 = vand.u32 %v804, 2139095040
          %v1283 = vshrl.u32 %v1282, 23
          %v1284 = vsub.s32 %v1283, 127
          %v1285 = vand.u32 2147483647, %v804
          %v1286 = vand.u32 %v1285, 8388607
          %v1287 = vor.u32 %v1286, 8388608
          %v1288 = vsub.s32 0, %v1287
          %v1289 = vadd.s32 %v1284, 1
          %vm1290 = vcmp.gt.s32.totalorder %v1289, 0
          %v1291 = vsel %vm1290, %v1289, 0
          %v1292 = vshrl.u32 %v1291, 5
          %v1293 = vand.u32 %v1291, 31
          %v1294 = vsub.s32 32, %v1293
          %v1295 = vshrl.u32 683565275, %v1294
          %v1296 = vshll.u32 683565275, %v1293
          %v1297 = vshrl.u32 2475754826, %v1294
          %v1298 = vor.u32 %v1296, %v1297
          %v1299 = vshll.u32 2475754826, %v1293
          %v1300 = vshrl.u32 2131351028, %v1294
          %v1301 = vor.u32 %v1299, %v1300
          %v1302 = vshll.u32 2131351028, %v1293
          %v1303 = vshrl.u32 2102212464, %v1294
          %v1304 = vor.u32 %v1302, %v1303
          %v1305 = vshll.u32 2102212464, %v1293
          %v1306 = vshrl.u32 920167782, %v1294
          %v1307 = vor.u32 %v1305, %v1306
          %v1308 = vshll.u32 920167782, %v1293
          %v1309 = vshrl.u32 1326507024, %v1294
          %v1310 = vor.u32 %v1308, %v1309
          %vm1311 = vcmp.lt.s32.totalorder %v1292, 1
          %vm1312 = vcmp.lt.s32.totalorder %v1292, 2
          %vm1313 = vcmp.lt.s32.totalorder %v1292, 3
          %vm1314 = vcmp.lt.s32.totalorder %v1292, 4
          %v1315 = vsel %vm1311, %v1295, %v1298
          %v1316 = vsel %vm1314, %v1304, 2102212464
          %v1317 = vsel %vm1313, %v1301, %v1316
          %v1318 = vsel %vm1312, %v1315, %v1317
          %v1319 = vsel %vm1311, %v1298, %v1301
          %v1320 = vsel %vm1314, %v1307, 920167782
          %v1321 = vsel %vm1313, %v1304, %v1320
          %v1322 = vsel %vm1312, %v1319, %v1321
          %v1323 = vsel %vm1311, %v1301, %v1304
          %v1324 = vsel %vm1314, %v1310, 1326507024
          %v1325 = vsel %vm1313, %v1307, %v1324
          %v1326 = vsel %vm1312, %v1323, %v1325
          %v1327 = vshll.u32 %v1287, 8
          %v1328 = vand.u32 %v1327, 65535
          %v1329 = vshrl.u32 %v1327, 16
          %v1330 = vand.u32 %v1326, 65535
          %v1331 = vshrl.u32 %v1326, 16
          %v1332 = vmul.u32 %v1328, %v1330
          %v1333 = vmul.u32 %v1328, %v1331
          %v1334 = vmul.u32 %v1329, %v1330
          %v1335 = vmul.u32 %v1329, %v1331
          %v1336 = vshll.u32 %v1333, 16
          %v1337 = vshrl.u32 %v1333, 16
          %v1338 = vshll.u32 %v1334, 16
          %v1339 = vshrl.u32 %v1334, 16
          %vm1340 = vc.u32 %v1332, %v1336
          %v1341 = vsel %vm1340, 1, 0
          %v1342 = vadd.s32 %v1332, %v1336
          %v1343 = vadd.s32 %v1335, %v1341
          %vm1344 = vc.u32 %v1342, %v1338
          %v1345 = vsel %vm1344, 1, 0
          %v1346 = vadd.s32 %v1342, %v1338
          %v1347 = vadd.s32 %v1343, %v1345
          %v1348 = vadd.s32 %v1347, %v1337
          %v1349 = vadd.s32 %v1348, %v1339
          %v1350 = vand.u32 %v1327, 65535
          %v1351 = vshrl.u32 %v1327, 16
          %v1352 = vand.u32 %v1322, 65535
          %v1353 = vshrl.u32 %v1322, 16
          %v1354 = vmul.u32 %v1350, %v1352
          %v1355 = vmul.u32 %v1350, %v1353
          %v1356 = vmul.u32 %v1351, %v1352
          %v1357 = vmul.u32 %v1351, %v1353
          %v1358 = vshll.u32 %v1355, 16
          %v1359 = vshrl.u32 %v1355, 16
          %v1360 = vshll.u32 %v1356, 16
          %v1361 = vshrl.u32 %v1356, 16
          %vm1362 = vc.u32 %v1354, %v1358
          %v1363 = vsel %vm1362, 1, 0
          %v1364 = vadd.s32 %v1354, %v1358
          %v1365 = vadd.s32 %v1357, %v1363
          %vm1366 = vc.u32 %v1364, %v1360
          %v1367 = vsel %vm1366, 1, 0
          %v1368 = vadd.s32 %v1364, %v1360
          %v1369 = vadd.s32 %v1365, %v1367
          %v1370 = vadd.s32 %v1369, %v1359
          %v1371 = vadd.s32 %v1370, %v1361
          %v1372 = vmul.u32 %v1327, %v1318
          %v1373 = vadd.s32 %v1349, %v1368
          %vm1374 = vc.u32 %v1349, %v1368
          %v1375 = vadd.s32 %v1371, 1
          %v1376 = vsel %vm1374, %v1375, %v1371
          %v1377 = vadd.s32 %v1372, %v1376
          %v1378 = vadd.s32 %v1377, 536870912
          %v1379 = vshrl.u32 %v1378, 30
          %v1380 = vshll.u32 %v1379, 30
          %v1381 = vsub.s32 %v1377, %v1380
          %vm1382 = vcmp.lt.s32.totalorder %v1381, 0
          %v1383 = vsub.s32 0, %v1381
          %v1384 = vsel %vm1382, %v1383, %v1381
          %v1385 = vclz %v1384
          %v1386 = vsub.s32 %v1385, 2
          %vm1387 = vcmp.gt.s32.totalorder 0, %v1386
          %v1388 = vsel %vm1387, 0, %v1386
          %v1389 = vsub.s32 32, %v1388
          %v1390 = vshll.u32 %v1381, %v1388
          %v1391 = vshrl.u32 %v1373, %v1389
          %v1392 = vor.u32 %v1390, %v1391
          %v1393 = vsub.s32 4294967266, %v1388
          %v1394 = vadd.s32 %v1393, 127
          %v1395 = vshll.u32 %v1394, 23
          %v1396 = vor.u32 4788187, %v1395
          %v1397 = vand.u32 2147483647, %v1396
          %v1399 = vcvt.s32.f32 %v1392
          %v1400 = vmul.f32 %v1399, %v1397
          %v1401 = vxor.u32 %v1400, 2147483648
          %v1402 = vsel %vm1281, %v1401, %v1400
          %v1403 = vsub.s32 4, %v1379
          %v1404 = vsel %vm1281, %v1403, %v1379
          %v1405 = vsel %vm1280, %v804, %v1402
          %v1406 = vsel %vm1280, 0, %v1404
          %v1407 = vmul.f32 %v1405, %v1405
          %v1408 = vmul.f32 %v1407, -0.001358992
          %v1409 = vadd.f32 %v1408, 0.041655596
          %v1410 = vmul.f32 %v1407, %v1409
          %v1411 = vadd.f32 %v1410, -0.4999988
          %v1412 = vmul.f32 %v1407, %v1411
          %v1413 = vadd.f32 1.0, %v1412
          %v1414 = vmul.f32 %v1405, %v1405
          %v1415 = vmul.f32 %v1414, -0.00019511016
          %v1416 = vadd.f32 %v1415, 0.008332121
          %v1417 = vmul.f32 %v1414, %v1416
          %v1418 = vadd.f32 %v1417, -0.16666654
          %v1419 = vmul.f32 %v1414, %v1418
          %v1420 = vadd.f32 %v1419, 1.0
          %v1421 = vmul.f32 %v1420, %v1405
          %vm1422 = vweird.f32 %v804
          %v1423 = vand.u32 %v1406, 3
          %vm1424 = vcmp.lt.s32.totalorder %v1423, 2
          %vm1425 = vcmp.eq.s32.totalorder %v1423, 0
          %v1426 = vxor.u32 %v1421, 2147483648
          %v1427 = vsel %vm1425, %v1413, %v1426
          %vm1428 = vcmp.eq.s32.totalorder %v1423, 2
          %v1429 = vxor.u32 %v1413, 2147483648
          %v1430 = vsel %vm1428, %v1429, %v1421
          %v1431 = vsel %vm1424, %v1427, %v1430
          %v1432 = vsel %vm1422, nan, %v1431
          %v1433 = vand.u32 2147483647, %v805
          %vm1434 = vcmp.le.f32.partialorder %v1433, 0.7853982
          %vm1435 = vcmp.lt.s32.totalorder %v805, 0
          %v1436 = vand.u32 %v805, 2139095040
          %v1437 = vshrl.u32 %v1436, 23
          %v1438 = vsub.s32 %v1437, 127
          %v1439 = vand.u32 2147483647, %v805
          %v1440 = vand.u32 %v1439, 8388607
          %v1441 = vor.u32 %v1440, 8388608
          %v1442 = vsub.s32 0, %v1441
          %v1443 = vadd.s32 %v1438, 1
          %vm1444 = vcmp.gt.s32.totalorder %v1443, 0
          %v1445 = vsel %vm1444, %v1443, 0
          %v1446 = vshrl.u32 %v1445, 5
          %v1447 = vand.u32 %v1445, 31
          %v1448 = vsub.s32 32, %v1447
          %v1449 = vshrl.u32 683565275, %v1448
          %v1450 = vshll.u32 683565275, %v1447
          %v1451 = vshrl.u32 2475754826, %v1448
          %v1452 = vor.u32 %v1450, %v1451
          %v1453 = vshll.u32 2475754826, %v1447
          %v1454 = vshrl.u32 2131351028, %v1448
          %v1455 = vor.u32 %v1453, %v1454
          %v1456 = vshll.u32 2131351028, %v1447
          %v1457 = vshrl.u32 2102212464, %v1448
          %v1458 = vor.u32 %v1456, %v1457
          %v1459 = vshll.u32 2102212464, %v1447
          %v1460 = vshrl.u32 920167782, %v1448
          %v1461 = vor.u32 %v1459, %v1460
          %v1462 = vshll.u32 920167782, %v1447
          %v1463 = vshrl.u32 1326507024, %v1448
          %v1464 = vor.u32 %v1462, %v1463
          %vm1465 = vcmp.lt.s32.totalorder %v1446, 1
          %vm1466 = vcmp.lt.s32.totalorder %v1446, 2
          %vm1467 = vcmp.lt.s32.totalorder %v1446, 3
          %vm1468 = vcmp.lt.s32.totalorder %v1446, 4
          %v1469 = vsel %vm1465, %v1449, %v1452
          %v1470 = vsel %vm1468, %v1458, 2102212464
          %v1471 = vsel %vm1467, %v1455, %v1470
          %v1472 = vsel %vm1466, %v1469, %v1471
          %v1473 = vsel %vm1465, %v1452, %v1455
          %v1474 = vsel %vm1468, %v1461, 920167782
          %v1475 = vsel %vm1467, %v1458, %v1474
          %v1476 = vsel %vm1466, %v1473, %v1475
          %v1477 = vsel %vm1465, %v1455, %v1458
          %v1478 = vsel %vm1468, %v1464, 1326507024
          %v1479 = vsel %vm1467, %v1461, %v1478
          %v1480 = vsel %vm1466, %v1477, %v1479
          %v1481 = vshll.u32 %v1441, 8
          %v1482 = vand.u32 %v1481, 65535
          %v1483 = vshrl.u32 %v1481, 16
          %v1484 = vand.u32 %v1480, 65535
          %v1485 = vshrl.u32 %v1480, 16
          %v1486 = vmul.u32 %v1482, %v1484
          %v1487 = vmul.u32 %v1482, %v1485
          %v1488 = vmul.u32 %v1483, %v1484
          %v1489 = vmul.u32 %v1483, %v1485
          %v1490 = vshll.u32 %v1487, 16
          %v1491 = vshrl.u32 %v1487, 16
          %v1492 = vshll.u32 %v1488, 16
          %v1493 = vshrl.u32 %v1488, 16
          %vm1494 = vc.u32 %v1486, %v1490
          %v1495 = vsel %vm1494, 1, 0
          %v1496 = vadd.s32 %v1486, %v1490
          %v1497 = vadd.s32 %v1489, %v1495
          %vm1498 = vc.u32 %v1496, %v1492
          %v1499 = vsel %vm1498, 1, 0
          %v1500 = vadd.s32 %v1496, %v1492
          %v1501 = vadd.s32 %v1497, %v1499
          %v1502 = vadd.s32 %v1501, %v1491
          %v1503 = vadd.s32 %v1502, %v1493
          %v1504 = vand.u32 %v1481, 65535
          %v1505 = vshrl.u32 %v1481, 16
          %v1506 = vand.u32 %v1476, 65535
          %v1507 = vshrl.u32 %v1476, 16
          %v1508 = vmul.u32 %v1504, %v1506
          %v1509 = vmul.u32 %v1504, %v1507
          %v1510 = vmul.u32 %v1505, %v1506
          %v1511 = vmul.u32 %v1505, %v1507
          %v1512 = vshll.u32 %v1509, 16
          %v1513 = vshrl.u32 %v1509, 16
          %v1514 = vshll.u32 %v1510, 16
          %v1515 = vshrl.u32 %v1510, 16
          %vm1516 = vc.u32 %v1508, %v1512
          %v1517 = vsel %vm1516, 1, 0
          %v1518 = vadd.s32 %v1508, %v1512
          %v1519 = vadd.s32 %v1511, %v1517
          %vm1520 = vc.u32 %v1518, %v1514
          %v1521 = vsel %vm1520, 1, 0
          %v1522 = vadd.s32 %v1518, %v1514
          %v1523 = vadd.s32 %v1519, %v1521
          %v1524 = vadd.s32 %v1523, %v1513
          %v1525 = vadd.s32 %v1524, %v1515
          %v1526 = vmul.u32 %v1481, %v1472
          %v1527 = vadd.s32 %v1503, %v1522
          %vm1528 = vc.u32 %v1503, %v1522
          %v1529 = vadd.s32 %v1525, 1
          %v1530 = vsel %vm1528, %v1529, %v1525
          %v1531 = vadd.s32 %v1526, %v1530
          %v1532 = vadd.s32 %v1531, 536870912
          %v1533 = vshrl.u32 %v1532, 30
          %v1534 = vshll.u32 %v1533, 30
          %v1535 = vsub.s32 %v1531, %v1534
          %vm1536 = vcmp.lt.s32.totalorder %v1535, 0
          %v1537 = vsub.s32 0, %v1535
          %v1538 = vsel %vm1536, %v1537, %v1535
          %v1539 = vclz %v1538
          %v1540 = vsub.s32 %v1539, 2
          %vm1541 = vcmp.gt.s32.totalorder 0, %v1540
          %v1542 = vsel %vm1541, 0, %v1540
          %v1543 = vsub.s32 32, %v1542
          %v1544 = vshll.u32 %v1535, %v1542
          %v1545 = vshrl.u32 %v1527, %v1543
          %v1546 = vor.u32 %v1544, %v1545
          %v1547 = vsub.s32 4294967266, %v1542
          %v1548 = vadd.s32 %v1547, 127
          %v1549 = vshll.u32 %v1548, 23
          %v1550 = vor.u32 4788187, %v1549
          %v1551 = vand.u32 2147483647, %v1550
          %v1553 = vcvt.s32.f32 %v1546
          %v1554 = vmul.f32 %v1553, %v1551
          %v1555 = vxor.u32 %v1554, 2147483648
          %v1556 = vsel %vm1435, %v1555, %v1554
          %v1557 = vsub.s32 4, %v1533
          %v1558 = vsel %vm1435, %v1557, %v1533
          %v1559 = vsel %vm1434, %v805, %v1556
          %v1560 = vsel %vm1434, 0, %v1558
          %v1561 = vmul.f32 %v1559, %v1559
          %v1562 = vmul.f32 %v1561, -0.001358992
          %v1563 = vadd.f32 %v1562, 0.041655596
          %v1564 = vmul.f32 %v1561, %v1563
          %v1565 = vadd.f32 %v1564, -0.4999988
          %v1566 = vmul.f32 %v1561, %v1565
          %v1567 = vadd.f32 1.0, %v1566
          %v1568 = vmul.f32 %v1559, %v1559
          %v1569 = vmul.f32 %v1568, -0.00019511016
          %v1570 = vadd.f32 %v1569, 0.008332121
          %v1571 = vmul.f32 %v1568, %v1570
          %v1572 = vadd.f32 %v1571, -0.16666654
          %v1573 = vmul.f32 %v1568, %v1572
          %v1574 = vadd.f32 %v1573, 1.0
          %v1575 = vmul.f32 %v1574, %v1559
          %vm1576 = vweird.f32 %v805
          %v1577 = vand.u32 %v1560, 3
          %vm1578 = vcmp.lt.s32.totalorder %v1577, 2
          %vm1579 = vcmp.eq.s32.totalorder %v1577, 0
          %v1580 = vxor.u32 %v1575, 2147483648
          %v1581 = vsel %vm1579, %v1567, %v1580
          %vm1582 = vcmp.eq.s32.totalorder %v1577, 2
          %v1583 = vxor.u32 %v1567, 2147483648
          %v1584 = vsel %vm1582, %v1583, %v1575
          %v1585 = vsel %vm1578, %v1581, %v1584
          %v1586 = vsel %vm1576, nan, %v1585
          %v1587 = vand.u32 2147483647, %v806
          %vm1588 = vcmp.le.f32.partialorder %v1587, 0.7853982
          %vm1589 = vcmp.lt.s32.totalorder %v806, 0
          %v1590 = vand.u32 %v806, 2139095040
          %v1591 = vshrl.u32 %v1590, 23
          %v1592 = vsub.s32 %v1591, 127
          %v1593 = vand.u32 2147483647, %v806
          %v1594 = vand.u32 %v1593, 8388607
          %v1595 = vor.u32 %v1594, 8388608
          %v1596 = vsub.s32 0, %v1595
          %v1597 = vadd.s32 %v1592, 1
          %vm1598 = vcmp.gt.s32.totalorder %v1597, 0
          %v1599 = vsel %vm1598, %v1597, 0
          %v1600 = vshrl.u32 %v1599, 5
          %v1601 = vand.u32 %v1599, 31
          %v1602 = vsub.s32 32, %v1601
          %v1603 = vshrl.u32 683565275, %v1602
          %v1604 = vshll.u32 683565275, %v1601
          %v1605 = vshrl.u32 2475754826, %v1602
          %v1606 = vor.u32 %v1604, %v1605
          %v1607 = vshll.u32 2475754826, %v1601
          %v1608 = vshrl.u32 2131351028, %v1602
          %v1609 = vor.u32 %v1607, %v1608
          %v1610 = vshll.u32 2131351028, %v1601
          %v1611 = vshrl.u32 2102212464, %v1602
          %v1612 = vor.u32 %v1610, %v1611
          %v1613 = vshll.u32 2102212464, %v1601
          %v1614 = vshrl.u32 920167782, %v1602
          %v1615 = vor.u32 %v1613, %v1614
          %v1616 = vshll.u32 920167782, %v1601
          %v1617 = vshrl.u32 1326507024, %v1602
          %v1618 = vor.u32 %v1616, %v1617
          %vm1619 = vcmp.lt.s32.totalorder %v1600, 1
          %vm1620 = vcmp.lt.s32.totalorder %v1600, 2
          %vm1621 = vcmp.lt.s32.totalorder %v1600, 3
          %vm1622 = vcmp.lt.s32.totalorder %v1600, 4
          %v1623 = vsel %vm1619, %v1603, %v1606
          %v1624 = vsel %vm1622, %v1612, 2102212464
          %v1625 = vsel %vm1621, %v1609, %v1624
          %v1626 = vsel %vm1620, %v1623, %v1625
          %v1627 = vsel %vm1619, %v1606, %v1609
          %v1628 = vsel %vm1622, %v1615, 920167782
          %v1629 = vsel %vm1621, %v1612, %v1628
          %v1630 = vsel %vm1620, %v1627, %v1629
          %v1631 = vsel %vm1619, %v1609, %v1612
          %v1632 = vsel %vm1622, %v1618, 1326507024
          %v1633 = vsel %vm1621, %v1615, %v1632
          %v1634 = vsel %vm1620, %v1631, %v1633
          %v1635 = vshll.u32 %v1595, 8
          %v1636 = vand.u32 %v1635, 65535
          %v1637 = vshrl.u32 %v1635, 16
          %v1638 = vand.u32 %v1634, 65535
          %v1639 = vshrl.u32 %v1634, 16
          %v1640 = vmul.u32 %v1636, %v1638
          %v1641 = vmul.u32 %v1636, %v1639
          %v1642 = vmul.u32 %v1637, %v1638
          %v1643 = vmul.u32 %v1637, %v1639
          %v1644 = vshll.u32 %v1641, 16
          %v1645 = vshrl.u32 %v1641, 16
          %v1646 = vshll.u32 %v1642, 16
          %v1647 = vshrl.u32 %v1642, 16
          %vm1648 = vc.u32 %v1640, %v1644
          %v1649 = vsel %vm1648, 1, 0
          %v1650 = vadd.s32 %v1640, %v1644
          %v1651 = vadd.s32 %v1643, %v1649
          %vm1652 = vc.u32 %v1650, %v1646
          %v1653 = vsel %vm1652, 1, 0
          %v1654 = vadd.s32 %v1650, %v1646
          %v1655 = vadd.s32 %v1651, %v1653
          %v1656 = vadd.s32 %v1655, %v1645
          %v1657 = vadd.s32 %v1656, %v1647
          %v1658 = vand.u32 %v1635, 65535
          %v1659 = vshrl.u32 %v1635, 16
          %v1660 = vand.u32 %v1630, 65535
          %v1661 = vshrl.u32 %v1630, 16
          %v1662 = vmul.u32 %v1658, %v1660
          %v1663 = vmul.u32 %v1658, %v1661
          %v1664 = vmul.u32 %v1659, %v1660
          %v1665 = vmul.u32 %v1659, %v1661
          %v1666 = vshll.u32 %v1663, 16
          %v1667 = vshrl.u32 %v1663, 16
          %v1668 = vshll.u32 %v1664, 16
          %v1669 = vshrl.u32 %v1664, 16
          %vm1670 = vc.u32 %v1662, %v1666
          %v1671 = vsel %vm1670, 1, 0
          %v1672 = vadd.s32 %v1662, %v1666
          %v1673 = vadd.s32 %v1665, %v1671
          %vm1674 = vc.u32 %v1672, %v1668
          %v1675 = vsel %vm1674, 1, 0
          %v1676 = vadd.s32 %v1672, %v1668
          %v1677 = vadd.s32 %v1673, %v1675
          %v1678 = vadd.s32 %v1677, %v1667
          %v1679 = vadd.s32 %v1678, %v1669
          %v1680 = vmul.u32 %v1635, %v1626
          %v1681 = vadd.s32 %v1657, %v1676
          %vm1682 = vc.u32 %v1657, %v1676
          %v1683 = vadd.s32 %v1679, 1
          %v1684 = vsel %vm1682, %v1683, %v1679
          %v1685 = vadd.s32 %v1680, %v1684
          %v1686 = vadd.s32 %v1685, 536870912
          %v1687 = vshrl.u32 %v1686, 30
          %v1688 = vshll.u32 %v1687, 30
          %v1689 = vsub.s32 %v1685, %v1688
          %vm1690 = vcmp.lt.s32.totalorder %v1689, 0
          %v1691 = vsub.s32 0, %v1689
          %v1692 = vsel %vm1690, %v1691, %v1689
          %v1693 = vclz %v1692
          %v1694 = vsub.s32 %v1693, 2
          %vm1695 = vcmp.gt.s32.totalorder 0, %v1694
          %v1696 = vsel %vm1695, 0, %v1694
          %v1697 = vsub.s32 32, %v1696
          %v1698 = vshll.u32 %v1689, %v1696
          %v1699 = vshrl.u32 %v1681, %v1697
          %v1700 = vor.u32 %v1698, %v1699
          %v1701 = vsub.s32 4294967266, %v1696
          %v1702 = vadd.s32 %v1701, 127
          %v1703 = vshll.u32 %v1702, 23
          %v1704 = vor.u32 4788187, %v1703
          %v1705 = vand.u32 2147483647, %v1704
          %v1707 = vcvt.s32.f32 %v1700
          %v1708 = vmul.f32 %v1707, %v1705
          %v1709 = vxor.u32 %v1708, 2147483648
          %v1710 = vsel %vm1589, %v1709, %v1708
          %v1711 = vsub.s32 4, %v1687
          %v1712 = vsel %vm1589, %v1711, %v1687
          %v1713 = vsel %vm1588, %v806, %v1710
          %v1714 = vsel %vm1588, 0, %v1712
          %v1715 = vmul.f32 %v1713, %v1713
          %v1716 = vmul.f32 %v1715, -0.001358992
          %v1717 = vadd.f32 %v1716, 0.041655596
          %v1718 = vmul.f32 %v1715, %v1717
          %v1719 = vadd.f32 %v1718, -0.4999988
          %v1720 = vmul.f32 %v1715, %v1719
          %v1721 = vadd.f32 1.0, %v1720
          %v1722 = vmul.f32 %v1713, %v1713
          %v1723 = vmul.f32 %v1722, -0.00019511016
          %v1724 = vadd.f32 %v1723, 0.008332121
          %v1725 = vmul.f32 %v1722, %v1724
          %v1726 = vadd.f32 %v1725, -0.16666654
          %v1727 = vmul.f32 %v1722, %v1726
          %v1728 = vadd.f32 %v1727, 1.0
          %v1729 = vmul.f32 %v1728, %v1713
          %vm1730 = vweird.f32 %v806
          %v1731 = vand.u32 %v1714, 3
          %vm1732 = vcmp.lt.s32.totalorder %v1731, 2
          %vm1733 = vcmp.eq.s32.totalorder %v1731, 0
          %v1734 = vxor.u32 %v1729, 2147483648
          %v1735 = vsel %vm1733, %v1721, %v1734
          %vm1736 = vcmp.eq.s32.totalorder %v1731, 2
          %v1737 = vxor.u32 %v1721, 2147483648
          %v1738 = vsel %vm1736, %v1737, %v1729
          %v1739 = vsel %vm1732, %v1735, %v1738
          %v1740 = vsel %vm1730, nan, %v1739
          %v1741 = vand.u32 2147483647, %v807
          %vm1742 = vcmp.le.f32.partialorder %v1741, 0.7853982
          %vm1743 = vcmp.lt.s32.totalorder %v807, 0
          %v1744 = vand.u32 %v807, 2139095040
          %v1745 = vshrl.u32 %v1744, 23
          %v1746 = vsub.s32 %v1745, 127
          %v1747 = vand.u32 2147483647, %v807
          %v1748 = vand.u32 %v1747, 8388607
          %v1749 = vor.u32 %v1748, 8388608
          %v1750 = vsub.s32 0, %v1749
          %v1751 = vadd.s32 %v1746, 1
          %vm1752 = vcmp.gt.s32.totalorder %v1751, 0
          %v1753 = vsel %vm1752, %v1751, 0
          %v1754 = vshrl.u32 %v1753, 5
          %v1755 = vand.u32 %v1753, 31
          %v1756 = vsub.s32 32, %v1755
          %v1757 = vshrl.u32 683565275, %v1756
          %v1758 = vshll.u32 683565275, %v1755
          %v1759 = vshrl.u32 2475754826, %v1756
          %v1760 = vor.u32 %v1758, %v1759
          %v1761 = vshll.u32 2475754826, %v1755
          %v1762 = vshrl.u32 2131351028, %v1756
          %v1763 = vor.u32 %v1761, %v1762
          %v1764 = vshll.u32 2131351028, %v1755
          %v1765 = vshrl.u32 2102212464, %v1756
          %v1766 = vor.u32 %v1764, %v1765
          %v1767 = vshll.u32 2102212464, %v1755
          %v1768 = vshrl.u32 920167782, %v1756
          %v1769 = vor.u32 %v1767, %v1768
          %v1770 = vshll.u32 920167782, %v1755
          %v1771 = vshrl.u32 1326507024, %v1756
          %v1772 = vor.u32 %v1770, %v1771
          %vm1773 = vcmp.lt.s32.totalorder %v1754, 1
          %vm1774 = vcmp.lt.s32.totalorder %v1754, 2
          %vm1775 = vcmp.lt.s32.totalorder %v1754, 3
          %vm1776 = vcmp.lt.s32.totalorder %v1754, 4
          %v1777 = vsel %vm1773, %v1757, %v1760
          %v1778 = vsel %vm1776, %v1766, 2102212464
          %v1779 = vsel %vm1775, %v1763, %v1778
          %v1780 = vsel %vm1774, %v1777, %v1779
          %v1781 = vsel %vm1773, %v1760, %v1763
          %v1782 = vsel %vm1776, %v1769, 920167782
          %v1783 = vsel %vm1775, %v1766, %v1782
          %v1784 = vsel %vm1774, %v1781, %v1783
          %v1785 = vsel %vm1773, %v1763, %v1766
          %v1786 = vsel %vm1776, %v1772, 1326507024
          %v1787 = vsel %vm1775, %v1769, %v1786
          %v1788 = vsel %vm1774, %v1785, %v1787
          %v1789 = vshll.u32 %v1749, 8
          %v1790 = vand.u32 %v1789, 65535
          %v1791 = vshrl.u32 %v1789, 16
          %v1792 = vand.u32 %v1788, 65535
          %v1793 = vshrl.u32 %v1788, 16
          %v1794 = vmul.u32 %v1790, %v1792
          %v1795 = vmul.u32 %v1790, %v1793
          %v1796 = vmul.u32 %v1791, %v1792
          %v1797 = vmul.u32 %v1791, %v1793
          %v1798 = vshll.u32 %v1795, 16
          %v1799 = vshrl.u32 %v1795, 16
          %v1800 = vshll.u32 %v1796, 16
          %v1801 = vshrl.u32 %v1796, 16
          %vm1802 = vc.u32 %v1794, %v1798
          %v1803 = vsel %vm1802, 1, 0
          %v1804 = vadd.s32 %v1794, %v1798
          %v1805 = vadd.s32 %v1797, %v1803
          %vm1806 = vc.u32 %v1804, %v1800
          %v1807 = vsel %vm1806, 1, 0
          %v1808 = vadd.s32 %v1804, %v1800
          %v1809 = vadd.s32 %v1805, %v1807
          %v1810 = vadd.s32 %v1809, %v1799
          %v1811 = vadd.s32 %v1810, %v1801
          %v1812 = vand.u32 %v1789, 65535
          %v1813 = vshrl.u32 %v1789, 16
          %v1814 = vand.u32 %v1784, 65535
          %v1815 = vshrl.u32 %v1784, 16
          %v1816 = vmul.u32 %v1812, %v1814
          %v1817 = vmul.u32 %v1812, %v1815
          %v1818 = vmul.u32 %v1813, %v1814
          %v1819 = vmul.u32 %v1813, %v1815
          %v1820 = vshll.u32 %v1817, 16
          %v1821 = vshrl.u32 %v1817, 16
          %v1822 = vshll.u32 %v1818, 16
          %v1823 = vshrl.u32 %v1818, 16
          %vm1824 = vc.u32 %v1816, %v1820
          %v1825 = vsel %vm1824, 1, 0
          %v1826 = vadd.s32 %v1816, %v1820
          %v1827 = vadd.s32 %v1819, %v1825
          %vm1828 = vc.u32 %v1826, %v1822
          %v1829 = vsel %vm1828, 1, 0
          %v1830 = vadd.s32 %v1826, %v1822
          %v1831 = vadd.s32 %v1827, %v1829
          %v1832 = vadd.s32 %v1831, %v1821
          %v1833 = vadd.s32 %v1832, %v1823
          %v1834 = vmul.u32 %v1789, %v1780
          %v1835 = vadd.s32 %v1811, %v1830
          %vm1836 = vc.u32 %v1811, %v1830
          %v1837 = vadd.s32 %v1833, 1
          %v1838 = vsel %vm1836, %v1837, %v1833
          %v1839 = vadd.s32 %v1834, %v1838
          %v1840 = vadd.s32 %v1839, 536870912
          %v1841 = vshrl.u32 %v1840, 30
          %v1842 = vshll.u32 %v1841, 30
          %v1843 = vsub.s32 %v1839, %v1842
          %vm1844 = vcmp.lt.s32.totalorder %v1843, 0
          %v1845 = vsub.s32 0, %v1843
          %v1846 = vsel %vm1844, %v1845, %v1843
          %v1847 = vclz %v1846
          %v1848 = vsub.s32 %v1847, 2
          %vm1849 = vcmp.gt.s32.totalorder 0, %v1848
          %v1850 = vsel %vm1849, 0, %v1848
          %v1851 = vsub.s32 32, %v1850
          %v1852 = vshll.u32 %v1843, %v1850
          %v1853 = vshrl.u32 %v1835, %v1851
          %v1854 = vor.u32 %v1852, %v1853
          %v1855 = vsub.s32 4294967266, %v1850
          %v1856 = vadd.s32 %v1855, 127
          %v1857 = vshll.u32 %v1856, 23
          %v1858 = vor.u32 4788187, %v1857
          %v1859 = vand.u32 2147483647, %v1858
          %v1861 = vcvt.s32.f32 %v1854
          %v1862 = vmul.f32 %v1861, %v1859
          %v1863 = vxor.u32 %v1862, 2147483648
          %v1864 = vsel %vm1743, %v1863, %v1862
          %v1865 = vsub.s32 4, %v1841
          %v1866 = vsel %vm1743, %v1865, %v1841
          %v1867 = vsel %vm1742, %v807, %v1864
          %v1868 = vsel %vm1742, 0, %v1866
          %v1869 = vmul.f32 %v1867, %v1867
          %v1870 = vmul.f32 %v1869, -0.001358992
          %v1871 = vadd.f32 %v1870, 0.041655596
          %v1872 = vmul.f32 %v1869, %v1871
          %v1873 = vadd.f32 %v1872, -0.4999988
          %v1874 = vmul.f32 %v1869, %v1873
          %v1875 = vadd.f32 1.0, %v1874
          %v1876 = vmul.f32 %v1867, %v1867
          %v1877 = vmul.f32 %v1876, -0.00019511016
          %v1878 = vadd.f32 %v1877, 0.008332121
          %v1879 = vmul.f32 %v1876, %v1878
          %v1880 = vadd.f32 %v1879, -0.16666654
          %v1881 = vmul.f32 %v1876, %v1880
          %v1882 = vadd.f32 %v1881, 1.0
          %v1883 = vmul.f32 %v1882, %v1867
          %vm1884 = vweird.f32 %v807
          %v1885 = vand.u32 %v1868, 3
          %vm1886 = vcmp.lt.s32.totalorder %v1885, 2
          %vm1887 = vcmp.eq.s32.totalorder %v1885, 0
          %v1888 = vxor.u32 %v1883, 2147483648
          %v1889 = vsel %vm1887, %v1875, %v1888
          %vm1890 = vcmp.eq.s32.totalorder %v1885, 2
          %v1891 = vxor.u32 %v1875, 2147483648
          %v1892 = vsel %vm1890, %v1891, %v1883
          %v1893 = vsel %vm1886, %v1889, %v1892
          %v1894 = vsel %vm1884, nan, %v1893
          %v1895 = vand.u32 2147483647, %v808
          %vm1896 = vcmp.le.f32.partialorder %v1895, 0.7853982
          %vm1897 = vcmp.lt.s32.totalorder %v808, 0
          %v1898 = vand.u32 %v808, 2139095040
          %v1899 = vshrl.u32 %v1898, 23
          %v1900 = vsub.s32 %v1899, 127
          %v1901 = vand.u32 2147483647, %v808
          %v1902 = vand.u32 %v1901, 8388607
          %v1903 = vor.u32 %v1902, 8388608
          %v1904 = vsub.s32 0, %v1903
          %v1905 = vadd.s32 %v1900, 1
          %vm1906 = vcmp.gt.s32.totalorder %v1905, 0
          %v1907 = vsel %vm1906, %v1905, 0
          %v1908 = vshrl.u32 %v1907, 5
          %v1909 = vand.u32 %v1907, 31
          %v1910 = vsub.s32 32, %v1909
          %v1911 = vshrl.u32 683565275, %v1910
          %v1912 = vshll.u32 683565275, %v1909
          %v1913 = vshrl.u32 2475754826, %v1910
          %v1914 = vor.u32 %v1912, %v1913
          %v1915 = vshll.u32 2475754826, %v1909
          %v1916 = vshrl.u32 2131351028, %v1910
          %v1917 = vor.u32 %v1915, %v1916
          %v1918 = vshll.u32 2131351028, %v1909
          %v1919 = vshrl.u32 2102212464, %v1910
          %v1920 = vor.u32 %v1918, %v1919
          %v1921 = vshll.u32 2102212464, %v1909
          %v1922 = vshrl.u32 920167782, %v1910
          %v1923 = vor.u32 %v1921, %v1922
          %v1924 = vshll.u32 920167782, %v1909
          %v1925 = vshrl.u32 1326507024, %v1910
          %v1926 = vor.u32 %v1924, %v1925
          %vm1927 = vcmp.lt.s32.totalorder %v1908, 1
          %vm1928 = vcmp.lt.s32.totalorder %v1908, 2
          %vm1929 = vcmp.lt.s32.totalorder %v1908, 3
          %vm1930 = vcmp.lt.s32.totalorder %v1908, 4
          %v1931 = vsel %vm1927, %v1911, %v1914
          %v1932 = vsel %vm1930, %v1920, 2102212464
          %v1933 = vsel %vm1929, %v1917, %v1932
          %v1934 = vsel %vm1928, %v1931, %v1933
          %v1935 = vsel %vm1927, %v1914, %v1917
          %v1936 = vsel %vm1930, %v1923, 920167782
          %v1937 = vsel %vm1929, %v1920, %v1936
          %v1938 = vsel %vm1928, %v1935, %v1937
          %v1939 = vsel %vm1927, %v1917, %v1920
          %v1940 = vsel %vm1930, %v1926, 1326507024
          %v1941 = vsel %vm1929, %v1923, %v1940
          %v1942 = vsel %vm1928, %v1939, %v1941
          %v1943 = vshll.u32 %v1903, 8
          %v1944 = vand.u32 %v1943, 65535
          %v1945 = vshrl.u32 %v1943, 16
          %v1946 = vand.u32 %v1942, 65535
          %v1947 = vshrl.u32 %v1942, 16
          %v1948 = vmul.u32 %v1944, %v1946
          %v1949 = vmul.u32 %v1944, %v1947
          %v1950 = vmul.u32 %v1945, %v1946
          %v1951 = vmul.u32 %v1945, %v1947
          %v1952 = vshll.u32 %v1949, 16
          %v1953 = vshrl.u32 %v1949, 16
          %v1954 = vshll.u32 %v1950, 16
          %v1955 = vshrl.u32 %v1950, 16
          %vm1956 = vc.u32 %v1948, %v1952
          %v1957 = vsel %vm1956, 1, 0
          %v1958 = vadd.s32 %v1948, %v1952
          %v1959 = vadd.s32 %v1951, %v1957
          %vm1960 = vc.u32 %v1958, %v1954
          %v1961 = vsel %vm1960, 1, 0
          %v1962 = vadd.s32 %v1958, %v1954
          %v1963 = vadd.s32 %v1959, %v1961
          %v1964 = vadd.s32 %v1963, %v1953
          %v1965 = vadd.s32 %v1964, %v1955
          %v1966 = vand.u32 %v1943, 65535
          %v1967 = vshrl.u32 %v1943, 16
          %v1968 = vand.u32 %v1938, 65535
          %v1969 = vshrl.u32 %v1938, 16
          %v1970 = vmul.u32 %v1966, %v1968
          %v1971 = vmul.u32 %v1966, %v1969
          %v1972 = vmul.u32 %v1967, %v1968
          %v1973 = vmul.u32 %v1967, %v1969
          %v1974 = vshll.u32 %v1971, 16
          %v1975 = vshrl.u32 %v1971, 16
          %v1976 = vshll.u32 %v1972, 16
          %v1977 = vshrl.u32 %v1972, 16
          %vm1978 = vc.u32 %v1970, %v1974
          %v1979 = vsel %vm1978, 1, 0
          %v1980 = vadd.s32 %v1970, %v1974
          %v1981 = vadd.s32 %v1973, %v1979
          %vm1982 = vc.u32 %v1980, %v1976
          %v1983 = vsel %vm1982, 1, 0
          %v1984 = vadd.s32 %v1980, %v1976
          %v1985 = vadd.s32 %v1981, %v1983
          %v1986 = vadd.s32 %v1985, %v1975
          %v1987 = vadd.s32 %v1986, %v1977
          %v1988 = vmul.u32 %v1943, %v1934
          %v1989 = vadd.s32 %v1965, %v1984
          %vm1990 = vc.u32 %v1965, %v1984
          %v1991 = vadd.s32 %v1987, 1
          %v1992 = vsel %vm1990, %v1991, %v1987
          %v1993 = vadd.s32 %v1988, %v1992
          %v1994 = vadd.s32 %v1993, 536870912
          %v1995 = vshrl.u32 %v1994, 30
          %v1996 = vshll.u32 %v1995, 30
          %v1997 = vsub.s32 %v1993, %v1996
          %vm1998 = vcmp.lt.s32.totalorder %v1997, 0
          %v1999 = vsub.s32 0, %v1997
          %v2000 = vsel %vm1998, %v1999, %v1997
          %v2001 = vclz %v2000
          %v2002 = vsub.s32 %v2001, 2
          %vm2003 = vcmp.gt.s32.totalorder 0, %v2002
          %v2004 = vsel %vm2003, 0, %v2002
          %v2005 = vsub.s32 32, %v2004
          %v2006 = vshll.u32 %v1997, %v2004
          %v2007 = vshrl.u32 %v1989, %v2005
          %v2008 = vor.u32 %v2006, %v2007
          %v2009 = vsub.s32 4294967266, %v2004
          %v2010 = vadd.s32 %v2009, 127
          %v2011 = vshll.u32 %v2010, 23
          %v2012 = vor.u32 4788187, %v2011
          %v2013 = vand.u32 2147483647, %v2012
          %v2015 = vcvt.s32.f32 %v2008
          %v2016 = vmul.f32 %v2015, %v2013
          %v2017 = vxor.u32 %v2016, 2147483648
          %v2018 = vsel %vm1897, %v2017, %v2016
          %v2019 = vsub.s32 4, %v1995
          %v2020 = vsel %vm1897, %v2019, %v1995
          %v2021 = vsel %vm1896, %v808, %v2018
          %v2022 = vsel %vm1896, 0, %v2020
          %v2023 = vmul.f32 %v2021, %v2021
          %v2024 = vmul.f32 %v2023, -0.001358992
          %v2025 = vadd.f32 %v2024, 0.041655596
          %v2026 = vmul.f32 %v2023, %v2025
          %v2027 = vadd.f32 %v2026, -0.4999988
          %v2028 = vmul.f32 %v2023, %v2027
          %v2029 = vadd.f32 1.0, %v2028
          %v2030 = vmul.f32 %v2021, %v2021
          %v2031 = vmul.f32 %v2030, -0.00019511016
          %v2032 = vadd.f32 %v2031, 0.008332121
          %v2033 = vmul.f32 %v2030, %v2032
          %v2034 = vadd.f32 %v2033, -0.16666654
          %v2035 = vmul.f32 %v2030, %v2034
          %v2036 = vadd.f32 %v2035, 1.0
          %v2037 = vmul.f32 %v2036, %v2021
          %vm2038 = vweird.f32 %v808
          %v2039 = vand.u32 %v2022, 3
          %vm2040 = vcmp.lt.s32.totalorder %v2039, 2
          %vm2041 = vcmp.eq.s32.totalorder %v2039, 0
          %v2042 = vxor.u32 %v2037, 2147483648
          %v2043 = vsel %vm2041, %v2029, %v2042
          %vm2044 = vcmp.eq.s32.totalorder %v2039, 2
          %v2045 = vxor.u32 %v2029, 2147483648
          %v2046 = vsel %vm2044, %v2045, %v2037
          %v2047 = vsel %vm2040, %v2043, %v2046
          %v2048 = vsel %vm2038, nan, %v2047
          %v2049 = vand.u32 2147483647, %v809
          %vm2050 = vcmp.le.f32.partialorder %v2049, 0.7853982
          %vm2051 = vcmp.lt.s32.totalorder %v809, 0
          %v2052 = vand.u32 %v809, 2139095040
          %v2053 = vshrl.u32 %v2052, 23
          %v2054 = vsub.s32 %v2053, 127
          %v2055 = vand.u32 2147483647, %v809
          %v2056 = vand.u32 %v2055, 8388607
          %v2057 = vor.u32 %v2056, 8388608
          %v2058 = vsub.s32 0, %v2057
          %v2059 = vadd.s32 %v2054, 1
          %vm2060 = vcmp.gt.s32.totalorder %v2059, 0
          %v2061 = vsel %vm2060, %v2059, 0
          %v2062 = vshrl.u32 %v2061, 5
          %v2063 = vand.u32 %v2061, 31
          %v2064 = vsub.s32 32, %v2063
          %v2065 = vshrl.u32 683565275, %v2064
          %v2066 = vshll.u32 683565275, %v2063
          %v2067 = vshrl.u32 2475754826, %v2064
          %v2068 = vor.u32 %v2066, %v2067
          %v2069 = vshll.u32 2475754826, %v2063
          %v2070 = vshrl.u32 2131351028, %v2064
          %v2071 = vor.u32 %v2069, %v2070
          %v2072 = vshll.u32 2131351028, %v2063
          %v2073 = vshrl.u32 2102212464, %v2064
          %v2074 = vor.u32 %v2072, %v2073
          %v2075 = vshll.u32 2102212464, %v2063
          %v2076 = vshrl.u32 920167782, %v2064
          %v2077 = vor.u32 %v2075, %v2076
          %v2078 = vshll.u32 920167782, %v2063
          %v2079 = vshrl.u32 1326507024, %v2064
          %v2080 = vor.u32 %v2078, %v2079
          %vm2081 = vcmp.lt.s32.totalorder %v2062, 1
          %vm2082 = vcmp.lt.s32.totalorder %v2062, 2
          %vm2083 = vcmp.lt.s32.totalorder %v2062, 3
          %vm2084 = vcmp.lt.s32.totalorder %v2062, 4
          %v2085 = vsel %vm2081, %v2065, %v2068
          %v2086 = vsel %vm2084, %v2074, 2102212464
          %v2087 = vsel %vm2083, %v2071, %v2086
          %v2088 = vsel %vm2082, %v2085, %v2087
          %v2089 = vsel %vm2081, %v2068, %v2071
          %v2090 = vsel %vm2084, %v2077, 920167782
          %v2091 = vsel %vm2083, %v2074, %v2090
          %v2092 = vsel %vm2082, %v2089, %v2091
          %v2093 = vsel %vm2081, %v2071, %v2074
          %v2094 = vsel %vm2084, %v2080, 1326507024
          %v2095 = vsel %vm2083, %v2077, %v2094
          %v2096 = vsel %vm2082, %v2093, %v2095
          %v2097 = vshll.u32 %v2057, 8
          %v2098 = vand.u32 %v2097, 65535
          %v2099 = vshrl.u32 %v2097, 16
          %v2100 = vand.u32 %v2096, 65535
          %v2101 = vshrl.u32 %v2096, 16
          %v2102 = vmul.u32 %v2098, %v2100
          %v2103 = vmul.u32 %v2098, %v2101
          %v2104 = vmul.u32 %v2099, %v2100
          %v2105 = vmul.u32 %v2099, %v2101
          %v2106 = vshll.u32 %v2103, 16
          %v2107 = vshrl.u32 %v2103, 16
          %v2108 = vshll.u32 %v2104, 16
          %v2109 = vshrl.u32 %v2104, 16
          %vm2110 = vc.u32 %v2102, %v2106
          %v2111 = vsel %vm2110, 1, 0
          %v2112 = vadd.s32 %v2102, %v2106
          %v2113 = vadd.s32 %v2105, %v2111
          %vm2114 = vc.u32 %v2112, %v2108
          %v2115 = vsel %vm2114, 1, 0
          %v2116 = vadd.s32 %v2112, %v2108
          %v2117 = vadd.s32 %v2113, %v2115
          %v2118 = vadd.s32 %v2117, %v2107
          %v2119 = vadd.s32 %v2118, %v2109
          %v2120 = vand.u32 %v2097, 65535
          %v2121 = vshrl.u32 %v2097, 16
          %v2122 = vand.u32 %v2092, 65535
          %v2123 = vshrl.u32 %v2092, 16
          %v2124 = vmul.u32 %v2120, %v2122
          %v2125 = vmul.u32 %v2120, %v2123
          %v2126 = vmul.u32 %v2121, %v2122
          %v2127 = vmul.u32 %v2121, %v2123
          %v2128 = vshll.u32 %v2125, 16
          %v2129 = vshrl.u32 %v2125, 16
          %v2130 = vshll.u32 %v2126, 16
          %v2131 = vshrl.u32 %v2126, 16
          %vm2132 = vc.u32 %v2124, %v2128
          %v2133 = vsel %vm2132, 1, 0
          %v2134 = vadd.s32 %v2124, %v2128
          %v2135 = vadd.s32 %v2127, %v2133
          %vm2136 = vc.u32 %v2134, %v2130
          %v2137 = vsel %vm2136, 1, 0
          %v2138 = vadd.s32 %v2134, %v2130
          %v2139 = vadd.s32 %v2135, %v2137
          %v2140 = vadd.s32 %v2139, %v2129
          %v2141 = vadd.s32 %v2140, %v2131
          %v2142 = vmul.u32 %v2097, %v2088
          %v2143 = vadd.s32 %v2119, %v2138
          %vm2144 = vc.u32 %v2119, %v2138
          %v2145 = vadd.s32 %v2141, 1
          %v2146 = vsel %vm2144, %v2145, %v2141
          %v2147 = vadd.s32 %v2142, %v2146
          %v2148 = vadd.s32 %v2147, 536870912
          %v2149 = vshrl.u32 %v2148, 30
          %v2150 = vshll.u32 %v2149, 30
          %v2151 = vsub.s32 %v2147, %v2150
          %vm2152 = vcmp.lt.s32.totalorder %v2151, 0
          %v2153 = vsub.s32 0, %v2151
          %v2154 = vsel %vm2152, %v2153, %v2151
          %v2155 = vclz %v2154
          %v2156 = vsub.s32 %v2155, 2
          %vm2157 = vcmp.gt.s32.totalorder 0, %v2156
          %v2158 = vsel %vm2157, 0, %v2156
          %v2159 = vsub.s32 32, %v2158
          %v2160 = vshll.u32 %v2151, %v2158
          %v2161 = vshrl.u32 %v2143, %v2159
          %v2162 = vor.u32 %v2160, %v2161
          %v2163 = vsub.s32 4294967266, %v2158
          %v2164 = vadd.s32 %v2163, 127
          %v2165 = vshll.u32 %v2164, 23
          %v2166 = vor.u32 4788187, %v2165
          %v2167 = vand.u32 2147483647, %v2166
          %v2169 = vcvt.s32.f32 %v2162
          %v2170 = vmul.f32 %v2169, %v2167
          %v2171 = vxor.u32 %v2170, 2147483648
          %v2172 = vsel %vm2051, %v2171, %v2170
          %v2173 = vsub.s32 4, %v2149
          %v2174 = vsel %vm2051, %v2173, %v2149
          %v2175 = vsel %vm2050, %v809, %v2172
          %v2176 = vsel %vm2050, 0, %v2174
          %v2177 = vmul.f32 %v2175, %v2175
          %v2178 = vmul.f32 %v2177, -0.001358992
          %v2179 = vadd.f32 %v2178, 0.041655596
          %v2180 = vmul.f32 %v2177, %v2179
          %v2181 = vadd.f32 %v2180, -0.4999988
          %v2182 = vmul.f32 %v2177, %v2181
          %v2183 = vadd.f32 1.0, %v2182
          %v2184 = vmul.f32 %v2175, %v2175
          %v2185 = vmul.f32 %v2184, -0.00019511016
          %v2186 = vadd.f32 %v2185, 0.008332121
          %v2187 = vmul.f32 %v2184, %v2186
          %v2188 = vadd.f32 %v2187, -0.16666654
          %v2189 = vmul.f32 %v2184, %v2188
          %v2190 = vadd.f32 %v2189, 1.0
          %v2191 = vmul.f32 %v2190, %v2175
          %vm2192 = vweird.f32 %v809
          %v2193 = vand.u32 %v2176, 3
          %vm2194 = vcmp.lt.s32.totalorder %v2193, 2
          %vm2195 = vcmp.eq.s32.totalorder %v2193, 0
          %v2196 = vxor.u32 %v2191, 2147483648
          %v2197 = vsel %vm2195, %v2183, %v2196
          %vm2198 = vcmp.eq.s32.totalorder %v2193, 2
          %v2199 = vxor.u32 %v2183, 2147483648
          %v2200 = vsel %vm2198, %v2199, %v2191
          %v2201 = vsel %vm2194, %v2197, %v2200
          %v2202 = vsel %vm2192, nan, %v2201
          %v2203 = vand.u32 2147483647, %v810
          %vm2204 = vcmp.le.f32.partialorder %v2203, 0.7853982
          %vm2205 = vcmp.lt.s32.totalorder %v810, 0
          %v2206 = vand.u32 %v810, 2139095040
          %v2207 = vshrl.u32 %v2206, 23
          %v2208 = vsub.s32 %v2207, 127
          %v2209 = vand.u32 2147483647, %v810
          %v2210 = vand.u32 %v2209, 8388607
          %v2211 = vor.u32 %v2210, 8388608
          %v2212 = vsub.s32 0, %v2211
          %v2213 = vadd.s32 %v2208, 1
          %vm2214 = vcmp.gt.s32.totalorder %v2213, 0
          %v2215 = vsel %vm2214, %v2213, 0
          %v2216 = vshrl.u32 %v2215, 5
          %v2217 = vand.u32 %v2215, 31
          %v2218 = vsub.s32 32, %v2217
          %v2219 = vshrl.u32 683565275, %v2218
          %v2220 = vshll.u32 683565275, %v2217
          %v2221 = vshrl.u32 2475754826, %v2218
          %v2222 = vor.u32 %v2220, %v2221
          %v2223 = vshll.u32 2475754826, %v2217
          %v2224 = vshrl.u32 2131351028, %v2218
          %v2225 = vor.u32 %v2223, %v2224
          %v2226 = vshll.u32 2131351028, %v2217
          %v2227 = vshrl.u32 2102212464, %v2218
          %v2228 = vor.u32 %v2226, %v2227
          %v2229 = vshll.u32 2102212464, %v2217
          %v2230 = vshrl.u32 920167782, %v2218
          %v2231 = vor.u32 %v2229, %v2230
          %v2232 = vshll.u32 920167782, %v2217
          %v2233 = vshrl.u32 1326507024, %v2218
          %v2234 = vor.u32 %v2232, %v2233
          %vm2235 = vcmp.lt.s32.totalorder %v2216, 1
          %vm2236 = vcmp.lt.s32.totalorder %v2216, 2
          %vm2237 = vcmp.lt.s32.totalorder %v2216, 3
          %vm2238 = vcmp.lt.s32.totalorder %v2216, 4
          %v2239 = vsel %vm2235, %v2219, %v2222
          %v2240 = vsel %vm2238, %v2228, 2102212464
          %v2241 = vsel %vm2237, %v2225, %v2240
          %v2242 = vsel %vm2236, %v2239, %v2241
          %v2243 = vsel %vm2235, %v2222, %v2225
          %v2244 = vsel %vm2238, %v2231, 920167782
          %v2245 = vsel %vm2237, %v2228, %v2244
          %v2246 = vsel %vm2236, %v2243, %v2245
          %v2247 = vsel %vm2235, %v2225, %v2228
          %v2248 = vsel %vm2238, %v2234, 1326507024
          %v2249 = vsel %vm2237, %v2231, %v2248
          %v2250 = vsel %vm2236, %v2247, %v2249
          %v2251 = vshll.u32 %v2211, 8
          %v2252 = vand.u32 %v2251, 65535
          %v2253 = vshrl.u32 %v2251, 16
          %v2254 = vand.u32 %v2250, 65535
          %v2255 = vshrl.u32 %v2250, 16
          %v2256 = vmul.u32 %v2252, %v2254
          %v2257 = vmul.u32 %v2252, %v2255
          %v2258 = vmul.u32 %v2253, %v2254
          %v2259 = vmul.u32 %v2253, %v2255
          %v2260 = vshll.u32 %v2257, 16
          %v2261 = vshrl.u32 %v2257, 16
          %v2262 = vshll.u32 %v2258, 16
          %v2263 = vshrl.u32 %v2258, 16
          %vm2264 = vc.u32 %v2256, %v2260
          %v2265 = vsel %vm2264, 1, 0
          %v2266 = vadd.s32 %v2256, %v2260
          %v2267 = vadd.s32 %v2259, %v2265
          %vm2268 = vc.u32 %v2266, %v2262
          %v2269 = vsel %vm2268, 1, 0
          %v2270 = vadd.s32 %v2266, %v2262
          %v2271 = vadd.s32 %v2267, %v2269
          %v2272 = vadd.s32 %v2271, %v2261
          %v2273 = vadd.s32 %v2272, %v2263
          %v2274 = vand.u32 %v2251, 65535
          %v2275 = vshrl.u32 %v2251, 16
          %v2276 = vand.u32 %v2246, 65535
          %v2277 = vshrl.u32 %v2246, 16
          %v2278 = vmul.u32 %v2274, %v2276
          %v2279 = vmul.u32 %v2274, %v2277
          %v2280 = vmul.u32 %v2275, %v2276
          %v2281 = vmul.u32 %v2275, %v2277
          %v2282 = vshll.u32 %v2279, 16
          %v2283 = vshrl.u32 %v2279, 16
          %v2284 = vshll.u32 %v2280, 16
          %v2285 = vshrl.u32 %v2280, 16
          %vm2286 = vc.u32 %v2278, %v2282
          %v2287 = vsel %vm2286, 1, 0
          %v2288 = vadd.s32 %v2278, %v2282
          %v2289 = vadd.s32 %v2281, %v2287
          %vm2290 = vc.u32 %v2288, %v2284
          %v2291 = vsel %vm2290, 1, 0
          %v2292 = vadd.s32 %v2288, %v2284
          %v2293 = vadd.s32 %v2289, %v2291
          %v2294 = vadd.s32 %v2293, %v2283
          %v2295 = vadd.s32 %v2294, %v2285
          %v2296 = vmul.u32 %v2251, %v2242
          %v2297 = vadd.s32 %v2273, %v2292
          %vm2298 = vc.u32 %v2273, %v2292
          %v2299 = vadd.s32 %v2295, 1
          %v2300 = vsel %vm2298, %v2299, %v2295
          %v2301 = vadd.s32 %v2296, %v2300
          %v2302 = vadd.s32 %v2301, 536870912
          %v2303 = vshrl.u32 %v2302, 30
          %v2304 = vshll.u32 %v2303, 30
          %v2305 = vsub.s32 %v2301, %v2304
          %vm2306 = vcmp.lt.s32.totalorder %v2305, 0
          %v2307 = vsub.s32 0, %v2305
          %v2308 = vsel %vm2306, %v2307, %v2305
          %v2309 = vclz %v2308
          %v2310 = vsub.s32 %v2309, 2
          %vm2311 = vcmp.gt.s32.totalorder 0, %v2310
          %v2312 = vsel %vm2311, 0, %v2310
          %v2313 = vsub.s32 32, %v2312
          %v2314 = vshll.u32 %v2305, %v2312
          %v2315 = vshrl.u32 %v2297, %v2313
          %v2316 = vor.u32 %v2314, %v2315
          %v2317 = vsub.s32 4294967266, %v2312
          %v2318 = vadd.s32 %v2317, 127
          %v2319 = vshll.u32 %v2318, 23
          %v2320 = vor.u32 4788187, %v2319
          %v2321 = vand.u32 2147483647, %v2320
          %v2323 = vcvt.s32.f32 %v2316
          %v2324 = vmul.f32 %v2323, %v2321
          %v2325 = vxor.u32 %v2324, 2147483648
          %v2326 = vsel %vm2205, %v2325, %v2324
          %v2327 = vsub.s32 4, %v2303
          %v2328 = vsel %vm2205, %v2327, %v2303
          %v2329 = vsel %vm2204, %v810, %v2326
          %v2330 = vsel %vm2204, 0, %v2328
          %v2331 = vmul.f32 %v2329, %v2329
          %v2332 = vmul.f32 %v2331, -0.001358992
          %v2333 = vadd.f32 %v2332, 0.041655596
          %v2334 = vmul.f32 %v2331, %v2333
          %v2335 = vadd.f32 %v2334, -0.4999988
          %v2336 = vmul.f32 %v2331, %v2335
          %v2337 = vadd.f32 1.0, %v2336
          %v2338 = vmul.f32 %v2329, %v2329
          %v2339 = vmul.f32 %v2338, -0.00019511016
          %v2340 = vadd.f32 %v2339, 0.008332121
          %v2341 = vmul.f32 %v2338, %v2340
          %v2342 = vadd.f32 %v2341, -0.16666654
          %v2343 = vmul.f32 %v2338, %v2342
          %v2344 = vadd.f32 %v2343, 1.0
          %v2345 = vmul.f32 %v2344, %v2329
          %vm2346 = vweird.f32 %v810
          %v2347 = vand.u32 %v2330, 3
          %vm2348 = vcmp.lt.s32.totalorder %v2347, 2
          %vm2349 = vcmp.eq.s32.totalorder %v2347, 0
          %v2350 = vxor.u32 %v2345, 2147483648
          %v2351 = vsel %vm2349, %v2337, %v2350
          %vm2352 = vcmp.eq.s32.totalorder %v2347, 2
          %v2353 = vxor.u32 %v2337, 2147483648
          %v2354 = vsel %vm2352, %v2353, %v2345
          %v2355 = vsel %vm2348, %v2351, %v2354
          %v2356 = vsel %vm2346, nan, %v2355
          %v2357 = vand.u32 2147483647, %v811
          %vm2358 = vcmp.le.f32.partialorder %v2357, 0.7853982
          %vm2359 = vcmp.lt.s32.totalorder %v811, 0
          %v2360 = vand.u32 %v811, 2139095040
          %v2361 = vshrl.u32 %v2360, 23
          %v2362 = vsub.s32 %v2361, 127
          %v2363 = vand.u32 2147483647, %v811
          %v2364 = vand.u32 %v2363, 8388607
          %v2365 = vor.u32 %v2364, 8388608
          %v2366 = vsub.s32 0, %v2365
          %v2367 = vadd.s32 %v2362, 1
          %vm2368 = vcmp.gt.s32.totalorder %v2367, 0
          %v2369 = vsel %vm2368, %v2367, 0
          %v2370 = vshrl.u32 %v2369, 5
          %v2371 = vand.u32 %v2369, 31
          %v2372 = vsub.s32 32, %v2371
          %v2373 = vshrl.u32 683565275, %v2372
          %v2374 = vshll.u32 683565275, %v2371
          %v2375 = vshrl.u32 2475754826, %v2372
          %v2376 = vor.u32 %v2374, %v2375
          %v2377 = vshll.u32 2475754826, %v2371
          %v2378 = vshrl.u32 2131351028, %v2372
          %v2379 = vor.u32 %v2377, %v2378
          %v2380 = vshll.u32 2131351028, %v2371
          %v2381 = vshrl.u32 2102212464, %v2372
          %v2382 = vor.u32 %v2380, %v2381
          %v2383 = vshll.u32 2102212464, %v2371
          %v2384 = vshrl.u32 920167782, %v2372
          %v2385 = vor.u32 %v2383, %v2384
          %v2386 = vshll.u32 920167782, %v2371
          %v2387 = vshrl.u32 1326507024, %v2372
          %v2388 = vor.u32 %v2386, %v2387
          %vm2389 = vcmp.lt.s32.totalorder %v2370, 1
          %vm2390 = vcmp.lt.s32.totalorder %v2370, 2
          %vm2391 = vcmp.lt.s32.totalorder %v2370, 3
          %vm2392 = vcmp.lt.s32.totalorder %v2370, 4
          %v2393 = vsel %vm2389, %v2373, %v2376
          %v2394 = vsel %vm2392, %v2382, 2102212464
          %v2395 = vsel %vm2391, %v2379, %v2394
          %v2396 = vsel %vm2390, %v2393, %v2395
          %v2397 = vsel %vm2389, %v2376, %v2379
          %v2398 = vsel %vm2392, %v2385, 920167782
          %v2399 = vsel %vm2391, %v2382, %v2398
          %v2400 = vsel %vm2390, %v2397, %v2399
          %v2401 = vsel %vm2389, %v2379, %v2382
          %v2402 = vsel %vm2392, %v2388, 1326507024
          %v2403 = vsel %vm2391, %v2385, %v2402
          %v2404 = vsel %vm2390, %v2401, %v2403
          %v2405 = vshll.u32 %v2365, 8
          %v2406 = vand.u32 %v2405, 65535
          %v2407 = vshrl.u32 %v2405, 16
          %v2408 = vand.u32 %v2404, 65535
          %v2409 = vshrl.u32 %v2404, 16
          %v2410 = vmul.u32 %v2406, %v2408
          %v2411 = vmul.u32 %v2406, %v2409
          %v2412 = vmul.u32 %v2407, %v2408
          %v2413 = vmul.u32 %v2407, %v2409
          %v2414 = vshll.u32 %v2411, 16
          %v2415 = vshrl.u32 %v2411, 16
          %v2416 = vshll.u32 %v2412, 16
          %v2417 = vshrl.u32 %v2412, 16
          %vm2418 = vc.u32 %v2410, %v2414
          %v2419 = vsel %vm2418, 1, 0
          %v2420 = vadd.s32 %v2410, %v2414
          %v2421 = vadd.s32 %v2413, %v2419
          %vm2422 = vc.u32 %v2420, %v2416
          %v2423 = vsel %vm2422, 1, 0
          %v2424 = vadd.s32 %v2420, %v2416
          %v2425 = vadd.s32 %v2421, %v2423
          %v2426 = vadd.s32 %v2425, %v2415
          %v2427 = vadd.s32 %v2426, %v2417
          %v2428 = vand.u32 %v2405, 65535
          %v2429 = vshrl.u32 %v2405, 16
          %v2430 = vand.u32 %v2400, 65535
          %v2431 = vshrl.u32 %v2400, 16
          %v2432 = vmul.u32 %v2428, %v2430
          %v2433 = vmul.u32 %v2428, %v2431
          %v2434 = vmul.u32 %v2429, %v2430
          %v2435 = vmul.u32 %v2429, %v2431
          %v2436 = vshll.u32 %v2433, 16
          %v2437 = vshrl.u32 %v2433, 16
          %v2438 = vshll.u32 %v2434, 16
          %v2439 = vshrl.u32 %v2434, 16
          %vm2440 = vc.u32 %v2432, %v2436
          %v2441 = vsel %vm2440, 1, 0
          %v2442 = vadd.s32 %v2432, %v2436
          %v2443 = vadd.s32 %v2435, %v2441
          %vm2444 = vc.u32 %v2442, %v2438
          %v2445 = vsel %vm2444, 1, 0
          %v2446 = vadd.s32 %v2442, %v2438
          %v2447 = vadd.s32 %v2443, %v2445
          %v2448 = vadd.s32 %v2447, %v2437
          %v2449 = vadd.s32 %v2448, %v2439
          %v2450 = vmul.u32 %v2405, %v2396
          %v2451 = vadd.s32 %v2427, %v2446
          %vm2452 = vc.u32 %v2427, %v2446
          %v2453 = vadd.s32 %v2449, 1
          %v2454 = vsel %vm2452, %v2453, %v2449
          %v2455 = vadd.s32 %v2450, %v2454
          %v2456 = vadd.s32 %v2455, 536870912
          %v2457 = vshrl.u32 %v2456, 30
          %v2458 = vshll.u32 %v2457, 30
          %v2459 = vsub.s32 %v2455, %v2458
          %vm2460 = vcmp.lt.s32.totalorder %v2459, 0
          %v2461 = vsub.s32 0, %v2459
          %v2462 = vsel %vm2460, %v2461, %v2459
          %v2463 = vclz %v2462
          %v2464 = vsub.s32 %v2463, 2
          %vm2465 = vcmp.gt.s32.totalorder 0, %v2464
          %v2466 = vsel %vm2465, 0, %v2464
          %v2467 = vsub.s32 32, %v2466
          %v2468 = vshll.u32 %v2459, %v2466
          %v2469 = vshrl.u32 %v2451, %v2467
          %v2470 = vor.u32 %v2468, %v2469
          %v2471 = vsub.s32 4294967266, %v2466
          %v2472 = vadd.s32 %v2471, 127
          %v2473 = vshll.u32 %v2472, 23
          %v2474 = vor.u32 4788187, %v2473
          %v2475 = vand.u32 2147483647, %v2474
          %v2477 = vcvt.s32.f32 %v2470
          %v2478 = vmul.f32 %v2477, %v2475
          %v2479 = vxor.u32 %v2478, 2147483648
          %v2480 = vsel %vm2359, %v2479, %v2478
          %v2481 = vsub.s32 4, %v2457
          %v2482 = vsel %vm2359, %v2481, %v2457
          %v2483 = vsel %vm2358, %v811, %v2480
          %v2484 = vsel %vm2358, 0, %v2482
          %v2485 = vmul.f32 %v2483, %v2483
          %v2486 = vmul.f32 %v2485, -0.001358992
          %v2487 = vadd.f32 %v2486, 0.041655596
          %v2488 = vmul.f32 %v2485, %v2487
          %v2489 = vadd.f32 %v2488, -0.4999988
          %v2490 = vmul.f32 %v2485, %v2489
          %v2491 = vadd.f32 1.0, %v2490
          %v2492 = vmul.f32 %v2483, %v2483
          %v2493 = vmul.f32 %v2492, -0.00019511016
          %v2494 = vadd.f32 %v2493, 0.008332121
          %v2495 = vmul.f32 %v2492, %v2494
          %v2496 = vadd.f32 %v2495, -0.16666654
          %v2497 = vmul.f32 %v2492, %v2496
          %v2498 = vadd.f32 %v2497, 1.0
          %v2499 = vmul.f32 %v2498, %v2483
          %vm2500 = vweird.f32 %v811
          %v2501 = vand.u32 %v2484, 3
          %vm2502 = vcmp.lt.s32.totalorder %v2501, 2
          %vm2503 = vcmp.eq.s32.totalorder %v2501, 0
          %v2504 = vxor.u32 %v2499, 2147483648
          %v2505 = vsel %vm2503, %v2491, %v2504
          %vm2506 = vcmp.eq.s32.totalorder %v2501, 2
          %v2507 = vxor.u32 %v2491, 2147483648
          %v2508 = vsel %vm2506, %v2507, %v2499
          %v2509 = vsel %vm2502, %v2505, %v2508
          %v2510 = vsel %vm2500, nan, %v2509
          %v2511 = vand.u32 2147483647, %v812
          %vm2512 = vcmp.le.f32.partialorder %v2511, 0.7853982
          %vm2513 = vcmp.lt.s32.totalorder %v812, 0
          %v2514 = vand.u32 %v812, 2139095040
          %v2515 = vshrl.u32 %v2514, 23
          %v2516 = vsub.s32 %v2515, 127
          %v2517 = vand.u32 2147483647, %v812
          %v2518 = vand.u32 %v2517, 8388607
          %v2519 = vor.u32 %v2518, 8388608
          %v2520 = vsub.s32 0, %v2519
          %v2521 = vadd.s32 %v2516, 1
          %vm2522 = vcmp.gt.s32.totalorder %v2521, 0
          %v2523 = vsel %vm2522, %v2521, 0
          %v2524 = vshrl.u32 %v2523, 5
          %v2525 = vand.u32 %v2523, 31
          %v2526 = vsub.s32 32, %v2525
          %v2527 = vshrl.u32 683565275, %v2526
          %v2528 = vshll.u32 683565275, %v2525
          %v2529 = vshrl.u32 2475754826, %v2526
          %v2530 = vor.u32 %v2528, %v2529
          %v2531 = vshll.u32 2475754826, %v2525
          %v2532 = vshrl.u32 2131351028, %v2526
          %v2533 = vor.u32 %v2531, %v2532
          %v2534 = vshll.u32 2131351028, %v2525
          %v2535 = vshrl.u32 2102212464, %v2526
          %v2536 = vor.u32 %v2534, %v2535
          %v2537 = vshll.u32 2102212464, %v2525
          %v2538 = vshrl.u32 920167782, %v2526
          %v2539 = vor.u32 %v2537, %v2538
          %v2540 = vshll.u32 920167782, %v2525
          %v2541 = vshrl.u32 1326507024, %v2526
          %v2542 = vor.u32 %v2540, %v2541
          %vm2543 = vcmp.lt.s32.totalorder %v2524, 1
          %vm2544 = vcmp.lt.s32.totalorder %v2524, 2
          %vm2545 = vcmp.lt.s32.totalorder %v2524, 3
          %vm2546 = vcmp.lt.s32.totalorder %v2524, 4
          %v2547 = vsel %vm2543, %v2527, %v2530
          %v2548 = vsel %vm2546, %v2536, 2102212464
          %v2549 = vsel %vm2545, %v2533, %v2548
          %v2550 = vsel %vm2544, %v2547, %v2549
          %v2551 = vsel %vm2543, %v2530, %v2533
          %v2552 = vsel %vm2546, %v2539, 920167782
          %v2553 = vsel %vm2545, %v2536, %v2552
          %v2554 = vsel %vm2544, %v2551, %v2553
          %v2555 = vsel %vm2543, %v2533, %v2536
          %v2556 = vsel %vm2546, %v2542, 1326507024
          %v2557 = vsel %vm2545, %v2539, %v2556
          %v2558 = vsel %vm2544, %v2555, %v2557
          %v2559 = vshll.u32 %v2519, 8
          %v2560 = vand.u32 %v2559, 65535
          %v2561 = vshrl.u32 %v2559, 16
          %v2562 = vand.u32 %v2558, 65535
          %v2563 = vshrl.u32 %v2558, 16
          %v2564 = vmul.u32 %v2560, %v2562
          %v2565 = vmul.u32 %v2560, %v2563
          %v2566 = vmul.u32 %v2561, %v2562
          %v2567 = vmul.u32 %v2561, %v2563
          %v2568 = vshll.u32 %v2565, 16
          %v2569 = vshrl.u32 %v2565, 16
          %v2570 = vshll.u32 %v2566, 16
          %v2571 = vshrl.u32 %v2566, 16
          %vm2572 = vc.u32 %v2564, %v2568
          %v2573 = vsel %vm2572, 1, 0
          %v2574 = vadd.s32 %v2564, %v2568
          %v2575 = vadd.s32 %v2567, %v2573
          %vm2576 = vc.u32 %v2574, %v2570
          %v2577 = vsel %vm2576, 1, 0
          %v2578 = vadd.s32 %v2574, %v2570
          %v2579 = vadd.s32 %v2575, %v2577
          %v2580 = vadd.s32 %v2579, %v2569
          %v2581 = vadd.s32 %v2580, %v2571
          %v2582 = vand.u32 %v2559, 65535
          %v2583 = vshrl.u32 %v2559, 16
          %v2584 = vand.u32 %v2554, 65535
          %v2585 = vshrl.u32 %v2554, 16
          %v2586 = vmul.u32 %v2582, %v2584
          %v2587 = vmul.u32 %v2582, %v2585
          %v2588 = vmul.u32 %v2583, %v2584
          %v2589 = vmul.u32 %v2583, %v2585
          %v2590 = vshll.u32 %v2587, 16
          %v2591 = vshrl.u32 %v2587, 16
          %v2592 = vshll.u32 %v2588, 16
          %v2593 = vshrl.u32 %v2588, 16
          %vm2594 = vc.u32 %v2586, %v2590
          %v2595 = vsel %vm2594, 1, 0
          %v2596 = vadd.s32 %v2586, %v2590
          %v2597 = vadd.s32 %v2589, %v2595
          %vm2598 = vc.u32 %v2596, %v2592
          %v2599 = vsel %vm2598, 1, 0
          %v2600 = vadd.s32 %v2596, %v2592
          %v2601 = vadd.s32 %v2597, %v2599
          %v2602 = vadd.s32 %v2601, %v2591
          %v2603 = vadd.s32 %v2602, %v2593
          %v2604 = vmul.u32 %v2559, %v2550
          %v2605 = vadd.s32 %v2581, %v2600
          %vm2606 = vc.u32 %v2581, %v2600
          %v2607 = vadd.s32 %v2603, 1
          %v2608 = vsel %vm2606, %v2607, %v2603
          %v2609 = vadd.s32 %v2604, %v2608
          %v2610 = vadd.s32 %v2609, 536870912
          %v2611 = vshrl.u32 %v2610, 30
          %v2612 = vshll.u32 %v2611, 30
          %v2613 = vsub.s32 %v2609, %v2612
          %vm2614 = vcmp.lt.s32.totalorder %v2613, 0
          %v2615 = vsub.s32 0, %v2613
          %v2616 = vsel %vm2614, %v2615, %v2613
          %v2617 = vclz %v2616
          %v2618 = vsub.s32 %v2617, 2
          %vm2619 = vcmp.gt.s32.totalorder 0, %v2618
          %v2620 = vsel %vm2619, 0, %v2618
          %v2621 = vsub.s32 32, %v2620
          %v2622 = vshll.u32 %v2613, %v2620
          %v2623 = vshrl.u32 %v2605, %v2621
          %v2624 = vor.u32 %v2622, %v2623
          %v2625 = vsub.s32 4294967266, %v2620
          %v2626 = vadd.s32 %v2625, 127
          %v2627 = vshll.u32 %v2626, 23
          %v2628 = vor.u32 4788187, %v2627
          %v2629 = vand.u32 2147483647, %v2628
          %v2631 = vcvt.s32.f32 %v2624
          %v2632 = vmul.f32 %v2631, %v2629
          %v2633 = vxor.u32 %v2632, 2147483648
          %v2634 = vsel %vm2513, %v2633, %v2632
          %v2635 = vsub.s32 4, %v2611
          %v2636 = vsel %vm2513, %v2635, %v2611
          %v2637 = vsel %vm2512, %v812, %v2634
          %v2638 = vsel %vm2512, 0, %v2636
          %v2639 = vmul.f32 %v2637, %v2637
          %v2640 = vmul.f32 %v2639, -0.001358992
          %v2641 = vadd.f32 %v2640, 0.041655596
          %v2642 = vmul.f32 %v2639, %v2641
          %v2643 = vadd.f32 %v2642, -0.4999988
          %v2644 = vmul.f32 %v2639, %v2643
          %v2645 = vadd.f32 1.0, %v2644
          %v2646 = vmul.f32 %v2637, %v2637
          %v2647 = vmul.f32 %v2646, -0.00019511016
          %v2648 = vadd.f32 %v2647, 0.008332121
          %v2649 = vmul.f32 %v2646, %v2648
          %v2650 = vadd.f32 %v2649, -0.16666654
          %v2651 = vmul.f32 %v2646, %v2650
          %v2652 = vadd.f32 %v2651, 1.0
          %v2653 = vmul.f32 %v2652, %v2637
          %vm2654 = vweird.f32 %v812
          %v2655 = vand.u32 %v2638, 3
          %vm2656 = vcmp.lt.s32.totalorder %v2655, 2
          %vm2657 = vcmp.eq.s32.totalorder %v2655, 0
          %v2658 = vxor.u32 %v2653, 2147483648
          %v2659 = vsel %vm2657, %v2645, %v2658
          %vm2660 = vcmp.eq.s32.totalorder %v2655, 2
          %v2661 = vxor.u32 %v2645, 2147483648
          %v2662 = vsel %vm2660, %v2661, %v2653
          %v2663 = vsel %vm2656, %v2659, %v2662
          %v2664 = vsel %vm2654, nan, %v2663
          %v2665 = vand.u32 2147483647, %v813
          %vm2666 = vcmp.le.f32.partialorder %v2665, 0.7853982
          %vm2667 = vcmp.lt.s32.totalorder %v813, 0
          %v2668 = vand.u32 %v813, 2139095040
          %v2669 = vshrl.u32 %v2668, 23
          %v2670 = vsub.s32 %v2669, 127
          %v2671 = vand.u32 2147483647, %v813
          %v2672 = vand.u32 %v2671, 8388607
          %v2673 = vor.u32 %v2672, 8388608
          %v2674 = vsub.s32 0, %v2673
          %v2675 = vadd.s32 %v2670, 1
          %vm2676 = vcmp.gt.s32.totalorder %v2675, 0
          %v2677 = vsel %vm2676, %v2675, 0
          %v2678 = vshrl.u32 %v2677, 5
          %v2679 = vand.u32 %v2677, 31
          %v2680 = vsub.s32 32, %v2679
          %v2681 = vshrl.u32 683565275, %v2680
          %v2682 = vshll.u32 683565275, %v2679
          %v2683 = vshrl.u32 2475754826, %v2680
          %v2684 = vor.u32 %v2682, %v2683
          %v2685 = vshll.u32 2475754826, %v2679
          %v2686 = vshrl.u32 2131351028, %v2680
          %v2687 = vor.u32 %v2685, %v2686
          %v2688 = vshll.u32 2131351028, %v2679
          %v2689 = vshrl.u32 2102212464, %v2680
          %v2690 = vor.u32 %v2688, %v2689
          %v2691 = vshll.u32 2102212464, %v2679
          %v2692 = vshrl.u32 920167782, %v2680
          %v2693 = vor.u32 %v2691, %v2692
          %v2694 = vshll.u32 920167782, %v2679
          %v2695 = vshrl.u32 1326507024, %v2680
          %v2696 = vor.u32 %v2694, %v2695
          %vm2697 = vcmp.lt.s32.totalorder %v2678, 1
          %vm2698 = vcmp.lt.s32.totalorder %v2678, 2
          %vm2699 = vcmp.lt.s32.totalorder %v2678, 3
          %vm2700 = vcmp.lt.s32.totalorder %v2678, 4
          %v2701 = vsel %vm2697, %v2681, %v2684
          %v2702 = vsel %vm2700, %v2690, 2102212464
          %v2703 = vsel %vm2699, %v2687, %v2702
          %v2704 = vsel %vm2698, %v2701, %v2703
          %v2705 = vsel %vm2697, %v2684, %v2687
          %v2706 = vsel %vm2700, %v2693, 920167782
          %v2707 = vsel %vm2699, %v2690, %v2706
          %v2708 = vsel %vm2698, %v2705, %v2707
          %v2709 = vsel %vm2697, %v2687, %v2690
          %v2710 = vsel %vm2700, %v2696, 1326507024
          %v2711 = vsel %vm2699, %v2693, %v2710
          %v2712 = vsel %vm2698, %v2709, %v2711
          %v2713 = vshll.u32 %v2673, 8
          %v2714 = vand.u32 %v2713, 65535
          %v2715 = vshrl.u32 %v2713, 16
          %v2716 = vand.u32 %v2712, 65535
          %v2717 = vshrl.u32 %v2712, 16
          %v2718 = vmul.u32 %v2714, %v2716
          %v2719 = vmul.u32 %v2714, %v2717
          %v2720 = vmul.u32 %v2715, %v2716
          %v2721 = vmul.u32 %v2715, %v2717
          %v2722 = vshll.u32 %v2719, 16
          %v2723 = vshrl.u32 %v2719, 16
          %v2724 = vshll.u32 %v2720, 16
          %v2725 = vshrl.u32 %v2720, 16
          %vm2726 = vc.u32 %v2718, %v2722
          %v2727 = vsel %vm2726, 1, 0
          %v2728 = vadd.s32 %v2718, %v2722
          %v2729 = vadd.s32 %v2721, %v2727
          %vm2730 = vc.u32 %v2728, %v2724
          %v2731 = vsel %vm2730, 1, 0
          %v2732 = vadd.s32 %v2728, %v2724
          %v2733 = vadd.s32 %v2729, %v2731
          %v2734 = vadd.s32 %v2733, %v2723
          %v2735 = vadd.s32 %v2734, %v2725
          %v2736 = vand.u32 %v2713, 65535
          %v2737 = vshrl.u32 %v2713, 16
          %v2738 = vand.u32 %v2708, 65535
          %v2739 = vshrl.u32 %v2708, 16
          %v2740 = vmul.u32 %v2736, %v2738
          %v2741 = vmul.u32 %v2736, %v2739
          %v2742 = vmul.u32 %v2737, %v2738
          %v2743 = vmul.u32 %v2737, %v2739
          %v2744 = vshll.u32 %v2741, 16
          %v2745 = vshrl.u32 %v2741, 16
          %v2746 = vshll.u32 %v2742, 16
          %v2747 = vshrl.u32 %v2742, 16
          %vm2748 = vc.u32 %v2740, %v2744
          %v2749 = vsel %vm2748, 1, 0
          %v2750 = vadd.s32 %v2740, %v2744
          %v2751 = vadd.s32 %v2743, %v2749
          %vm2752 = vc.u32 %v2750, %v2746
          %v2753 = vsel %vm2752, 1, 0
          %v2754 = vadd.s32 %v2750, %v2746
          %v2755 = vadd.s32 %v2751, %v2753
          %v2756 = vadd.s32 %v2755, %v2745
          %v2757 = vadd.s32 %v2756, %v2747
          %v2758 = vmul.u32 %v2713, %v2704
          %v2759 = vadd.s32 %v2735, %v2754
          %vm2760 = vc.u32 %v2735, %v2754
          %v2761 = vadd.s32 %v2757, 1
          %v2762 = vsel %vm2760, %v2761, %v2757
          %v2763 = vadd.s32 %v2758, %v2762
          %v2764 = vadd.s32 %v2763, 536870912
          %v2765 = vshrl.u32 %v2764, 30
          %v2766 = vshll.u32 %v2765, 30
          %v2767 = vsub.s32 %v2763, %v2766
          %vm2768 = vcmp.lt.s32.totalorder %v2767, 0
          %v2769 = vsub.s32 0, %v2767
          %v2770 = vsel %vm2768, %v2769, %v2767
          %v2771 = vclz %v2770
          %v2772 = vsub.s32 %v2771, 2
          %vm2773 = vcmp.gt.s32.totalorder 0, %v2772
          %v2774 = vsel %vm2773, 0, %v2772
          %v2775 = vsub.s32 32, %v2774
          %v2776 = vshll.u32 %v2767, %v2774
          %v2777 = vshrl.u32 %v2759, %v2775
          %v2778 = vor.u32 %v2776, %v2777
          %v2779 = vsub.s32 4294967266, %v2774
          %v2780 = vadd.s32 %v2779, 127
          %v2781 = vshll.u32 %v2780, 23
          %v2782 = vor.u32 4788187, %v2781
          %v2783 = vand.u32 2147483647, %v2782
          %v2785 = vcvt.s32.f32 %v2778
          %v2786 = vmul.f32 %v2785, %v2783
          %v2787 = vxor.u32 %v2786, 2147483648
          %v2788 = vsel %vm2667, %v2787, %v2786
          %v2789 = vsub.s32 4, %v2765
          %v2790 = vsel %vm2667, %v2789, %v2765
          %v2791 = vsel %vm2666, %v813, %v2788
          %v2792 = vsel %vm2666, 0, %v2790
          %v2793 = vmul.f32 %v2791, %v2791
          %v2794 = vmul.f32 %v2793, -0.001358992
          %v2795 = vadd.f32 %v2794, 0.041655596
          %v2796 = vmul.f32 %v2793, %v2795
          %v2797 = vadd.f32 %v2796, -0.4999988
          %v2798 = vmul.f32 %v2793, %v2797
          %v2799 = vadd.f32 1.0, %v2798
          %v2800 = vmul.f32 %v2791, %v2791
          %v2801 = vmul.f32 %v2800, -0.00019511016
          %v2802 = vadd.f32 %v2801, 0.008332121
          %v2803 = vmul.f32 %v2800, %v2802
          %v2804 = vadd.f32 %v2803, -0.16666654
          %v2805 = vmul.f32 %v2800, %v2804
          %v2806 = vadd.f32 %v2805, 1.0
          %v2807 = vmul.f32 %v2806, %v2791
          %vm2808 = vweird.f32 %v813
          %v2809 = vand.u32 %v2792, 3
          %vm2810 = vcmp.lt.s32.totalorder %v2809, 2
          %vm2811 = vcmp.eq.s32.totalorder %v2809, 0
          %v2812 = vxor.u32 %v2807, 2147483648
          %v2813 = vsel %vm2811, %v2799, %v2812
          %vm2814 = vcmp.eq.s32.totalorder %v2809, 2
          %v2815 = vxor.u32 %v2799, 2147483648
          %v2816 = vsel %vm2814, %v2815, %v2807
          %v2817 = vsel %vm2810, %v2813, %v2816
          %v2818 = vsel %vm2808, nan, %v2817
          %v2819 = vand.u32 2147483647, %v814
          %vm2820 = vcmp.le.f32.partialorder %v2819, 0.7853982
          %vm2821 = vcmp.lt.s32.totalorder %v814, 0
          %v2822 = vand.u32 %v814, 2139095040
          %v2823 = vshrl.u32 %v2822, 23
          %v2824 = vsub.s32 %v2823, 127
          %v2825 = vand.u32 2147483647, %v814
          %v2826 = vand.u32 %v2825, 8388607
          %v2827 = vor.u32 %v2826, 8388608
          %v2828 = vsub.s32 0, %v2827
          %v2829 = vadd.s32 %v2824, 1
          %vm2830 = vcmp.gt.s32.totalorder %v2829, 0
          %v2831 = vsel %vm2830, %v2829, 0
          %v2832 = vshrl.u32 %v2831, 5
          %v2833 = vand.u32 %v2831, 31
          %v2834 = vsub.s32 32, %v2833
          %v2835 = vshrl.u32 683565275, %v2834
          %v2836 = vshll.u32 683565275, %v2833
          %v2837 = vshrl.u32 2475754826, %v2834
          %v2838 = vor.u32 %v2836, %v2837
          %v2839 = vshll.u32 2475754826, %v2833
          %v2840 = vshrl.u32 2131351028, %v2834
          %v2841 = vor.u32 %v2839, %v2840
          %v2842 = vshll.u32 2131351028, %v2833
          %v2843 = vshrl.u32 2102212464, %v2834
          %v2844 = vor.u32 %v2842, %v2843
          %v2845 = vshll.u32 2102212464, %v2833
          %v2846 = vshrl.u32 920167782, %v2834
          %v2847 = vor.u32 %v2845, %v2846
          %v2848 = vshll.u32 920167782, %v2833
          %v2849 = vshrl.u32 1326507024, %v2834
          %v2850 = vor.u32 %v2848, %v2849
          %vm2851 = vcmp.lt.s32.totalorder %v2832, 1
          %vm2852 = vcmp.lt.s32.totalorder %v2832, 2
          %vm2853 = vcmp.lt.s32.totalorder %v2832, 3
          %vm2854 = vcmp.lt.s32.totalorder %v2832, 4
          %v2855 = vsel %vm2851, %v2835, %v2838
          %v2856 = vsel %vm2854, %v2844, 2102212464
          %v2857 = vsel %vm2853, %v2841, %v2856
          %v2858 = vsel %vm2852, %v2855, %v2857
          %v2859 = vsel %vm2851, %v2838, %v2841
          %v2860 = vsel %vm2854, %v2847, 920167782
          %v2861 = vsel %vm2853, %v2844, %v2860
          %v2862 = vsel %vm2852, %v2859, %v2861
          %v2863 = vsel %vm2851, %v2841, %v2844
          %v2864 = vsel %vm2854, %v2850, 1326507024
          %v2865 = vsel %vm2853, %v2847, %v2864
          %v2866 = vsel %vm2852, %v2863, %v2865
          %v2867 = vshll.u32 %v2827, 8
          %v2868 = vand.u32 %v2867, 65535
          %v2869 = vshrl.u32 %v2867, 16
          %v2870 = vand.u32 %v2866, 65535
          %v2871 = vshrl.u32 %v2866, 16
          %v2872 = vmul.u32 %v2868, %v2870
          %v2873 = vmul.u32 %v2868, %v2871
          %v2874 = vmul.u32 %v2869, %v2870
          %v2875 = vmul.u32 %v2869, %v2871
          %v2876 = vshll.u32 %v2873, 16
          %v2877 = vshrl.u32 %v2873, 16
          %v2878 = vshll.u32 %v2874, 16
          %v2879 = vshrl.u32 %v2874, 16
          %vm2880 = vc.u32 %v2872, %v2876
          %v2881 = vsel %vm2880, 1, 0
          %v2882 = vadd.s32 %v2872, %v2876
          %v2883 = vadd.s32 %v2875, %v2881
          %vm2884 = vc.u32 %v2882, %v2878
          %v2885 = vsel %vm2884, 1, 0
          %v2886 = vadd.s32 %v2882, %v2878
          %v2887 = vadd.s32 %v2883, %v2885
          %v2888 = vadd.s32 %v2887, %v2877
          %v2889 = vadd.s32 %v2888, %v2879
          %v2890 = vand.u32 %v2867, 65535
          %v2891 = vshrl.u32 %v2867, 16
          %v2892 = vand.u32 %v2862, 65535
          %v2893 = vshrl.u32 %v2862, 16
          %v2894 = vmul.u32 %v2890, %v2892
          %v2895 = vmul.u32 %v2890, %v2893
          %v2896 = vmul.u32 %v2891, %v2892
          %v2897 = vmul.u32 %v2891, %v2893
          %v2898 = vshll.u32 %v2895, 16
          %v2899 = vshrl.u32 %v2895, 16
          %v2900 = vshll.u32 %v2896, 16
          %v2901 = vshrl.u32 %v2896, 16
          %vm2902 = vc.u32 %v2894, %v2898
          %v2903 = vsel %vm2902, 1, 0
          %v2904 = vadd.s32 %v2894, %v2898
          %v2905 = vadd.s32 %v2897, %v2903
          %vm2906 = vc.u32 %v2904, %v2900
          %v2907 = vsel %vm2906, 1, 0
          %v2908 = vadd.s32 %v2904, %v2900
          %v2909 = vadd.s32 %v2905, %v2907
          %v2910 = vadd.s32 %v2909, %v2899
          %v2911 = vadd.s32 %v2910, %v2901
          %v2912 = vmul.u32 %v2867, %v2858
          %v2913 = vadd.s32 %v2889, %v2908
          %vm2914 = vc.u32 %v2889, %v2908
          %v2915 = vadd.s32 %v2911, 1
          %v2916 = vsel %vm2914, %v2915, %v2911
          %v2917 = vadd.s32 %v2912, %v2916
          %v2918 = vadd.s32 %v2917, 536870912
          %v2919 = vshrl.u32 %v2918, 30
          %v2920 = vshll.u32 %v2919, 30
          %v2921 = vsub.s32 %v2917, %v2920
          %vm2922 = vcmp.lt.s32.totalorder %v2921, 0
          %v2923 = vsub.s32 0, %v2921
          %v2924 = vsel %vm2922, %v2923, %v2921
          %v2925 = vclz %v2924
          %v2926 = vsub.s32 %v2925, 2
          %vm2927 = vcmp.gt.s32.totalorder 0, %v2926
          %v2928 = vsel %vm2927, 0, %v2926
          %v2929 = vsub.s32 32, %v2928
          %v2930 = vshll.u32 %v2921, %v2928
          %v2931 = vshrl.u32 %v2913, %v2929
          %v2932 = vor.u32 %v2930, %v2931
          %v2933 = vsub.s32 4294967266, %v2928
          %v2934 = vadd.s32 %v2933, 127
          %v2935 = vshll.u32 %v2934, 23
          %v2936 = vor.u32 4788187, %v2935
          %v2937 = vand.u32 2147483647, %v2936
          %v2939 = vcvt.s32.f32 %v2932
          %v2940 = vmul.f32 %v2939, %v2937
          %v2941 = vxor.u32 %v2940, 2147483648
          %v2942 = vsel %vm2821, %v2941, %v2940
          %v2943 = vsub.s32 4, %v2919
          %v2944 = vsel %vm2821, %v2943, %v2919
          %v2945 = vsel %vm2820, %v814, %v2942
          %v2946 = vsel %vm2820, 0, %v2944
          %v2947 = vmul.f32 %v2945, %v2945
          %v2948 = vmul.f32 %v2947, -0.001358992
          %v2949 = vadd.f32 %v2948, 0.041655596
          %v2950 = vmul.f32 %v2947, %v2949
          %v2951 = vadd.f32 %v2950, -0.4999988
          %v2952 = vmul.f32 %v2947, %v2951
          %v2953 = vadd.f32 1.0, %v2952
          %v2954 = vmul.f32 %v2945, %v2945
          %v2955 = vmul.f32 %v2954, -0.00019511016
          %v2956 = vadd.f32 %v2955, 0.008332121
          %v2957 = vmul.f32 %v2954, %v2956
          %v2958 = vadd.f32 %v2957, -0.16666654
          %v2959 = vmul.f32 %v2954, %v2958
          %v2960 = vadd.f32 %v2959, 1.0
          %v2961 = vmul.f32 %v2960, %v2945
          %vm2962 = vweird.f32 %v814
          %v2963 = vand.u32 %v2946, 3
          %vm2964 = vcmp.lt.s32.totalorder %v2963, 2
          %vm2965 = vcmp.eq.s32.totalorder %v2963, 0
          %v2966 = vxor.u32 %v2961, 2147483648
          %v2967 = vsel %vm2965, %v2953, %v2966
          %vm2968 = vcmp.eq.s32.totalorder %v2963, 2
          %v2969 = vxor.u32 %v2953, 2147483648
          %v2970 = vsel %vm2968, %v2969, %v2961
          %v2971 = vsel %vm2964, %v2967, %v2970
          %v2972 = vsel %vm2962, nan, %v2971
          %v2973 = vand.u32 2147483647, %v815
          %vm2974 = vcmp.le.f32.partialorder %v2973, 0.7853982
          %vm2975 = vcmp.lt.s32.totalorder %v815, 0
          %v2976 = vand.u32 %v815, 2139095040
          %v2977 = vshrl.u32 %v2976, 23
          %v2978 = vsub.s32 %v2977, 127
          %v2979 = vand.u32 2147483647, %v815
          %v2980 = vand.u32 %v2979, 8388607
          %v2981 = vor.u32 %v2980, 8388608
          %v2982 = vsub.s32 0, %v2981
          %v2983 = vadd.s32 %v2978, 1
          %vm2984 = vcmp.gt.s32.totalorder %v2983, 0
          %v2985 = vsel %vm2984, %v2983, 0
          %v2986 = vshrl.u32 %v2985, 5
          %v2987 = vand.u32 %v2985, 31
          %v2988 = vsub.s32 32, %v2987
          %v2989 = vshrl.u32 683565275, %v2988
          %v2990 = vshll.u32 683565275, %v2987
          %v2991 = vshrl.u32 2475754826, %v2988
          %v2992 = vor.u32 %v2990, %v2991
          %v2993 = vshll.u32 2475754826, %v2987
          %v2994 = vshrl.u32 2131351028, %v2988
          %v2995 = vor.u32 %v2993, %v2994
          %v2996 = vshll.u32 2131351028, %v2987
          %v2997 = vshrl.u32 2102212464, %v2988
          %v2998 = vor.u32 %v2996, %v2997
          %v2999 = vshll.u32 2102212464, %v2987
          %v3000 = vshrl.u32 920167782, %v2988
          %v3001 = vor.u32 %v2999, %v3000
          %v3002 = vshll.u32 920167782, %v2987
          %v3003 = vshrl.u32 1326507024, %v2988
          %v3004 = vor.u32 %v3002, %v3003
          %vm3005 = vcmp.lt.s32.totalorder %v2986, 1
          %vm3006 = vcmp.lt.s32.totalorder %v2986, 2
          %vm3007 = vcmp.lt.s32.totalorder %v2986, 3
          %vm3008 = vcmp.lt.s32.totalorder %v2986, 4
          %v3009 = vsel %vm3005, %v2989, %v2992
          %v3010 = vsel %vm3008, %v2998, 2102212464
          %v3011 = vsel %vm3007, %v2995, %v3010
          %v3012 = vsel %vm3006, %v3009, %v3011
          %v3013 = vsel %vm3005, %v2992, %v2995
          %v3014 = vsel %vm3008, %v3001, 920167782
          %v3015 = vsel %vm3007, %v2998, %v3014
          %v3016 = vsel %vm3006, %v3013, %v3015
          %v3017 = vsel %vm3005, %v2995, %v2998
          %v3018 = vsel %vm3008, %v3004, 1326507024
          %v3019 = vsel %vm3007, %v3001, %v3018
          %v3020 = vsel %vm3006, %v3017, %v3019
          %v3021 = vshll.u32 %v2981, 8
          %v3022 = vand.u32 %v3021, 65535
          %v3023 = vshrl.u32 %v3021, 16
          %v3024 = vand.u32 %v3020, 65535
          %v3025 = vshrl.u32 %v3020, 16
          %v3026 = vmul.u32 %v3022, %v3024
          %v3027 = vmul.u32 %v3022, %v3025
          %v3028 = vmul.u32 %v3023, %v3024
          %v3029 = vmul.u32 %v3023, %v3025
          %v3030 = vshll.u32 %v3027, 16
          %v3031 = vshrl.u32 %v3027, 16
          %v3032 = vshll.u32 %v3028, 16
          %v3033 = vshrl.u32 %v3028, 16
          %vm3034 = vc.u32 %v3026, %v3030
          %v3035 = vsel %vm3034, 1, 0
          %v3036 = vadd.s32 %v3026, %v3030
          %v3037 = vadd.s32 %v3029, %v3035
          %vm3038 = vc.u32 %v3036, %v3032
          %v3039 = vsel %vm3038, 1, 0
          %v3040 = vadd.s32 %v3036, %v3032
          %v3041 = vadd.s32 %v3037, %v3039
          %v3042 = vadd.s32 %v3041, %v3031
          %v3043 = vadd.s32 %v3042, %v3033
          %v3044 = vand.u32 %v3021, 65535
          %v3045 = vshrl.u32 %v3021, 16
          %v3046 = vand.u32 %v3016, 65535
          %v3047 = vshrl.u32 %v3016, 16
          %v3048 = vmul.u32 %v3044, %v3046
          %v3049 = vmul.u32 %v3044, %v3047
          %v3050 = vmul.u32 %v3045, %v3046
          %v3051 = vmul.u32 %v3045, %v3047
          %v3052 = vshll.u32 %v3049, 16
          %v3053 = vshrl.u32 %v3049, 16
          %v3054 = vshll.u32 %v3050, 16
          %v3055 = vshrl.u32 %v3050, 16
          %vm3056 = vc.u32 %v3048, %v3052
          %v3057 = vsel %vm3056, 1, 0
          %v3058 = vadd.s32 %v3048, %v3052
          %v3059 = vadd.s32 %v3051, %v3057
          %vm3060 = vc.u32 %v3058, %v3054
          %v3061 = vsel %vm3060, 1, 0
          %v3062 = vadd.s32 %v3058, %v3054
          %v3063 = vadd.s32 %v3059, %v3061
          %v3064 = vadd.s32 %v3063, %v3053
          %v3065 = vadd.s32 %v3064, %v3055
          %v3066 = vmul.u32 %v3021, %v3012
          %v3067 = vadd.s32 %v3043, %v3062
          %vm3068 = vc.u32 %v3043, %v3062
          %v3069 = vadd.s32 %v3065, 1
          %v3070 = vsel %vm3068, %v3069, %v3065
          %v3071 = vadd.s32 %v3066, %v3070
          %v3072 = vadd.s32 %v3071, 536870912
          %v3073 = vshrl.u32 %v3072, 30
          %v3074 = vshll.u32 %v3073, 30
          %v3075 = vsub.s32 %v3071, %v3074
          %vm3076 = vcmp.lt.s32.totalorder %v3075, 0
          %v3077 = vsub.s32 0, %v3075
          %v3078 = vsel %vm3076, %v3077, %v3075
          %v3079 = vclz %v3078
          %v3080 = vsub.s32 %v3079, 2
          %vm3081 = vcmp.gt.s32.totalorder 0, %v3080
          %v3082 = vsel %vm3081, 0, %v3080
          %v3083 = vsub.s32 32, %v3082
          %v3084 = vshll.u32 %v3075, %v3082
          %v3085 = vshrl.u32 %v3067, %v3083
          %v3086 = vor.u32 %v3084, %v3085
          %v3087 = vsub.s32 4294967266, %v3082
          %v3088 = vadd.s32 %v3087, 127
          %v3089 = vshll.u32 %v3088, 23
          %v3090 = vor.u32 4788187, %v3089
          %v3091 = vand.u32 2147483647, %v3090
          %v3093 = vcvt.s32.f32 %v3086
          %v3094 = vmul.f32 %v3093, %v3091
          %v3095 = vxor.u32 %v3094, 2147483648
          %v3096 = vsel %vm2975, %v3095, %v3094
          %v3097 = vsub.s32 4, %v3073
          %v3098 = vsel %vm2975, %v3097, %v3073
          %v3099 = vsel %vm2974, %v815, %v3096
          %v3100 = vsel %vm2974, 0, %v3098
          %v3101 = vmul.f32 %v3099, %v3099
          %v3102 = vmul.f32 %v3101, -0.001358992
          %v3103 = vadd.f32 %v3102, 0.041655596
          %v3104 = vmul.f32 %v3101, %v3103
          %v3105 = vadd.f32 %v3104, -0.4999988
          %v3106 = vmul.f32 %v3101, %v3105
          %v3107 = vadd.f32 1.0, %v3106
          %v3108 = vmul.f32 %v3099, %v3099
          %v3109 = vmul.f32 %v3108, -0.00019511016
          %v3110 = vadd.f32 %v3109, 0.008332121
          %v3111 = vmul.f32 %v3108, %v3110
          %v3112 = vadd.f32 %v3111, -0.16666654
          %v3113 = vmul.f32 %v3108, %v3112
          %v3114 = vadd.f32 %v3113, 1.0
          %v3115 = vmul.f32 %v3114, %v3099
          %vm3116 = vweird.f32 %v815
          %v3117 = vand.u32 %v3100, 3
          %vm3118 = vcmp.lt.s32.totalorder %v3117, 2
          %vm3119 = vcmp.eq.s32.totalorder %v3117, 0
          %v3120 = vxor.u32 %v3115, 2147483648
          %v3121 = vsel %vm3119, %v3107, %v3120
          %vm3122 = vcmp.eq.s32.totalorder %v3117, 2
          %v3123 = vxor.u32 %v3107, 2147483648
          %v3124 = vsel %vm3122, %v3123, %v3115
          %v3125 = vsel %vm3118, %v3121, %v3124
          %v3126 = vsel %vm3116, nan, %v3125
          %v3127 = vand.u32 2147483647, %v816
          %vm3128 = vcmp.le.f32.partialorder %v3127, 0.7853982
          %vm3129 = vcmp.lt.s32.totalorder %v816, 0
          %v3130 = vand.u32 %v816, 2139095040
          %v3131 = vshrl.u32 %v3130, 23
          %v3132 = vsub.s32 %v3131, 127
          %v3133 = vand.u32 2147483647, %v816
          %v3134 = vand.u32 %v3133, 8388607
          %v3135 = vor.u32 %v3134, 8388608
          %v3136 = vsub.s32 0, %v3135
          %v3137 = vadd.s32 %v3132, 1
          %vm3138 = vcmp.gt.s32.totalorder %v3137, 0
          %v3139 = vsel %vm3138, %v3137, 0
          %v3140 = vshrl.u32 %v3139, 5
          %v3141 = vand.u32 %v3139, 31
          %v3142 = vsub.s32 32, %v3141
          %v3143 = vshrl.u32 683565275, %v3142
          %v3144 = vshll.u32 683565275, %v3141
          %v3145 = vshrl.u32 2475754826, %v3142
          %v3146 = vor.u32 %v3144, %v3145
          %v3147 = vshll.u32 2475754826, %v3141
          %v3148 = vshrl.u32 2131351028, %v3142
          %v3149 = vor.u32 %v3147, %v3148
          %v3150 = vshll.u32 2131351028, %v3141
          %v3151 = vshrl.u32 2102212464, %v3142
          %v3152 = vor.u32 %v3150, %v3151
          %v3153 = vshll.u32 2102212464, %v3141
          %v3154 = vshrl.u32 920167782, %v3142
          %v3155 = vor.u32 %v3153, %v3154
          %v3156 = vshll.u32 920167782, %v3141
          %v3157 = vshrl.u32 1326507024, %v3142
          %v3158 = vor.u32 %v3156, %v3157
          %vm3159 = vcmp.lt.s32.totalorder %v3140, 1
          %vm3160 = vcmp.lt.s32.totalorder %v3140, 2
          %vm3161 = vcmp.lt.s32.totalorder %v3140, 3
          %vm3162 = vcmp.lt.s32.totalorder %v3140, 4
          %v3163 = vsel %vm3159, %v3143, %v3146
          %v3164 = vsel %vm3162, %v3152, 2102212464
          %v3165 = vsel %vm3161, %v3149, %v3164
          %v3166 = vsel %vm3160, %v3163, %v3165
          %v3167 = vsel %vm3159, %v3146, %v3149
          %v3168 = vsel %vm3162, %v3155, 920167782
          %v3169 = vsel %vm3161, %v3152, %v3168
          %v3170 = vsel %vm3160, %v3167, %v3169
          %v3171 = vsel %vm3159, %v3149, %v3152
          %v3172 = vsel %vm3162, %v3158, 1326507024
          %v3173 = vsel %vm3161, %v3155, %v3172
          %v3174 = vsel %vm3160, %v3171, %v3173
          %v3175 = vshll.u32 %v3135, 8
          %v3176 = vand.u32 %v3175, 65535
          %v3177 = vshrl.u32 %v3175, 16
          %v3178 = vand.u32 %v3174, 65535
          %v3179 = vshrl.u32 %v3174, 16
          %v3180 = vmul.u32 %v3176, %v3178
          %v3181 = vmul.u32 %v3176, %v3179
          %v3182 = vmul.u32 %v3177, %v3178
          %v3183 = vmul.u32 %v3177, %v3179
          %v3184 = vshll.u32 %v3181, 16
          %v3185 = vshrl.u32 %v3181, 16
          %v3186 = vshll.u32 %v3182, 16
          %v3187 = vshrl.u32 %v3182, 16
          %vm3188 = vc.u32 %v3180, %v3184
          %v3189 = vsel %vm3188, 1, 0
          %v3190 = vadd.s32 %v3180, %v3184
          %v3191 = vadd.s32 %v3183, %v3189
          %vm3192 = vc.u32 %v3190, %v3186
          %v3193 = vsel %vm3192, 1, 0
          %v3194 = vadd.s32 %v3190, %v3186
          %v3195 = vadd.s32 %v3191, %v3193
          %v3196 = vadd.s32 %v3195, %v3185
          %v3197 = vadd.s32 %v3196, %v3187
          %v3198 = vand.u32 %v3175, 65535
          %v3199 = vshrl.u32 %v3175, 16
          %v3200 = vand.u32 %v3170, 65535
          %v3201 = vshrl.u32 %v3170, 16
          %v3202 = vmul.u32 %v3198, %v3200
          %v3203 = vmul.u32 %v3198, %v3201
          %v3204 = vmul.u32 %v3199, %v3200
          %v3205 = vmul.u32 %v3199, %v3201
          %v3206 = vshll.u32 %v3203, 16
          %v3207 = vshrl.u32 %v3203, 16
          %v3208 = vshll.u32 %v3204, 16
          %v3209 = vshrl.u32 %v3204, 16
          %vm3210 = vc.u32 %v3202, %v3206
          %v3211 = vsel %vm3210, 1, 0
          %v3212 = vadd.s32 %v3202, %v3206
          %v3213 = vadd.s32 %v3205, %v3211
          %vm3214 = vc.u32 %v3212, %v3208
          %v3215 = vsel %vm3214, 1, 0
          %v3216 = vadd.s32 %v3212, %v3208
          %v3217 = vadd.s32 %v3213, %v3215
          %v3218 = vadd.s32 %v3217, %v3207
          %v3219 = vadd.s32 %v3218, %v3209
          %v3220 = vmul.u32 %v3175, %v3166
          %v3221 = vadd.s32 %v3197, %v3216
          %vm3222 = vc.u32 %v3197, %v3216
          %v3223 = vadd.s32 %v3219, 1
          %v3224 = vsel %vm3222, %v3223, %v3219
          %v3225 = vadd.s32 %v3220, %v3224
          %v3226 = vadd.s32 %v3225, 536870912
          %v3227 = vshrl.u32 %v3226, 30
          %v3228 = vshll.u32 %v3227, 30
          %v3229 = vsub.s32 %v3225, %v3228
          %vm3230 = vcmp.lt.s32.totalorder %v3229, 0
          %v3231 = vsub.s32 0, %v3229
          %v3232 = vsel %vm3230, %v3231, %v3229
          %v3233 = vclz %v3232
          %v3234 = vsub.s32 %v3233, 2
          %vm3235 = vcmp.gt.s32.totalorder 0, %v3234
          %v3236 = vsel %vm3235, 0, %v3234
          %v3237 = vsub.s32 32, %v3236
          %v3238 = vshll.u32 %v3229, %v3236
          %v3239 = vshrl.u32 %v3221, %v3237
          %v3240 = vor.u32 %v3238, %v3239
          %v3241 = vsub.s32 4294967266, %v3236
          %v3242 = vadd.s32 %v3241, 127
          %v3243 = vshll.u32 %v3242, 23
          %v3244 = vor.u32 4788187, %v3243
          %v3245 = vand.u32 2147483647, %v3244
          %v3247 = vcvt.s32.f32 %v3240
          %v3248 = vmul.f32 %v3247, %v3245
          %v3249 = vxor.u32 %v3248, 2147483648
          %v3250 = vsel %vm3129, %v3249, %v3248
          %v3251 = vsub.s32 4, %v3227
          %v3252 = vsel %vm3129, %v3251, %v3227
          %v3253 = vsel %vm3128, %v816, %v3250
          %v3254 = vsel %vm3128, 0, %v3252
          %v3255 = vmul.f32 %v3253, %v3253
          %v3256 = vmul.f32 %v3255, -0.001358992
          %v3257 = vadd.f32 %v3256, 0.041655596
          %v3258 = vmul.f32 %v3255, %v3257
          %v3259 = vadd.f32 %v3258, -0.4999988
          %v3260 = vmul.f32 %v3255, %v3259
          %v3261 = vadd.f32 1.0, %v3260
          %v3262 = vmul.f32 %v3253, %v3253
          %v3263 = vmul.f32 %v3262, -0.00019511016
          %v3264 = vadd.f32 %v3263, 0.008332121
          %v3265 = vmul.f32 %v3262, %v3264
          %v3266 = vadd.f32 %v3265, -0.16666654
          %v3267 = vmul.f32 %v3262, %v3266
          %v3268 = vadd.f32 %v3267, 1.0
          %v3269 = vmul.f32 %v3268, %v3253
          %vm3270 = vweird.f32 %v816
          %v3271 = vand.u32 %v3254, 3
          %vm3272 = vcmp.lt.s32.totalorder %v3271, 2
          %vm3273 = vcmp.eq.s32.totalorder %v3271, 0
          %v3274 = vxor.u32 %v3269, 2147483648
          %v3275 = vsel %vm3273, %v3261, %v3274
          %vm3276 = vcmp.eq.s32.totalorder %v3271, 2
          %v3277 = vxor.u32 %v3261, 2147483648
          %v3278 = vsel %vm3276, %v3277, %v3269
          %v3279 = vsel %vm3272, %v3275, %v3278
          %v3280 = vsel %vm3270, nan, %v3279
          %v3281 = vadd.f32 %v970, 1.0
          %v3282 = vadd.f32 %v1124, 1.0
          %v3283 = vadd.f32 %v1278, 1.0
          %v3284 = vadd.f32 %v1432, 1.0
          %v3285 = vadd.f32 %v1586, 1.0
          %v3286 = vadd.f32 %v1740, 1.0
          %v3287 = vadd.f32 %v1894, 1.0
          %v3288 = vadd.f32 %v2048, 1.0
          %v3289 = vadd.f32 %v2202, 1.0
          %v3290 = vadd.f32 %v2356, 1.0
          %v3291 = vadd.f32 %v2510, 1.0
          %v3292 = vadd.f32 %v2664, 1.0
          %v3293 = vadd.f32 %v2818, 1.0
          %v3294 = vadd.f32 %v2972, 1.0
          %v3295 = vadd.f32 %v3126, 1.0
          %v3296 = vadd.f32 %v3280, 1.0
          %v3297 = vmul.f32 %v3281, 0.5
          %v3298 = vmul.f32 %v3282, 0.5
          %v3299 = vmul.f32 %v3283, 0.5
          %v3300 = vmul.f32 %v3284, 0.5
          %v3301 = vmul.f32 %v3285, 0.5
          %v3302 = vmul.f32 %v3286, 0.5
          %v3303 = vmul.f32 %v3287, 0.5
          %v3304 = vmul.f32 %v3288, 0.5
          %v3305 = vmul.f32 %v3289, 0.5
          %v3306 = vmul.f32 %v3290, 0.5
          %v3307 = vmul.f32 %v3291, 0.5
          %v3308 = vmul.f32 %v3292, 0.5
          %v3309 = vmul.f32 %v3293, 0.5
          %v3310 = vmul.f32 %v3294, 0.5
          %v3311 = vmul.f32 %v3295, 0.5
          %v3312 = vmul.f32 %v3296, 0.5
          %v3313 = vpack.c.bf16 %v772, %v770
          %v3314 = vpack.c.bf16 %v776, %v774
          %v3315 = vpack.c.bf16 %v780, %v778
          %v3316 = vpack.c.bf16 %v784, %v782
          %v3317 = vpack.c.bf16 %v788, %v786
          %v3318 = vpack.c.bf16 %v792, %v790
          %v3319 = vpack.c.bf16 %v796, %v794
          %v3320 = vpack.c.bf16 %v800, %v798
          %v3321 = vld [vmem:[%s6] sm:$0xf]
          %v3322 = vld [vmem:[%s6 + $0x4] sm:$0xf]
          %v3323 = vld [vmem:[#allocation7] sm:$0x1]
          %v3325 = vperm.slane %v3323, 0
          %v3329 = vunpack.c.l.b16 %v3321
          %v3330 = vunpack.c.l.b16 %v3322
          %v3331 = vpack.c.b16 %v3330, %v3329
          %vm3333 = vcmask 130048
          %v3335 = vsel %vm3333, %v3313, 0
          %v3338 = vsel %vm3333, %v3314, 0
          %v3341 = vsel %vm3333, %v3315, 0
          %v3344 = vsel %vm3333, %v3316, 0
          %v3347 = vsel %vm3333, %v3317, 0
          %v3350 = vsel %vm3333, %v3318, 0
          %v3353 = vsel %vm3333, %v3319, 0
          %v3356 = vsel %vm3333, %v3320, 0
          %3358 = vmatpush.bf16.msra.mxu0 0
          %3359 = vmatpush.bf16.msra.mxu0 0
          %3360 = vmatpush.bf16.msra.mxu0 0
          %3361 = vmatpush.bf16.msra.mxu0 0
          %3362 = vmatpush.bf16.msra.mxu0 0
          %3363 = vmatpush.bf16.msra.mxu0 0
          %3364 = vmatpush.bf16.msra.mxu0 0
          %3365 = vmatpush.bf16.msra.mxu0 %v3331
          %3366 = vmatmul.bf16.gmra.mxu0 %v3335
          %v3367 = vpop.f32.mrf.mxu0
          %v3368 = vadd.f32 %v3325, %v3367
          %v3369 = vpop.f32.mrf.mxu0
          %v3370 = vadd.f32 %v3325, %v3369
          %3371 = vmatmul.bf16.gmra.mxu0 %v3338
          %v3372 = vpop.f32.mrf.mxu0
          %v3373 = vadd.f32 %v3325, %v3372
          %v3374 = vpop.f32.mrf.mxu0
          %v3375 = vadd.f32 %v3325, %v3374
          %3376 = vmatmul.bf16.gmra.mxu0 %v3341
          %v3377 = vpop.f32.mrf.mxu0
          %v3378 = vadd.f32 %v3325, %v3377
          %v3379 = vpop.f32.mrf.mxu0
          %v3380 = vadd.f32 %v3325, %v3379
          %3381 = vmatmul.bf16.gmra.mxu0 %v3344
          %v3382 = vpop.f32.mrf.mxu0
          %v3383 = vadd.f32 %v3325, %v3382
          %v3384 = vpop.f32.mrf.mxu0
          %v3385 = vadd.f32 %v3325, %v3384
          %3386 = vmatmul.bf16.gmra.mxu0 %v3347
          %v3387 = vpop.f32.mrf.mxu0
          %v3388 = vadd.f32 %v3325, %v3387
          %v3389 = vpop.f32.mrf.mxu0
          %v3390 = vadd.f32 %v3325, %v3389
          %3391 = vmatmul.bf16.gmra.mxu0 %v3350
          %v3392 = vpop.f32.mrf.mxu0
          %v3393 = vadd.f32 %v3325, %v3392
          %v3394 = vpop.f32.mrf.mxu0
          %v3395 = vadd.f32 %v3325, %v3394
          %3396 = vmatmul.bf16.gmra.mxu0 %v3353
          %v3397 = vpop.f32.mrf.mxu0
          %v3398 = vadd.f32 %v3325, %v3397
          %v3399 = vpop.f32.mrf.mxu0
          %v3400 = vadd.f32 %v3325, %v3399
          %3401 = vmatmul.bf16.gmra.mxu0 %v3356
          %v3402 = vpop.f32.mrf.mxu0
          %v3403 = vadd.f32 %v3325, %v3402
          %v3404 = vpop.f32.mrf.mxu0
          %v3405 = vadd.f32 %v3325, %v3404
          %3406 = vdwg.mxu0
          %v3407 = vmax.f32 %v3368, 0.0
          %v3408 = vmax.f32 %v3370, 0.0
          %v3409 = vmax.f32 %v3373, 0.0
          %v3410 = vmax.f32 %v3375, 0.0
          %v3411 = vmax.f32 %v3378, 0.0
          %v3412 = vmax.f32 %v3380, 0.0
          %v3413 = vmax.f32 %v3383, 0.0
          %v3414 = vmax.f32 %v3385, 0.0
          %v3415 = vmax.f32 %v3388, 0.0
          %v3416 = vmax.f32 %v3390, 0.0
          %v3417 = vmax.f32 %v3393, 0.0
          %v3418 = vmax.f32 %v3395, 0.0
          %v3419 = vmax.f32 %v3398, 0.0
          %v3420 = vmax.f32 %v3400, 0.0
          %v3421 = vmax.f32 %v3403, 0.0
          %v3422 = vmax.f32 %v3405, 0.0
          %v3423 = vand.u32 2147483647, %v3368
          %v3424 = vand.u32 2147483647, %v3370
          %v3425 = vand.u32 2147483647, %v3373
          %v3426 = vand.u32 2147483647, %v3375
          %v3427 = vand.u32 2147483647, %v3378
          %v3428 = vand.u32 2147483647, %v3380
          %v3429 = vand.u32 2147483647, %v3383
          %v3430 = vand.u32 2147483647, %v3385
          %v3431 = vand.u32 2147483647, %v3388
          %v3432 = vand.u32 2147483647, %v3390
          %v3433 = vand.u32 2147483647, %v3393
          %v3434 = vand.u32 2147483647, %v3395
          %v3435 = vand.u32 2147483647, %v3398
          %v3436 = vand.u32 2147483647, %v3400
          %v3437 = vand.u32 2147483647, %v3403
          %v3438 = vand.u32 2147483647, %v3405
          %v3439 = vsub.f32 0.0, %v3423
          %v3440 = vsub.f32 0.0, %v3424
          %v3441 = vsub.f32 0.0, %v3425
          %v3442 = vsub.f32 0.0, %v3426
          %v3443 = vsub.f32 0.0, %v3427
          %v3444 = vsub.f32 0.0, %v3428
          %v3445 = vsub.f32 0.0, %v3429
          %v3446 = vsub.f32 0.0, %v3430
          %v3447 = vsub.f32 0.0, %v3431
          %v3448 = vsub.f32 0.0, %v3432
          %v3449 = vsub.f32 0.0, %v3433
          %v3450 = vsub.f32 0.0, %v3434
          %v3451 = vsub.f32 0.0, %v3435
          %v3452 = vsub.f32 0.0, %v3436
          %v3453 = vsub.f32 0.0, %v3437
          %v3454 = vsub.f32 0.0, %v3438
          %v3455 = vmul.f32 %v3439, 1.442695
          %v3456 = vpow.pop %v3455
          %v3457 = vmul.f32 %v3440, 1.442695
          %v3458 = vpow.pop %v3457
          %v3459 = vmul.f32 %v3441, 1.442695
          %v3460 = vpow.pop %v3459
          %v3461 = vmul.f32 %v3442, 1.442695
          %v3462 = vpow.pop %v3461
          %v3463 = vmul.f32 %v3443, 1.442695
          %v3464 = vpow.pop %v3463
          %v3465 = vmul.f32 %v3444, 1.442695
          %v3466 = vpow.pop %v3465
          %v3467 = vmul.f32 %v3445, 1.442695
          %v3468 = vpow.pop %v3467
          %v3469 = vmul.f32 %v3446, 1.442695
          %v3470 = vpow.pop %v3469
          %v3471 = vmul.f32 %v3447, 1.442695
          %v3472 = vpow.pop %v3471
          %v3473 = vmul.f32 %v3448, 1.442695
          %v3474 = vpow.pop %v3473
          %v3475 = vmul.f32 %v3449, 1.442695
          %v3476 = vpow.pop %v3475
          %v3477 = vmul.f32 %v3450, 1.442695
          %v3478 = vpow.pop %v3477
          %v3479 = vmul.f32 %v3451, 1.442695
          %v3480 = vpow.pop %v3479
          %v3481 = vmul.f32 %v3452, 1.442695
          %v3482 = vpow.pop %v3481
          %v3483 = vmul.f32 %v3453, 1.442695
          %v3484 = vpow.pop %v3483
          %v3485 = vmul.f32 %v3454, 1.442695
          %v3486 = vpow.pop %v3485
          %v3487 = vadd.f32 %v3456, 1.0
          %v3488 = vadd.f32 %v3458, 1.0
          %v3489 = vadd.f32 %v3460, 1.0
          %v3490 = vadd.f32 %v3462, 1.0
          %v3491 = vadd.f32 %v3464, 1.0
          %v3492 = vadd.f32 %v3466, 1.0
          %v3493 = vadd.f32 %v3468, 1.0
          %v3494 = vadd.f32 %v3470, 1.0
          %v3495 = vadd.f32 %v3472, 1.0
          %v3496 = vadd.f32 %v3474, 1.0
          %v3497 = vadd.f32 %v3476, 1.0
          %v3498 = vadd.f32 %v3478, 1.0
          %v3499 = vadd.f32 %v3480, 1.0
          %v3500 = vadd.f32 %v3482, 1.0
          %v3501 = vadd.f32 %v3484, 1.0
          %v3502 = vadd.f32 %v3486, 1.0
          %v3503 = vlog2.pop %v3487
          %v3504 = vmul.f32 %v3503, 0.6931472
          %v3505 = vlog2.pop %v3488
          %v3506 = vmul.f32 %v3505, 0.6931472
          %v3507 = vlog2.pop %v3489
          %v3508 = vmul.f32 %v3507, 0.6931472
          %v3509 = vlog2.pop %v3490
          %v3510 = vmul.f32 %v3509, 0.6931472
          %v3511 = vlog2.pop %v3491
          %v3512 = vmul.f32 %v3511, 0.6931472
          %v3513 = vlog2.pop %v3492
          %v3514 = vmul.f32 %v3513, 0.6931472
          %v3515 = vlog2.pop %v3493
          %v3516 = vmul.f32 %v3515, 0.6931472
          %v3517 = vlog2.pop %v3494
          %v3518 = vmul.f32 %v3517, 0.6931472
          %v3519 = vlog2.pop %v3495
          %v3520 = vmul.f32 %v3519, 0.6931472
          %v3521 = vlog2.pop %v3496
          %v3522 = vmul.f32 %v3521, 0.6931472
          %v3523 = vlog2.pop %v3497
          %v3524 = vmul.f32 %v3523, 0.6931472
          %v3525 = vlog2.pop %v3498
          %v3526 = vmul.f32 %v3525, 0.6931472
          %v3527 = vlog2.pop %v3499
          %v3528 = vmul.f32 %v3527, 0.6931472
          %v3529 = vlog2.pop %v3500
          %v3530 = vmul.f32 %v3529, 0.6931472
          %v3531 = vlog2.pop %v3501
          %v3532 = vmul.f32 %v3531, 0.6931472
          %v3533 = vlog2.pop %v3502
          %v3534 = vmul.f32 %v3533, 0.6931472
          %v3535 = vadd.f32 %v3407, %v3504
          %v3536 = vadd.f32 %v3408, %v3506
          %v3537 = vadd.f32 %v3409, %v3508
          %v3538 = vadd.f32 %v3410, %v3510
          %v3539 = vadd.f32 %v3411, %v3512
          %v3540 = vadd.f32 %v3412, %v3514
          %v3541 = vadd.f32 %v3413, %v3516
          %v3542 = vadd.f32 %v3414, %v3518
          %v3543 = vadd.f32 %v3415, %v3520
          %v3544 = vadd.f32 %v3416, %v3522
          %v3545 = vadd.f32 %v3417, %v3524
          %v3546 = vadd.f32 %v3418, %v3526
          %v3547 = vadd.f32 %v3419, %v3528
          %v3548 = vadd.f32 %v3420, %v3530
          %v3549 = vadd.f32 %v3421, %v3532
          %v3550 = vadd.f32 %v3422, %v3534
          %v3551 = vsub.f32 %v3535, 0.6931472
          %v3552 = vsub.f32 %v3536, 0.6931472
          %v3553 = vsub.f32 %v3537, 0.6931472
          %v3554 = vsub.f32 %v3538, 0.6931472
          %v3555 = vsub.f32 %v3539, 0.6931472
          %v3556 = vsub.f32 %v3540, 0.6931472
          %v3557 = vsub.f32 %v3541, 0.6931472
          %v3558 = vsub.f32 %v3542, 0.6931472
          %v3559 = vsub.f32 %v3543, 0.6931472
          %v3560 = vsub.f32 %v3544, 0.6931472
          %v3561 = vsub.f32 %v3545, 0.6931472
          %v3562 = vsub.f32 %v3546, 0.6931472
          %v3563 = vsub.f32 %v3547, 0.6931472
          %v3564 = vsub.f32 %v3548, 0.6931472
          %v3565 = vsub.f32 %v3549, 0.6931472
          %v3566 = vsub.f32 %v3550, 0.6931472
          %v3567 = vpack.c.bf16 %v3551, %v3551
          %v3568 = vpack.c.bf16 %v3552, %v3552
          %v3569 = vpack.c.bf16 %v3553, %v3553
          %v3570 = vpack.c.bf16 %v3554, %v3554
          %v3571 = vpack.c.bf16 %v3555, %v3555
          %v3572 = vpack.c.bf16 %v3556, %v3556
          %v3573 = vpack.c.bf16 %v3557, %v3557
          %v3574 = vpack.c.bf16 %v3558, %v3558
          %v3575 = vpack.c.bf16 %v3559, %v3559
          %v3576 = vpack.c.bf16 %v3560, %v3560
          %v3577 = vpack.c.bf16 %v3561, %v3561
          %v3578 = vpack.c.bf16 %v3562, %v3562
          %v3579 = vpack.c.bf16 %v3563, %v3563
          %v3580 = vpack.c.bf16 %v3564, %v3564
          %v3581 = vpack.c.bf16 %v3565, %v3565
          %v3582 = vpack.c.bf16 %v3566, %v3566
          %v3583 = vld [vmem:[%s8] sm:$0xf]
          %v3584 = vld [vmem:[%s8 + $0x4] sm:$0xf]
          %v3585 = vld [vmem:[%s8 + $0x8] sm:$0xf]
          %v3586 = vld [vmem:[%s8 + $0xc] sm:$0xf]
          %v3587 = vld [vmem:[%s9] sm:$0x1]
          %v3589 = vperm.slane %v3587, 0
          %v3607 = vunpack.c.l.b16 %v3567
          %v3608 = vunpack.c.l.b16 %v3568
          %v3609 = vunpack.c.l.b16 %v3569
          %v3610 = vunpack.c.l.b16 %v3570
          %v3611 = vunpack.c.l.b16 %v3571
          %v3612 = vunpack.c.l.b16 %v3572
          %v3613 = vunpack.c.l.b16 %v3573
          %v3614 = vunpack.c.l.b16 %v3574
          %v3615 = vunpack.c.l.b16 %v3575
          %v3616 = vunpack.c.l.b16 %v3576
          %v3617 = vunpack.c.l.b16 %v3577
          %v3618 = vunpack.c.l.b16 %v3578
          %v3619 = vunpack.c.l.b16 %v3579
          %v3620 = vunpack.c.l.b16 %v3580
          %v3621 = vunpack.c.l.b16 %v3581
          %v3622 = vunpack.c.l.b16 %v3582
          %v3623 = vpack.c.b16 %v3608, %v3607
          %v3624 = vpack.c.b16 %v3610, %v3609
          %v3625 = vpack.c.b16 %v3612, %v3611
          %v3626 = vpack.c.b16 %v3614, %v3613
          %v3627 = vpack.c.b16 %v3616, %v3615
          %v3628 = vpack.c.b16 %v3618, %v3617
          %v3629 = vpack.c.b16 %v3620, %v3619
          %v3630 = vpack.c.b16 %v3622, %v3621
          %v3635 = vunpack.c.l.b16 %v3583
          %v3636 = vunpack.c.l.b16 %v3584
          %v3637 = vunpack.c.l.b16 %v3585
          %v3638 = vunpack.c.l.b16 %v3586
          %v3639 = vpack.c.b16 %v3636, %v3635
          %v3640 = vpack.c.b16 %v3638, %v3637
          %vm3643 = vcmask 261120
          %v3645 = vsel %vm3643, %v3623, 0
          %v3648 = vsel %vm3643, %v3624, 0
          %v3651 = vsel %vm3643, %v3625, 0
          %v3654 = vsel %vm3643, %v3626, 0
          %v3657 = vsel %vm3643, %v3627, 0
          %v3660 = vsel %vm3643, %v3628, 0
          %v3663 = vsel %vm3643, %v3629, 0
          %v3666 = vsel %vm3643, %v3630, 0
          %3668 = vmatpush.bf16.msra.mxu0 0
          %3669 = vmatpush.bf16.msra.mxu0 0
          %3670 = vmatpush.bf16.msra.mxu0 0
          %3671 = vmatpush.bf16.msra.mxu0 0
          %3672 = vmatpush.bf16.msra.mxu0 0
          %3673 = vmatpush.bf16.msra.mxu0 0
          %3674 = vmatpush.bf16.msra.mxu0 %v3640
          %3675 = vmatpush.bf16.msra.mxu0 %v3639
          %3676 = vmatmul.bf16.gmra.mxu0 %v3645
          %v3677 = vpop.f32.mrf.mxu0
          %v3678 = vadd.f32 %v3589, %v3677
          %v3679 = vpop.f32.mrf.mxu0
          %v3680 = vadd.f32 %v3589, %v3679
          %3681 = vmatmul.bf16.gmra.mxu0 %v3648
          %v3682 = vpop.f32.mrf.mxu0
          %v3683 = vadd.f32 %v3589, %v3682
          %v3684 = vpop.f32.mrf.mxu0
          %v3685 = vadd.f32 %v3589, %v3684
          %3686 = vmatmul.bf16.gmra.mxu0 %v3651
          %v3687 = vpop.f32.mrf.mxu0
          %v3688 = vadd.f32 %v3589, %v3687
          %v3689 = vpop.f32.mrf.mxu0
          %v3690 = vadd.f32 %v3589, %v3689
          %3691 = vmatmul.bf16.gmra.mxu0 %v3654
          %v3692 = vpop.f32.mrf.mxu0
          %v3693 = vadd.f32 %v3589, %v3692
          %v3694 = vpop.f32.mrf.mxu0
          %v3695 = vadd.f32 %v3589, %v3694
          %3696 = vmatmul.bf16.gmra.mxu0 %v3657
          %v3697 = vpop.f32.mrf.mxu0
          %v3698 = vadd.f32 %v3589, %v3697
          %v3699 = vpop.f32.mrf.mxu0
          %v3700 = vadd.f32 %v3589, %v3699
          %3701 = vmatmul.bf16.gmra.mxu0 %v3660
          %v3702 = vpop.f32.mrf.mxu0
          %v3703 = vadd.f32 %v3589, %v3702
          %v3704 = vpop.f32.mrf.mxu0
          %v3705 = vadd.f32 %v3589, %v3704
          %3706 = vmatmul.bf16.gmra.mxu0 %v3663
          %v3707 = vpop.f32.mrf.mxu0
          %v3708 = vadd.f32 %v3589, %v3707
          %v3709 = vpop.f32.mrf.mxu0
          %v3710 = vadd.f32 %v3589, %v3709
          %3711 = vmatmul.bf16.gmra.mxu0 %v3666
          %v3712 = vpop.f32.mrf.mxu0
          %v3713 = vadd.f32 %v3589, %v3712
          %v3714 = vpop.f32.mrf.mxu0
          %v3715 = vadd.f32 %v3589, %v3714
          %3716 = vdwg.mxu0
          %3718 = vset.pattern.permute.xlu0 0
          %3719 = vperm.xlu0 %3718, %v3297
          %v3720 = vpop.permute.xlu0 %3719
          %3723 = vset.pattern.permute.xlu0 0
          %3724 = vperm.xlu0 %3723, %v3298
          %v3725 = vpop.permute.xlu0 %3724
          %3728 = vset.pattern.permute.xlu0 0
          %3729 = vperm.xlu0 %3728, %v3299
          %v3730 = vpop.permute.xlu0 %3729
          %3733 = vset.pattern.permute.xlu0 0
          %3734 = vperm.xlu0 %3733, %v3300
          %v3735 = vpop.permute.xlu0 %3734
          %3738 = vset.pattern.permute.xlu0 0
          %3739 = vperm.xlu0 %3738, %v3301
          %v3740 = vpop.permute.xlu0 %3739
          %3743 = vset.pattern.permute.xlu0 0
          %3744 = vperm.xlu0 %3743, %v3302
          %v3745 = vpop.permute.xlu0 %3744
          %3748 = vset.pattern.permute.xlu0 0
          %3749 = vperm.xlu0 %3748, %v3303
          %v3750 = vpop.permute.xlu0 %3749
          %3753 = vset.pattern.permute.xlu0 0
          %3754 = vperm.xlu0 %3753, %v3304
          %v3755 = vpop.permute.xlu0 %3754
          %3758 = vset.pattern.permute.xlu0 0
          %3759 = vperm.xlu0 %3758, %v3305
          %v3760 = vpop.permute.xlu0 %3759
          %3763 = vset.pattern.permute.xlu0 0
          %3764 = vperm.xlu0 %3763, %v3306
          %v3765 = vpop.permute.xlu0 %3764
          %3768 = vset.pattern.permute.xlu0 0
          %3769 = vperm.xlu0 %3768, %v3307
          %v3770 = vpop.permute.xlu0 %3769
          %3773 = vset.pattern.permute.xlu0 0
          %3774 = vperm.xlu0 %3773, %v3308
          %v3775 = vpop.permute.xlu0 %3774
          %3778 = vset.pattern.permute.xlu0 0
          %3779 = vperm.xlu0 %3778, %v3309
          %v3780 = vpop.permute.xlu0 %3779
          %3783 = vset.pattern.permute.xlu0 0
          %3784 = vperm.xlu0 %3783, %v3310
          %v3785 = vpop.permute.xlu0 %3784
          %3788 = vset.pattern.permute.xlu0 0
          %3789 = vperm.xlu0 %3788, %v3311
          %v3790 = vpop.permute.xlu0 %3789
          %3793 = vset.pattern.permute.xlu0 0
          %3794 = vperm.xlu0 %3793, %v3312
          %v3795 = vpop.permute.xlu0 %3794
          %v3797 = vmul.f32 %v3678, %v3720
          %v3798 = vmul.f32 %v3680, %v3725
          %v3799 = vmul.f32 %v3683, %v3730
          %v3800 = vmul.f32 %v3685, %v3735
          %v3801 = vmul.f32 %v3688, %v3740
          %v3802 = vmul.f32 %v3690, %v3745
          %v3803 = vmul.f32 %v3693, %v3750
          %v3804 = vmul.f32 %v3695, %v3755
          %v3805 = vmul.f32 %v3698, %v3760
          %v3806 = vmul.f32 %v3700, %v3765
          %v3807 = vmul.f32 %v3703, %v3770
          %v3808 = vmul.f32 %v3705, %v3775
          %v3809 = vmul.f32 %v3708, %v3780
          %v3810 = vmul.f32 %v3710, %v3785
          %v3811 = vmul.f32 %v3713, %v3790
          %v3812 = vmul.f32 %v3715, %v3795
          %v3813 = vpack.c.bf16 %v3797, %v3797
          %v3814 = vpack.c.bf16 %v3798, %v3798
          %v3815 = vpack.c.bf16 %v3799, %v3799
          %v3816 = vpack.c.bf16 %v3800, %v3800
          %v3817 = vpack.c.bf16 %v3801, %v3801
          %v3818 = vpack.c.bf16 %v3802, %v3802
          %v3819 = vpack.c.bf16 %v3803, %v3803
          %v3820 = vpack.c.bf16 %v3804, %v3804
          %v3821 = vpack.c.bf16 %v3805, %v3805
          %v3822 = vpack.c.bf16 %v3806, %v3806
          %v3823 = vpack.c.bf16 %v3807, %v3807
          %v3824 = vpack.c.bf16 %v3808, %v3808
          %v3825 = vpack.c.bf16 %v3809, %v3809
          %v3826 = vpack.c.bf16 %v3810, %v3810
          %v3827 = vpack.c.bf16 %v3811, %v3811
          %v3828 = vpack.c.bf16 %v3812, %v3812
          %vm3829 = vcmask 257024
          %3830 = vst.msk [vmem:[#allocation3] sm:$0xf] %vm3829, %v3813
          %3831 = vst.msk [vmem:[#allocation3 + $0x4] sm:$0xf] %vm3829, %v3814
          %3832 = vst.msk [vmem:[#allocation3 + $0x8] sm:$0xf] %vm3829, %v3815
          %3833 = vst.msk [vmem:[#allocation3 + $0xc] sm:$0xf] %vm3829, %v3816
          %3834 = vst.msk [vmem:[#allocation3 + $0x10] sm:$0xf] %vm3829, %v3817
          %3835 = vst.msk [vmem:[#allocation3 + $0x14] sm:$0xf] %vm3829, %v3818
          %3836 = vst.msk [vmem:[#allocation3 + $0x18] sm:$0xf] %vm3829, %v3819
          %3837 = vst.msk [vmem:[#allocation3 + $0x1c] sm:$0xf] %vm3829, %v3820
          %3838 = vst.msk [vmem:[#allocation3 + $0x20] sm:$0xf] %vm3829, %v3821
          %3839 = vst.msk [vmem:[#allocation3 + $0x24] sm:$0xf] %vm3829, %v3822
          %3840 = vst.msk [vmem:[#allocation3 + $0x28] sm:$0xf] %vm3829, %v3823
          %3841 = vst.msk [vmem:[#allocation3 + $0x2c] sm:$0xf] %vm3829, %v3824
          %3842 = vst.msk [vmem:[#allocation3 + $0x30] sm:$0xf] %vm3829, %v3825
          %3843 = vst.msk [vmem:[#allocation3 + $0x34] sm:$0xf] %vm3829, %v3826
          %3844 = vst.msk [vmem:[#allocation3 + $0x38] sm:$0xf] %vm3829, %v3827
          %3845 = vst.msk [vmem:[#allocation3 + $0x3c] sm:$0xf] %vm3829, %v3828
          %s3846 = scalar_lea.vmem %s8, 16
          %v3847 = vld [vmem:[%s3846] sm:$0xf]
          %v3848 = vld [vmem:[%s3846 + $0x4] sm:$0xf]
          %v3849 = vld [vmem:[%s3846 + $0x8] sm:$0xf]
          %v3850 = vld [vmem:[%s3846 + $0xc] sm:$0xf]
          %s3851 = scalar_lea.vmem %s9, 1
          %v3852 = vld [vmem:[%s3851] sm:$0x1]
          %v3854 = vperm.slane %v3852, 0
          %3856 = vrot.lane.b32.xlu0 %v3623, 96
          %v3857 = vpop.permute.xlu0 %3856
          %3858 = vrot.lane.b32.xlu0 %v3624, 96
          %v3859 = vpop.permute.xlu0 %3858
          %3860 = vrot.lane.b32.xlu0 %v3625, 96
          %v3861 = vpop.permute.xlu0 %3860
          %3862 = vrot.lane.b32.xlu0 %v3626, 96
          %v3863 = vpop.permute.xlu0 %3862
          %3864 = vrot.lane.b32.xlu0 %v3627, 96
          %v3865 = vpop.permute.xlu0 %3864
          %3866 = vrot.lane.b32.xlu0 %v3628, 96
          %v3867 = vpop.permute.xlu0 %3866
          %3868 = vrot.lane.b32.xlu0 %v3629, 96
          %v3869 = vpop.permute.xlu0 %3868
          %3870 = vrot.lane.b32.xlu0 %v3630, 96
          %v3871 = vpop.permute.xlu0 %3870
          %v3876 = vunpack.c.l.b16 %v3847
          %v3877 = vunpack.c.l.b16 %v3848
          %v3878 = vunpack.c.l.b16 %v3849
          %v3879 = vunpack.c.l.b16 %v3850
          %v3880 = vpack.c.b16 %v3877, %v3876
          %v3881 = vpack.c.b16 %v3879, %v3878
          %v3885 = vsel %vm3643, %v3857, 0
          %v3888 = vsel %vm3643, %v3859, 0
          %v3891 = vsel %vm3643, %v3861, 0
          %v3894 = vsel %vm3643, %v3863, 0
          %v3897 = vsel %vm3643, %v3865, 0
          %v3900 = vsel %vm3643, %v3867, 0
          %v3903 = vsel %vm3643, %v3869, 0
          %v3906 = vsel %vm3643, %v3871, 0
          %3908 = vmatpush.bf16.msra.mxu0 0
          %3909 = vmatpush.bf16.msra.mxu0 0
          %3910 = vmatpush.bf16.msra.mxu0 0
          %3911 = vmatpush.bf16.msra.mxu0 0
          %3912 = vmatpush.bf16.msra.mxu0 0
          %3913 = vmatpush.bf16.msra.mxu0 0
          %3914 = vmatpush.bf16.msra.mxu0 %v3881
          %3915 = vmatpush.bf16.msra.mxu0 %v3880
          %3916 = vmatmul.bf16.gmra.mxu0 %v3885
          %v3917 = vpop.f32.mrf.mxu0
          %v3918 = vadd.f32 %v3854, %v3917
          %v3919 = vpop.f32.mrf.mxu0
          %v3920 = vadd.f32 %v3854, %v3919
          %3921 = vmatmul.bf16.gmra.mxu0 %v3888
          %v3922 = vpop.f32.mrf.mxu0
          %v3923 = vadd.f32 %v3854, %v3922
          %v3924 = vpop.f32.mrf.mxu0
          %v3925 = vadd.f32 %v3854, %v3924
          %3926 = vmatmul.bf16.gmra.mxu0 %v3891
          %v3927 = vpop.f32.mrf.mxu0
          %v3928 = vadd.f32 %v3854, %v3927
          %v3929 = vpop.f32.mrf.mxu0
          %v3930 = vadd.f32 %v3854, %v3929
          %3931 = vmatmul.bf16.gmra.mxu0 %v3894
          %v3932 = vpop.f32.mrf.mxu0
          %v3933 = vadd.f32 %v3854, %v3932
          %v3934 = vpop.f32.mrf.mxu0
          %v3935 = vadd.f32 %v3854, %v3934
          %3936 = vmatmul.bf16.gmra.mxu0 %v3897
          %v3937 = vpop.f32.mrf.mxu0
          %v3938 = vadd.f32 %v3854, %v3937
          %v3939 = vpop.f32.mrf.mxu0
          %v3940 = vadd.f32 %v3854, %v3939
          %3941 = vmatmul.bf16.gmra.mxu0 %v3900
          %v3942 = vpop.f32.mrf.mxu0
          %v3943 = vadd.f32 %v3854, %v3942
          %v3944 = vpop.f32.mrf.mxu0
          %v3945 = vadd.f32 %v3854, %v3944
          %3946 = vmatmul.bf16.gmra.mxu0 %v3903
          %v3947 = vpop.f32.mrf.mxu0
          %v3948 = vadd.f32 %v3854, %v3947
          %v3949 = vpop.f32.mrf.mxu0
          %v3950 = vadd.f32 %v3854, %v3949
          %3951 = vmatmul.bf16.gmra.mxu0 %v3906
          %v3952 = vpop.f32.mrf.mxu0
          %v3953 = vadd.f32 %v3854, %v3952
          %v3954 = vpop.f32.mrf.mxu0
          %v3955 = vadd.f32 %v3854, %v3954
          %3956 = vdwg.mxu0
          %v3957 = vmul.f32 %v3918, %v3720
          %v3958 = vmul.f32 %v3920, %v3725
          %v3959 = vmul.f32 %v3923, %v3730
          %v3960 = vmul.f32 %v3925, %v3735
          %v3961 = vmul.f32 %v3928, %v3740
          %v3962 = vmul.f32 %v3930, %v3745
          %v3963 = vmul.f32 %v3933, %v3750
          %v3964 = vmul.f32 %v3935, %v3755
          %v3965 = vmul.f32 %v3938, %v3760
          %v3966 = vmul.f32 %v3940, %v3765
          %v3967 = vmul.f32 %v3943, %v3770
          %v3968 = vmul.f32 %v3945, %v3775
          %v3969 = vmul.f32 %v3948, %v3780
          %v3970 = vmul.f32 %v3950, %v3785
          %v3971 = vmul.f32 %v3953, %v3790
          %v3972 = vmul.f32 %v3955, %v3795
          %v3973 = vpack.c.bf16 %v3957, %v3957
          %v3974 = vpack.c.bf16 %v3958, %v3958
          %v3975 = vpack.c.bf16 %v3959, %v3959
          %v3976 = vpack.c.bf16 %v3960, %v3960
          %v3977 = vpack.c.bf16 %v3961, %v3961
          %v3978 = vpack.c.bf16 %v3962, %v3962
          %v3979 = vpack.c.bf16 %v3963, %v3963
          %v3980 = vpack.c.bf16 %v3964, %v3964
          %v3981 = vpack.c.bf16 %v3965, %v3965
          %v3982 = vpack.c.bf16 %v3966, %v3966
          %v3983 = vpack.c.bf16 %v3967, %v3967
          %v3984 = vpack.c.bf16 %v3968, %v3968
          %v3985 = vpack.c.bf16 %v3969, %v3969
          %v3986 = vpack.c.bf16 %v3970, %v3970
          %v3987 = vpack.c.bf16 %v3971, %v3971
          %v3988 = vpack.c.bf16 %v3972, %v3972
          %s3989 = scalar_lea.vmem [#allocation3], 64
          %3990 = vst.msk [vmem:[%s3989] sm:$0xf] %vm3829, %v3973
          %3991 = vst.msk [vmem:[%s3989 + $0x4] sm:$0xf] %vm3829, %v3974
          %3992 = vst.msk [vmem:[%s3989 + $0x8] sm:$0xf] %vm3829, %v3975
          %3993 = vst.msk [vmem:[%s3989 + $0xc] sm:$0xf] %vm3829, %v3976
          %3994 = vst.msk [vmem:[%s3989 + $0x10] sm:$0xf] %vm3829, %v3977
          %3995 = vst.msk [vmem:[%s3989 + $0x14] sm:$0xf] %vm3829, %v3978
          %3996 = vst.msk [vmem:[%s3989 + $0x18] sm:$0xf] %vm3829, %v3979
          %3997 = vst.msk [vmem:[%s3989 + $0x1c] sm:$0xf] %vm3829, %v3980
          %3998 = vst.msk [vmem:[%s3989 + $0x20] sm:$0xf] %vm3829, %v3981
          %3999 = vst.msk [vmem:[%s3989 + $0x24] sm:$0xf] %vm3829, %v3982
          %4000 = vst.msk [vmem:[%s3989 + $0x28] sm:$0xf] %vm3829, %v3983
          %4001 = vst.msk [vmem:[%s3989 + $0x2c] sm:$0xf] %vm3829, %v3984
          %4002 = vst.msk [vmem:[%s3989 + $0x30] sm:$0xf] %vm3829, %v3985
          %4003 = vst.msk [vmem:[%s3989 + $0x34] sm:$0xf] %vm3829, %v3986
          %4004 = vst.msk [vmem:[%s3989 + $0x38] sm:$0xf] %vm3829, %v3987
          %4005 = vst.msk [vmem:[%s3989 + $0x3c] sm:$0xf] %vm3829, %v3988
          %s4006 = scalar_lea.vmem %s8, 32
          %v4007 = vld [vmem:[%s4006] sm:$0xf]
          %v4008 = vld [vmem:[%s4006 + $0x4] sm:$0xf]
          %v4009 = vld [vmem:[%s4006 + $0x8] sm:$0xf]
          %v4010 = vld [vmem:[%s4006 + $0xc] sm:$0xf]
          %s4011 = scalar_lea.vmem %s9, 2
          %v4012 = vld [vmem:[%s4011] sm:$0x1]
          %v4014 = vperm.slane %v4012, 0
          %4016 = vrot.lane.b32.xlu0 %v3623, 64
          %v4017 = vpop.permute.xlu0 %4016
          %4018 = vrot.lane.b32.xlu0 %v3624, 64
          %v4019 = vpop.permute.xlu0 %4018
          %4020 = vrot.lane.b32.xlu0 %v3625, 64
          %v4021 = vpop.permute.xlu0 %4020
          %4022 = vrot.lane.b32.xlu0 %v3626, 64
          %v4023 = vpop.permute.xlu0 %4022
          %4024 = vrot.lane.b32.xlu0 %v3627, 64
          %v4025 = vpop.permute.xlu0 %4024
          %4026 = vrot.lane.b32.xlu0 %v3628, 64
          %v4027 = vpop.permute.xlu0 %4026
          %4028 = vrot.lane.b32.xlu0 %v3629, 64
          %v4029 = vpop.permute.xlu0 %4028
          %4030 = vrot.lane.b32.xlu0 %v3630, 64
          %v4031 = vpop.permute.xlu0 %4030
          %v4036 = vunpack.c.l.b16 %v4007
          %v4037 = vunpack.c.l.b16 %v4008
          %v4038 = vunpack.c.l.b16 %v4009
          %v4039 = vunpack.c.l.b16 %v4010
          %v4040 = vpack.c.b16 %v4037, %v4036
          %v4041 = vpack.c.b16 %v4039, %v4038
          %v4045 = vsel %vm3643, %v4017, 0
          %v4048 = vsel %vm3643, %v4019, 0
          %v4051 = vsel %vm3643, %v4021, 0
          %v4054 = vsel %vm3643, %v4023, 0
          %v4057 = vsel %vm3643, %v4025, 0
          %v4060 = vsel %vm3643, %v4027, 0
          %v4063 = vsel %vm3643, %v4029, 0
          %v4066 = vsel %vm3643, %v4031, 0
          %4068 = vmatpush.bf16.msra.mxu0 0
          %4069 = vmatpush.bf16.msra.mxu0 0
          %4070 = vmatpush.bf16.msra.mxu0 0
          %4071 = vmatpush.bf16.msra.mxu0 0
          %4072 = vmatpush.bf16.msra.mxu0 0
          %4073 = vmatpush.bf16.msra.mxu0 0
          %4074 = vmatpush.bf16.msra.mxu0 %v4041
          %4075 = vmatpush.bf16.msra.mxu0 %v4040
          %4076 = vmatmul.bf16.gmra.mxu0 %v4045
          %v4077 = vpop.f32.mrf.mxu0
          %v4078 = vadd.f32 %v4014, %v4077
          %v4079 = vpop.f32.mrf.mxu0
          %v4080 = vadd.f32 %v4014, %v4079
          %4081 = vmatmul.bf16.gmra.mxu0 %v4048
          %v4082 = vpop.f32.mrf.mxu0
          %v4083 = vadd.f32 %v4014, %v4082
          %v4084 = vpop.f32.mrf.mxu0
          %v4085 = vadd.f32 %v4014, %v4084
          %4086 = vmatmul.bf16.gmra.mxu0 %v4051
          %v4087 = vpop.f32.mrf.mxu0
          %v4088 = vadd.f32 %v4014, %v4087
          %v4089 = vpop.f32.mrf.mxu0
          %v4090 = vadd.f32 %v4014, %v4089
          %4091 = vmatmul.bf16.gmra.mxu0 %v4054
          %v4092 = vpop.f32.mrf.mxu0
          %v4093 = vadd.f32 %v4014, %v4092
          %v4094 = vpop.f32.mrf.mxu0
          %v4095 = vadd.f32 %v4014, %v4094
          %4096 = vmatmul.bf16.gmra.mxu0 %v4057
          %v4097 = vpop.f32.mrf.mxu0
          %v4098 = vadd.f32 %v4014, %v4097
          %v4099 = vpop.f32.mrf.mxu0
          %v4100 = vadd.f32 %v4014, %v4099
          %4101 = vmatmul.bf16.gmra.mxu0 %v4060
          %v4102 = vpop.f32.mrf.mxu0
          %v4103 = vadd.f32 %v4014, %v4102
          %v4104 = vpop.f32.mrf.mxu0
          %v4105 = vadd.f32 %v4014, %v4104
          %4106 = vmatmul.bf16.gmra.mxu0 %v4063
          %v4107 = vpop.f32.mrf.mxu0
          %v4108 = vadd.f32 %v4014, %v4107
          %v4109 = vpop.f32.mrf.mxu0
          %v4110 = vadd.f32 %v4014, %v4109
          %4111 = vmatmul.bf16.gmra.mxu0 %v4066
          %v4112 = vpop.f32.mrf.mxu0
          %v4113 = vadd.f32 %v4014, %v4112
          %v4114 = vpop.f32.mrf.mxu0
          %v4115 = vadd.f32 %v4014, %v4114
          %4116 = vdwg.mxu0
          %v4117 = vmul.f32 %v4078, %v3720
          %v4118 = vmul.f32 %v4080, %v3725
          %v4119 = vmul.f32 %v4083, %v3730
          %v4120 = vmul.f32 %v4085, %v3735
          %v4121 = vmul.f32 %v4088, %v3740
          %v4122 = vmul.f32 %v4090, %v3745
          %v4123 = vmul.f32 %v4093, %v3750
          %v4124 = vmul.f32 %v4095, %v3755
          %v4125 = vmul.f32 %v4098, %v3760
          %v4126 = vmul.f32 %v4100, %v3765
          %v4127 = vmul.f32 %v4103, %v3770
          %v4128 = vmul.f32 %v4105, %v3775
          %v4129 = vmul.f32 %v4108, %v3780
          %v4130 = vmul.f32 %v4110, %v3785
          %v4131 = vmul.f32 %v4113, %v3790
          %v4132 = vmul.f32 %v4115, %v3795
          %v4133 = vpack.c.bf16 %v4117, %v4117
          %v4134 = vpack.c.bf16 %v4118, %v4118
          %v4135 = vpack.c.bf16 %v4119, %v4119
          %v4136 = vpack.c.bf16 %v4120, %v4120
          %v4137 = vpack.c.bf16 %v4121, %v4121
          %v4138 = vpack.c.bf16 %v4122, %v4122
          %v4139 = vpack.c.bf16 %v4123, %v4123
          %v4140 = vpack.c.bf16 %v4124, %v4124
          %v4141 = vpack.c.bf16 %v4125, %v4125
          %v4142 = vpack.c.bf16 %v4126, %v4126
          %v4143 = vpack.c.bf16 %v4127, %v4127
          %v4144 = vpack.c.bf16 %v4128, %v4128
          %v4145 = vpack.c.bf16 %v4129, %v4129
          %v4146 = vpack.c.bf16 %v4130, %v4130
          %v4147 = vpack.c.bf16 %v4131, %v4131
          %v4148 = vpack.c.bf16 %v4132, %v4132
          %s4149 = scalar_lea.vmem [#allocation3], 128
          %4150 = vst.msk [vmem:[%s4149] sm:$0xf] %vm3829, %v4133
          %4151 = vst.msk [vmem:[%s4149 + $0x4] sm:$0xf] %vm3829, %v4134
          %4152 = vst.msk [vmem:[%s4149 + $0x8] sm:$0xf] %vm3829, %v4135
          %4153 = vst.msk [vmem:[%s4149 + $0xc] sm:$0xf] %vm3829, %v4136
          %4154 = vst.msk [vmem:[%s4149 + $0x10] sm:$0xf] %vm3829, %v4137
          %4155 = vst.msk [vmem:[%s4149 + $0x14] sm:$0xf] %vm3829, %v4138
          %4156 = vst.msk [vmem:[%s4149 + $0x18] sm:$0xf] %vm3829, %v4139
          %4157 = vst.msk [vmem:[%s4149 + $0x1c] sm:$0xf] %vm3829, %v4140
          %4158 = vst.msk [vmem:[%s4149 + $0x20] sm:$0xf] %vm3829, %v4141
          %4159 = vst.msk [vmem:[%s4149 + $0x24] sm:$0xf] %vm3829, %v4142
          %4160 = vst.msk [vmem:[%s4149 + $0x28] sm:$0xf] %vm3829, %v4143
          %4161 = vst.msk [vmem:[%s4149 + $0x2c] sm:$0xf] %vm3829, %v4144
          %4162 = vst.msk [vmem:[%s4149 + $0x30] sm:$0xf] %vm3829, %v4145
          %4163 = vst.msk [vmem:[%s4149 + $0x34] sm:$0xf] %vm3829, %v4146
          %4164 = vst.msk [vmem:[%s4149 + $0x38] sm:$0xf] %vm3829, %v4147
          %4165 = vst.msk [vmem:[%s4149 + $0x3c] sm:$0xf] %vm3829, %v4148
          %v4166 = vld [vmem:[%s1] sm:$0xff]
          %v4167 = vld [vmem:[%s1 + $0x8] sm:$0xff]
          %v4168 = vld [vmem:[%s1 + $0x10] sm:$0xff]
          %v4169 = vld [vmem:[%s1 + $0x18] sm:$0xff]
          %v4170 = vld [vmem:[%s1 + $0x20] sm:$0xff]
          %v4171 = vld [vmem:[%s1 + $0x28] sm:$0xff]
          %v4172 = vld [vmem:[%s1 + $0x30] sm:$0xff]
          %v4173 = vld [vmem:[%s1 + $0x38] sm:$0xff]
          %v4174 = vld [vmem:[%s1 + $0x40] sm:$0xff]
          %v4175 = vld [vmem:[%s1 + $0x48] sm:$0xff]
          %v4176 = vld [vmem:[%s1 + $0x50] sm:$0xff]
          %v4177 = vld [vmem:[%s1 + $0x58] sm:$0xff]
          %v4178 = vld [vmem:[%s1 + $0x60] sm:$0xff]
          %v4179 = vld [vmem:[%s1 + $0x68] sm:$0xff]
          %v4180 = vld [vmem:[%s1 + $0x70] sm:$0xff]
          %v4181 = vld [vmem:[%s1 + $0x78] sm:$0xff]
          %4182 = vst.msk [vmem:[#allocation2] sm:$0xff] %vm3643, %v4166
          %4183 = vst.msk [vmem:[#allocation2 + $0x8] sm:$0xff] %vm3643, %v4167
          %4184 = vst.msk [vmem:[#allocation2 + $0x10] sm:$0xff] %vm3643, %v4168
          %4185 = vst.msk [vmem:[#allocation2 + $0x18] sm:$0xff] %vm3643, %v4169
          %4186 = vst.msk [vmem:[#allocation2 + $0x20] sm:$0xff] %vm3643, %v4170
          %4187 = vst.msk [vmem:[#allocation2 + $0x28] sm:$0xff] %vm3643, %v4171
          %4188 = vst.msk [vmem:[#allocation2 + $0x30] sm:$0xff] %vm3643, %v4172
          %4189 = vst.msk [vmem:[#allocation2 + $0x38] sm:$0xff] %vm3643, %v4173
          %4190 = vst.msk [vmem:[#allocation2 + $0x40] sm:$0xff] %vm3643, %v4174
          %4191 = vst.msk [vmem:[#allocation2 + $0x48] sm:$0xff] %vm3643, %v4175
          %4192 = vst.msk [vmem:[#allocation2 + $0x50] sm:$0xff] %vm3643, %v4176
          %4193 = vst.msk [vmem:[#allocation2 + $0x58] sm:$0xff] %vm3643, %v4177
          %4194 = vst.msk [vmem:[#allocation2 + $0x60] sm:$0xff] %vm3643, %v4178
          %4195 = vst.msk [vmem:[#allocation2 + $0x68] sm:$0xff] %vm3643, %v4179
          %4196 = vst.msk [vmem:[#allocation2 + $0x70] sm:$0xff] %vm3643, %v4180
          %4197 = vst.msk [vmem:[#allocation2 + $0x78] sm:$0xff] %vm3643, %v4181
        $region112: #{tpu_custom_call.1} parent=95 // pred_fallthru
          _
        %v4198 = vld [vmem:[#allocation2] sm:$0xff]
        %v4199 = vld [vmem:[#allocation2 + $0x8] sm:$0xff]
        %v4200 = vld [vmem:[#allocation2 + $0x10] sm:$0xff]
        %v4201 = vld [vmem:[#allocation2 + $0x18] sm:$0xff]
        %v4202 = vld [vmem:[#allocation2 + $0x20] sm:$0xff]
        %v4203 = vld [vmem:[#allocation2 + $0x28] sm:$0xff]
        %v4204 = vld [vmem:[#allocation2 + $0x30] sm:$0xff]
        %v4205 = vld [vmem:[#allocation2 + $0x38] sm:$0xff]
        %v4206 = vld [vmem:[#allocation2 + $0x40] sm:$0xff]
        %v4207 = vld [vmem:[#allocation2 + $0x48] sm:$0xff]
        %v4208 = vld [vmem:[#allocation2 + $0x50] sm:$0xff]
        %v4209 = vld [vmem:[#allocation2 + $0x58] sm:$0xff]
        %v4210 = vld [vmem:[#allocation2 + $0x60] sm:$0xff]
        %v4211 = vld [vmem:[#allocation2 + $0x68] sm:$0xff]
        %v4212 = vld [vmem:[#allocation2 + $0x70] sm:$0xff]
        %v4213 = vld [vmem:[#allocation2 + $0x78] sm:$0xff]
        %s4214 = smul.u32 %s34, 16
        %s4215 = smul.addr %s4214, 4
        %s4216 = scalar_lea.vmem [#allocation3], %s4215
        %v4217 = vld [vmem:[%s4216] sm:$0xf]
        %v4218 = vld [vmem:[%s4216 + $0x4] sm:$0xf]
        %v4219 = vld [vmem:[%s4216 + $0x8] sm:$0xf]
        %v4220 = vld [vmem:[%s4216 + $0xc] sm:$0xf]
        %v4221 = vld [vmem:[%s4216 + $0x10] sm:$0xf]
        %v4222 = vld [vmem:[%s4216 + $0x14] sm:$0xf]
        %v4223 = vld [vmem:[%s4216 + $0x18] sm:$0xf]
        %v4224 = vld [vmem:[%s4216 + $0x1c] sm:$0xf]
        %v4225 = vld [vmem:[%s4216 + $0x20] sm:$0xf]
        %v4226 = vld [vmem:[%s4216 + $0x24] sm:$0xf]
        %v4227 = vld [vmem:[%s4216 + $0x28] sm:$0xf]
        %v4228 = vld [vmem:[%s4216 + $0x2c] sm:$0xf]
        %v4229 = vld [vmem:[%s4216 + $0x30] sm:$0xf]
        %v4230 = vld [vmem:[%s4216 + $0x34] sm:$0xf]
        %v4231 = vld [vmem:[%s4216 + $0x38] sm:$0xf]
        %v4232 = vld [vmem:[%s4216 + $0x3c] sm:$0xf]
        %v4233 = vunpack.c.l.bf16 %v4217
        %v4234 = vunpack.c.l.bf16 %v4218
        %v4235 = vunpack.c.l.bf16 %v4219
        %v4236 = vunpack.c.l.bf16 %v4220
        %v4237 = vunpack.c.l.bf16 %v4221
        %v4238 = vunpack.c.l.bf16 %v4222
        %v4239 = vunpack.c.l.bf16 %v4223
        %v4240 = vunpack.c.l.bf16 %v4224
        %v4241 = vunpack.c.l.bf16 %v4225
        %v4242 = vunpack.c.l.bf16 %v4226
        %v4243 = vunpack.c.l.bf16 %v4227
        %v4244 = vunpack.c.l.bf16 %v4228
        %v4245 = vunpack.c.l.bf16 %v4229
        %v4246 = vunpack.c.l.bf16 %v4230
        %v4247 = vunpack.c.l.bf16 %v4231
        %v4248 = vunpack.c.l.bf16 %v4232
        %v4249 = vld [vmem:[%s0] sm:$0xff]
        %v4250 = vld [vmem:[%s0 + $0x8] sm:$0xff]
        %v4251 = vld [vmem:[%s0 + $0x10] sm:$0xff]
        %v4252 = vld [vmem:[%s0 + $0x18] sm:$0xff]
        %v4253 = vld [vmem:[%s0 + $0x20] sm:$0xff]
        %v4254 = vld [vmem:[%s0 + $0x28] sm:$0xff]
        %v4255 = vld [vmem:[%s0 + $0x30] sm:$0xff]
        %v4256 = vld [vmem:[%s0 + $0x38] sm:$0xff]
        %v4257 = vld [vmem:[%s0 + $0x40] sm:$0xff]
        %v4258 = vld [vmem:[%s0 + $0x48] sm:$0xff]
        %v4259 = vld [vmem:[%s0 + $0x50] sm:$0xff]
        %v4260 = vld [vmem:[%s0 + $0x58] sm:$0xff]
        %v4261 = vld [vmem:[%s0 + $0x60] sm:$0xff]
        %v4262 = vld [vmem:[%s0 + $0x68] sm:$0xff]
        %v4263 = vld [vmem:[%s0 + $0x70] sm:$0xff]
        %v4264 = vld [vmem:[%s0 + $0x78] sm:$0xff]
        %v4265 = vpack.c.bf16 %v4199, %v4198
        %v4266 = vpack.c.bf16 %v4201, %v4200
        %v4267 = vpack.c.bf16 %v4203, %v4202
        %v4268 = vpack.c.bf16 %v4205, %v4204
        %v4269 = vpack.c.bf16 %v4207, %v4206
        %v4270 = vpack.c.bf16 %v4209, %v4208
        %v4271 = vpack.c.bf16 %v4211, %v4210
        %v4272 = vpack.c.bf16 %v4213, %v4212
        %s4273 = smul.u32 %s34, 4
        %s4274 = smul.addr %s4273, 4
        %s4275 = scalar_lea.vmem %s10, %s4274
        %v4276 = vld [vmem:[%s4275] sm:$0xf]
        %v4277 = vld [vmem:[%s4275 + $0x4] sm:$0xf]
        %v4278 = vld [vmem:[%s4275 + $0x8] sm:$0xf]
        %v4279 = vld [vmem:[%s4275 + $0xc] sm:$0xf]
        %v4284 = vunpack.c.l.b16 %v4276
        %v4285 = vunpack.c.l.b16 %v4277
        %v4286 = vunpack.c.l.b16 %v4278
        %v4287 = vunpack.c.l.b16 %v4279
        %v4288 = vpack.c.b16 %v4285, %v4284
        %v4289 = vpack.c.b16 %v4287, %v4286
        %vm4292 = vcmask 261120
        %v4294 = vsel %vm4292, %v4265, 0
        %v4297 = vsel %vm4292, %v4266, 0
        %v4300 = vsel %vm4292, %v4267, 0
        %v4303 = vsel %vm4292, %v4268, 0
        %v4306 = vsel %vm4292, %v4269, 0
        %v4309 = vsel %vm4292, %v4270, 0
        %v4312 = vsel %vm4292, %v4271, 0
        %v4315 = vsel %vm4292, %v4272, 0
        %4317 = vmatpush.bf16.msra.mxu0 0
        %4318 = vmatpush.bf16.msra.mxu0 0
        %4319 = vmatpush.bf16.msra.mxu0 0
        %4320 = vmatpush.bf16.msra.mxu0 0
        %4321 = vmatpush.bf16.msra.mxu0 0
        %4322 = vmatpush.bf16.msra.mxu0 0
        %4323 = vmatpush.bf16.msra.mxu0 %v4289
        %4324 = vmatpush.bf16.msra.mxu0 %v4288
        %4325 = vmatmul.bf16.gmra.mxu0 %v4294
        %v4326 = vpop.f32.mrf.mxu0
        %v4327 = vadd.f32 0.0, %v4326
        %v4328 = vpop.f32.mrf.mxu0
        %v4329 = vadd.f32 0.0, %v4328
        %4330 = vmatmul.bf16.gmra.mxu0 %v4297
        %v4331 = vpop.f32.mrf.mxu0
        %v4332 = vadd.f32 0.0, %v4331
        %v4333 = vpop.f32.mrf.mxu0
        %v4334 = vadd.f32 0.0, %v4333
        %4335 = vmatmul.bf16.gmra.mxu0 %v4300
        %v4336 = vpop.f32.mrf.mxu0
        %v4337 = vadd.f32 0.0, %v4336
        %v4338 = vpop.f32.mrf.mxu0
        %v4339 = vadd.f32 0.0, %v4338
        %4340 = vmatmul.bf16.gmra.mxu0 %v4303
        %v4341 = vpop.f32.mrf.mxu0
        %v4342 = vadd.f32 0.0, %v4341
        %v4343 = vpop.f32.mrf.mxu0
        %v4344 = vadd.f32 0.0, %v4343
        %4345 = vmatmul.bf16.gmra.mxu0 %v4306
        %v4346 = vpop.f32.mrf.mxu0
        %v4347 = vadd.f32 0.0, %v4346
        %v4348 = vpop.f32.mrf.mxu0
        %v4349 = vadd.f32 0.0, %v4348
        %4350 = vmatmul.bf16.gmra.mxu0 %v4309
        %v4351 = vpop.f32.mrf.mxu0
        %v4352 = vadd.f32 0.0, %v4351
        %v4353 = vpop.f32.mrf.mxu0
        %v4354 = vadd.f32 0.0, %v4353
        %4355 = vmatmul.bf16.gmra.mxu0 %v4312
        %v4356 = vpop.f32.mrf.mxu0
        %v4357 = vadd.f32 0.0, %v4356
        %v4358 = vpop.f32.mrf.mxu0
        %v4359 = vadd.f32 0.0, %v4358
        %4360 = vmatmul.bf16.gmra.mxu0 %v4315
        %v4361 = vpop.f32.mrf.mxu0
        %v4362 = vadd.f32 0.0, %v4361
        %v4363 = vpop.f32.mrf.mxu0
        %v4364 = vadd.f32 0.0, %v4363
        %4365 = vdwg.mxu0
        %v4366 = vld [vmem:[%s2] sm:$0xf]
        %v4367 = vld [vmem:[%s2 + $0x4] sm:$0xf]
        %v4368 = vld [vmem:[%s2 + $0x8] sm:$0xf]
        %v4369 = vld [vmem:[%s2 + $0xc] sm:$0xf]
        %v4370 = vld [vmem:[%s2 + $0x10] sm:$0xf]
        %v4371 = vld [vmem:[%s2 + $0x14] sm:$0xf]
        %v4372 = vld [vmem:[%s2 + $0x18] sm:$0xf]
        %v4373 = vld [vmem:[%s2 + $0x1c] sm:$0xf]
        %v4374 = vld [vmem:[%s2 + $0x20] sm:$0xf]
        %v4375 = vld [vmem:[%s2 + $0x24] sm:$0xf]
        %v4376 = vld [vmem:[%s2 + $0x28] sm:$0xf]
        %v4377 = vld [vmem:[%s2 + $0x2c] sm:$0xf]
        %v4378 = vld [vmem:[%s2 + $0x30] sm:$0xf]
        %v4379 = vld [vmem:[%s2 + $0x34] sm:$0xf]
        %v4380 = vld [vmem:[%s2 + $0x38] sm:$0xf]
        %v4381 = vld [vmem:[%s2 + $0x3c] sm:$0xf]
        %v4382 = vpack.c.bf16 %v4329, %v4327
        %v4383 = vpack.c.bf16 %v4334, %v4332
        %v4384 = vpack.c.bf16 %v4339, %v4337
        %v4385 = vpack.c.bf16 %v4344, %v4342
        %v4386 = vpack.c.bf16 %v4349, %v4347
        %v4387 = vpack.c.bf16 %v4354, %v4352
        %v4388 = vpack.c.bf16 %v4359, %v4357
        %v4389 = vpack.c.bf16 %v4364, %v4362
        %v4406 = vunpack.c.l.b16 %v4366
        %v4407 = vunpack.c.l.b16 %v4367
        %v4408 = vunpack.c.l.b16 %v4368
        %v4409 = vunpack.c.l.b16 %v4369
        %v4410 = vunpack.c.l.b16 %v4370
        %v4411 = vunpack.c.l.b16 %v4371
        %v4412 = vunpack.c.l.b16 %v4372
        %v4413 = vunpack.c.l.b16 %v4373
        %v4414 = vunpack.c.l.b16 %v4374
        %v4415 = vunpack.c.l.b16 %v4375
        %v4416 = vunpack.c.l.b16 %v4376
        %v4417 = vunpack.c.l.b16 %v4377
        %v4418 = vunpack.c.l.b16 %v4378
        %v4419 = vunpack.c.l.b16 %v4379
        %v4420 = vunpack.c.l.b16 %v4380
        %v4421 = vunpack.c.l.b16 %v4381
        %v4422 = vpack.c.b16 %v4407, %v4406
        %v4423 = vpack.c.b16 %v4409, %v4408
        %v4424 = vpack.c.b16 %v4411, %v4410
        %v4425 = vpack.c.b16 %v4413, %v4412
        %v4426 = vpack.c.b16 %v4415, %v4414
        %v4427 = vpack.c.b16 %v4417, %v4416
        %v4428 = vpack.c.b16 %v4419, %v4418
        %v4429 = vpack.c.b16 %v4421, %v4420
        %4438 = vmatpush.bf16.msra.mxu0 %v4389
        %4439 = vmatpush.bf16.msra.mxu0 %v4388
        %4440 = vmatpush.bf16.msra.mxu0 %v4387
        %4441 = vmatpush.bf16.msra.mxu0 %v4386
        %4442 = vmatpush.bf16.msra.mxu0 %v4385
        %4443 = vmatpush.bf16.msra.mxu0 %v4384
        %4444 = vmatpush.bf16.msra.mxu0 %v4383
        %4445 = vmatpush.bf16.msra.mxu0 %v4382
        %4446 = vmatmul.bf16.gmra.mxu0 %v4422
        %v4447 = vpop.f32.mrf.mxu0
        %v4448 = vadd.f32 0.0, %v4447
        %v4449 = vpop.f32.mrf.mxu0
        %v4450 = vadd.f32 0.0, %v4449
        %4451 = vmatmul.bf16.gmra.mxu0 %v4423
        %v4452 = vpop.f32.mrf.mxu0
        %v4453 = vadd.f32 0.0, %v4452
        %v4454 = vpop.f32.mrf.mxu0
        %v4455 = vadd.f32 0.0, %v4454
        %4456 = vmatmul.bf16.gmra.mxu0 %v4424
        %v4457 = vpop.f32.mrf.mxu0
        %v4458 = vadd.f32 0.0, %v4457
        %v4459 = vpop.f32.mrf.mxu0
        %v4460 = vadd.f32 0.0, %v4459
        %4461 = vmatmul.bf16.gmra.mxu0 %v4425
        %v4462 = vpop.f32.mrf.mxu0
        %v4463 = vadd.f32 0.0, %v4462
        %v4464 = vpop.f32.mrf.mxu0
        %v4465 = vadd.f32 0.0, %v4464
        %4466 = vmatmul.bf16.gmra.mxu0 %v4426
        %v4467 = vpop.f32.mrf.mxu0
        %v4468 = vadd.f32 0.0, %v4467
        %v4469 = vpop.f32.mrf.mxu0
        %v4470 = vadd.f32 0.0, %v4469
        %4471 = vmatmul.bf16.gmra.mxu0 %v4427
        %v4472 = vpop.f32.mrf.mxu0
        %v4473 = vadd.f32 0.0, %v4472
        %v4474 = vpop.f32.mrf.mxu0
        %v4475 = vadd.f32 0.0, %v4474
        %4476 = vmatmul.bf16.gmra.mxu0 %v4428
        %v4477 = vpop.f32.mrf.mxu0
        %v4478 = vadd.f32 0.0, %v4477
        %v4479 = vpop.f32.mrf.mxu0
        %v4480 = vadd.f32 0.0, %v4479
        %4481 = vmatmul.bf16.gmra.mxu0 %v4429
        %v4482 = vpop.f32.mrf.mxu0
        %v4483 = vadd.f32 0.0, %v4482
        %v4484 = vpop.f32.mrf.mxu0
        %v4485 = vadd.f32 0.0, %v4484
        %4486 = vdwg.mxu0
        %v4487 = vmul.f32 %v4448, %v4233
        %v4488 = vmul.f32 %v4450, %v4234
        %v4489 = vmul.f32 %v4453, %v4235
        %v4490 = vmul.f32 %v4455, %v4236
        %v4491 = vmul.f32 %v4458, %v4237
        %v4492 = vmul.f32 %v4460, %v4238
        %v4493 = vmul.f32 %v4463, %v4239
        %v4494 = vmul.f32 %v4465, %v4240
        %v4495 = vmul.f32 %v4468, %v4241
        %v4496 = vmul.f32 %v4470, %v4242
        %v4497 = vmul.f32 %v4473, %v4243
        %v4498 = vmul.f32 %v4475, %v4244
        %v4499 = vmul.f32 %v4478, %v4245
        %v4500 = vmul.f32 %v4480, %v4246
        %v4501 = vmul.f32 %v4483, %v4247
        %v4502 = vmul.f32 %v4485, %v4248
        %4504 = vset.pattern.permute.xlu0 1
        %4505 = vperm.xlu0 %4504, %v4249
        %v4506 = vpop.permute.xlu0 %4505
        %4509 = vset.pattern.permute.xlu0 1
        %4510 = vperm.xlu0 %4509, %v4250
        %v4511 = vpop.permute.xlu0 %4510
        %4514 = vset.pattern.permute.xlu0 1
        %4515 = vperm.xlu0 %4514, %v4251
        %v4516 = vpop.permute.xlu0 %4515
        %4519 = vset.pattern.permute.xlu0 1
        %4520 = vperm.xlu0 %4519, %v4252
        %v4521 = vpop.permute.xlu0 %4520
        %4524 = vset.pattern.permute.xlu0 1
        %4525 = vperm.xlu0 %4524, %v4253
        %v4526 = vpop.permute.xlu0 %4525
        %4529 = vset.pattern.permute.xlu0 1
        %4530 = vperm.xlu0 %4529, %v4254
        %v4531 = vpop.permute.xlu0 %4530
        %4534 = vset.pattern.permute.xlu0 1
        %4535 = vperm.xlu0 %4534, %v4255
        %v4536 = vpop.permute.xlu0 %4535
        %4539 = vset.pattern.permute.xlu0 1
        %4540 = vperm.xlu0 %4539, %v4256
        %v4541 = vpop.permute.xlu0 %4540
        %4544 = vset.pattern.permute.xlu0 1
        %4545 = vperm.xlu0 %4544, %v4257
        %v4546 = vpop.permute.xlu0 %4545
        %4549 = vset.pattern.permute.xlu0 1
        %4550 = vperm.xlu0 %4549, %v4258
        %v4551 = vpop.permute.xlu0 %4550
        %4554 = vset.pattern.permute.xlu0 1
        %4555 = vperm.xlu0 %4554, %v4259
        %v4556 = vpop.permute.xlu0 %4555
        %4559 = vset.pattern.permute.xlu0 1
        %4560 = vperm.xlu0 %4559, %v4260
        %v4561 = vpop.permute.xlu0 %4560
        %4564 = vset.pattern.permute.xlu0 1
        %4565 = vperm.xlu0 %4564, %v4261
        %v4566 = vpop.permute.xlu0 %4565
        %4569 = vset.pattern.permute.xlu0 1
        %4570 = vperm.xlu0 %4569, %v4262
        %v4571 = vpop.permute.xlu0 %4570
        %4574 = vset.pattern.permute.xlu0 1
        %4575 = vperm.xlu0 %4574, %v4263
        %v4576 = vpop.permute.xlu0 %4575
        %4579 = vset.pattern.permute.xlu0 1
        %4580 = vperm.xlu0 %4579, %v4264
        %v4581 = vpop.permute.xlu0 %4580
        %v4583 = vadd.f32 %v4487, %v4506
        %v4584 = vadd.f32 %v4488, %v4511
        %v4585 = vadd.f32 %v4489, %v4516
        %v4586 = vadd.f32 %v4490, %v4521
        %v4587 = vadd.f32 %v4491, %v4526
        %v4588 = vadd.f32 %v4492, %v4531
        %v4589 = vadd.f32 %v4493, %v4536
        %v4590 = vadd.f32 %v4494, %v4541
        %v4591 = vadd.f32 %v4495, %v4546
        %v4592 = vadd.f32 %v4496, %v4551
        %v4593 = vadd.f32 %v4497, %v4556
        %v4594 = vadd.f32 %v4498, %v4561
        %v4595 = vadd.f32 %v4499, %v4566
        %v4596 = vadd.f32 %v4500, %v4571
        %v4597 = vadd.f32 %v4501, %v4576
        %v4598 = vadd.f32 %v4502, %v4581
        %v4599 = vsel %vm4292, %v4583, -inf
        %v4600 = vsel %vm4292, %v4584, -inf
        %v4601 = vsel %vm4292, %v4585, -inf
        %v4602 = vsel %vm4292, %v4586, -inf
        %v4603 = vsel %vm4292, %v4587, -inf
        %v4604 = vmax.f32 %v4599, %v4603
        %v4605 = vsel %vm4292, %v4588, -inf
        %v4606 = vmax.f32 %v4600, %v4605
        %v4607 = vsel %vm4292, %v4589, -inf
        %v4608 = vmax.f32 %v4601, %v4607
        %v4609 = vsel %vm4292, %v4590, -inf
        %v4610 = vmax.f32 %v4602, %v4609
        %v4611 = vsel %vm4292, %v4591, -inf
        %v4612 = vmax.f32 %v4604, %v4611
        %v4613 = vsel %vm4292, %v4592, -inf
        %v4614 = vmax.f32 %v4606, %v4613
        %v4615 = vsel %vm4292, %v4593, -inf
        %v4616 = vmax.f32 %v4608, %v4615
        %v4617 = vsel %vm4292, %v4594, -inf
        %v4618 = vmax.f32 %v4610, %v4617
        %v4619 = vsel %vm4292, %v4595, -inf
        %v4620 = vmax.f32 %v4612, %v4619
        %v4621 = vsel %vm4292, %v4596, -inf
        %v4622 = vmax.f32 %v4614, %v4621
        %v4623 = vsel %vm4292, %v4597, -inf
        %v4624 = vmax.f32 %v4616, %v4623
        %v4625 = vsel %vm4292, %v4598, -inf
        %v4626 = vmax.f32 %v4618, %v4625
        %v4627 = vmax.f32 %v4620, %v4622
        %v4628 = vmax.f32 %v4624, %v4626
        %v4629 = vmax.f32 %v4627, %v4628
        %v4630 = vrot.slane %v4629, 4
        %v4631 = vmax.f32 %v4629, %v4630
        %v4632 = vrot.slane %v4631, 2
        %v4633 = vmax.f32 %v4631, %v4632
        %v4634 = vrot.slane %v4633, 1
        %v4635 = vmax.f32 %v4633, %v4634
        %v4636 = vsub.f32 %v4583, %v4635
        %v4637 = vsub.f32 %v4584, %v4635
        %v4638 = vsub.f32 %v4585, %v4635
        %v4639 = vsub.f32 %v4586, %v4635
        %v4640 = vsub.f32 %v4587, %v4635
        %v4641 = vsub.f32 %v4588, %v4635
        %v4642 = vsub.f32 %v4589, %v4635
        %v4643 = vsub.f32 %v4590, %v4635
        %v4644 = vsub.f32 %v4591, %v4635
        %v4645 = vsub.f32 %v4592, %v4635
        %v4646 = vsub.f32 %v4593, %v4635
        %v4647 = vsub.f32 %v4594, %v4635
        %v4648 = vsub.f32 %v4595, %v4635
        %v4649 = vsub.f32 %v4596, %v4635
        %v4650 = vsub.f32 %v4597, %v4635
        %v4651 = vsub.f32 %v4598, %v4635
        %v4652 = vmul.f32 %v4636, 1.442695
        %v4653 = vpow.pop %v4652
        %v4654 = vmul.f32 %v4637, 1.442695
        %v4655 = vpow.pop %v4654
        %v4656 = vmul.f32 %v4638, 1.442695
        %v4657 = vpow.pop %v4656
        %v4658 = vmul.f32 %v4639, 1.442695
        %v4659 = vpow.pop %v4658
        %v4660 = vmul.f32 %v4640, 1.442695
        %v4661 = vpow.pop %v4660
        %v4662 = vmul.f32 %v4641, 1.442695
        %v4663 = vpow.pop %v4662
        %v4664 = vmul.f32 %v4642, 1.442695
        %v4665 = vpow.pop %v4664
        %v4666 = vmul.f32 %v4643, 1.442695
        %v4667 = vpow.pop %v4666
        %v4668 = vmul.f32 %v4644, 1.442695
        %v4669 = vpow.pop %v4668
        %v4670 = vmul.f32 %v4645, 1.442695
        %v4671 = vpow.pop %v4670
        %v4672 = vmul.f32 %v4646, 1.442695
        %v4673 = vpow.pop %v4672
        %v4674 = vmul.f32 %v4647, 1.442695
        %v4675 = vpow.pop %v4674
        %v4676 = vmul.f32 %v4648, 1.442695
        %v4677 = vpow.pop %v4676
        %v4678 = vmul.f32 %v4649, 1.442695
        %v4679 = vpow.pop %v4678
        %v4680 = vmul.f32 %v4650, 1.442695
        %v4681 = vpow.pop %v4680
        %v4682 = vmul.f32 %v4651, 1.442695
        %v4683 = vpow.pop %v4682
        %v4684 = vmul.f32 %v4583, %v4653
        %v4685 = vmul.f32 %v4584, %v4655
        %v4686 = vmul.f32 %v4585, %v4657
        %v4687 = vmul.f32 %v4586, %v4659
        %v4688 = vmul.f32 %v4587, %v4661
        %v4689 = vmul.f32 %v4588, %v4663
        %v4690 = vmul.f32 %v4589, %v4665
        %v4691 = vmul.f32 %v4590, %v4667
        %v4692 = vmul.f32 %v4591, %v4669
        %v4693 = vmul.f32 %v4592, %v4671
        %v4694 = vmul.f32 %v4593, %v4673
        %v4695 = vmul.f32 %v4594, %v4675
        %v4696 = vmul.f32 %v4595, %v4677
        %v4697 = vmul.f32 %v4596, %v4679
        %v4698 = vmul.f32 %v4597, %v4681
        %v4699 = vmul.f32 %v4598, %v4683
        %4716 = vrot.lane.b32.xlu0 %v4653, 32
        %v4717 = vpop.permute.xlu0 %4716
        %4718 = vrot.lane.b32.xlu0 %v4655, 32
        %v4719 = vpop.permute.xlu0 %4718
        %4720 = vrot.lane.b32.xlu0 %v4657, 32
        %v4721 = vpop.permute.xlu0 %4720
        %4722 = vrot.lane.b32.xlu0 %v4659, 32
        %v4723 = vpop.permute.xlu0 %4722
        %4724 = vrot.lane.b32.xlu0 %v4661, 32
        %v4725 = vpop.permute.xlu0 %4724
        %4726 = vrot.lane.b32.xlu0 %v4663, 32
        %v4727 = vpop.permute.xlu0 %4726
        %4728 = vrot.lane.b32.xlu0 %v4665, 32
        %v4729 = vpop.permute.xlu0 %4728
        %4730 = vrot.lane.b32.xlu0 %v4667, 32
        %v4731 = vpop.permute.xlu0 %4730
        %4732 = vrot.lane.b32.xlu0 %v4669, 32
        %v4733 = vpop.permute.xlu0 %4732
        %4734 = vrot.lane.b32.xlu0 %v4671, 32
        %v4735 = vpop.permute.xlu0 %4734
        %4736 = vrot.lane.b32.xlu0 %v4673, 32
        %v4737 = vpop.permute.xlu0 %4736
        %4738 = vrot.lane.b32.xlu0 %v4675, 32
        %v4739 = vpop.permute.xlu0 %4738
        %4740 = vrot.lane.b32.xlu0 %v4677, 32
        %v4741 = vpop.permute.xlu0 %4740
        %4742 = vrot.lane.b32.xlu0 %v4679, 32
        %v4743 = vpop.permute.xlu0 %4742
        %4744 = vrot.lane.b32.xlu0 %v4681, 32
        %v4745 = vpop.permute.xlu0 %4744
        %4746 = vrot.lane.b32.xlu0 %v4683, 32
        %v4747 = vpop.permute.xlu0 %4746
        %v4764 = vsel %vm4292, %v4684, %v4717
        %v4765 = vsel %vm4292, %v4685, %v4719
        %v4766 = vsel %vm4292, %v4686, %v4721
        %v4767 = vsel %vm4292, %v4687, %v4723
        %v4768 = vsel %vm4292, %v4688, %v4725
        %v4769 = vsel %vm4292, %v4689, %v4727
        %v4770 = vsel %vm4292, %v4690, %v4729
        %v4771 = vsel %vm4292, %v4691, %v4731
        %v4772 = vsel %vm4292, %v4692, %v4733
        %v4773 = vsel %vm4292, %v4693, %v4735
        %v4774 = vsel %vm4292, %v4694, %v4737
        %v4775 = vsel %vm4292, %v4695, %v4739
        %v4776 = vsel %vm4292, %v4696, %v4741
        %v4777 = vsel %vm4292, %v4697, %v4743
        %v4778 = vsel %vm4292, %v4698, %v4745
        %v4779 = vsel %vm4292, %v4699, %v4747
        %v4780 = vpack.c.bf16 %v4765, %v4764
        %v4781 = vpack.c.bf16 %v4767, %v4766
        %v4782 = vpack.c.bf16 %v4769, %v4768
        %v4783 = vpack.c.bf16 %v4771, %v4770
        %v4784 = vpack.c.bf16 %v4773, %v4772
        %v4785 = vpack.c.bf16 %v4775, %v4774
        %v4786 = vpack.c.bf16 %v4777, %v4776
        %v4787 = vpack.c.bf16 %v4779, %v4778
        %v4788 = vld [vmem:[%s3] sm:$0xf]
        %v4789 = vld [vmem:[%s3 + $0x4] sm:$0xf]
        %v4790 = vld [vmem:[%s3 + $0x8] sm:$0xf]
        %v4791 = vld [vmem:[%s3 + $0xc] sm:$0xf]
        %v4792 = vld [vmem:[%s3 + $0x10] sm:$0xf]
        %v4793 = vld [vmem:[%s3 + $0x14] sm:$0xf]
        %v4794 = vld [vmem:[%s3 + $0x18] sm:$0xf]
        %v4795 = vld [vmem:[%s3 + $0x1c] sm:$0xf]
        %v4796 = vld [vmem:[%s3 + $0x20] sm:$0xf]
        %v4797 = vld [vmem:[%s3 + $0x24] sm:$0xf]
        %v4798 = vld [vmem:[%s3 + $0x28] sm:$0xf]
        %v4799 = vld [vmem:[%s3 + $0x2c] sm:$0xf]
        %v4800 = vld [vmem:[%s3 + $0x30] sm:$0xf]
        %v4801 = vld [vmem:[%s3 + $0x34] sm:$0xf]
        %v4802 = vld [vmem:[%s3 + $0x38] sm:$0xf]
        %v4803 = vld [vmem:[%s3 + $0x3c] sm:$0xf]
        %v4820 = vunpack.c.l.b16 %v4788
        %v4821 = vunpack.c.l.b16 %v4789
        %v4822 = vunpack.c.l.b16 %v4790
        %v4823 = vunpack.c.l.b16 %v4791
        %v4824 = vunpack.c.l.b16 %v4792
        %v4825 = vunpack.c.l.b16 %v4793
        %v4826 = vunpack.c.l.b16 %v4794
        %v4827 = vunpack.c.l.b16 %v4795
        %v4828 = vunpack.c.l.b16 %v4796
        %v4829 = vunpack.c.l.b16 %v4797
        %v4830 = vunpack.c.l.b16 %v4798
        %v4831 = vunpack.c.l.b16 %v4799
        %v4832 = vunpack.c.l.b16 %v4800
        %v4833 = vunpack.c.l.b16 %v4801
        %v4834 = vunpack.c.l.b16 %v4802
        %v4835 = vunpack.c.l.b16 %v4803
        %v4836 = vpack.c.b16 %v4821, %v4820
        %v4837 = vpack.c.b16 %v4823, %v4822
        %v4838 = vpack.c.b16 %v4825, %v4824
        %v4839 = vpack.c.b16 %v4827, %v4826
        %v4840 = vpack.c.b16 %v4829, %v4828
        %v4841 = vpack.c.b16 %v4831, %v4830
        %v4842 = vpack.c.b16 %v4833, %v4832
        %v4843 = vpack.c.b16 %v4835, %v4834
        %4852 = vmatpush.bf16.msra.mxu0 %v4787
        %4853 = vmatpush.bf16.msra.mxu0 %v4786
        %4854 = vmatpush.bf16.msra.mxu0 %v4785
        %4855 = vmatpush.bf16.msra.mxu0 %v4784
        %4856 = vmatpush.bf16.msra.mxu0 %v4783
        %4857 = vmatpush.bf16.msra.mxu0 %v4782
        %4858 = vmatpush.bf16.msra.mxu0 %v4781
        %4859 = vmatpush.bf16.msra.mxu0 %v4780
        %4860 = vmatmul.bf16.gmra.mxu0 %v4836
        %v4861 = vpop.f32.mrf.mxu0
        %v4862 = vadd.f32 0.0, %v4861
        %v4863 = vpop.f32.mrf.mxu0
        %v4864 = vadd.f32 0.0, %v4863
        %4865 = vmatmul.bf16.gmra.mxu0 %v4837
        %v4866 = vpop.f32.mrf.mxu0
        %v4867 = vadd.f32 0.0, %v4866
        %v4868 = vpop.f32.mrf.mxu0
        %v4869 = vadd.f32 0.0, %v4868
        %4870 = vmatmul.bf16.gmra.mxu0 %v4838
        %v4871 = vpop.f32.mrf.mxu0
        %v4872 = vadd.f32 0.0, %v4871
        %v4873 = vpop.f32.mrf.mxu0
        %v4874 = vadd.f32 0.0, %v4873
        %4875 = vmatmul.bf16.gmra.mxu0 %v4839
        %v4876 = vpop.f32.mrf.mxu0
        %v4877 = vadd.f32 0.0, %v4876
        %v4878 = vpop.f32.mrf.mxu0
        %v4879 = vadd.f32 0.0, %v4878
        %4880 = vmatmul.bf16.gmra.mxu0 %v4840
        %v4881 = vpop.f32.mrf.mxu0
        %v4882 = vadd.f32 0.0, %v4881
        %v4883 = vpop.f32.mrf.mxu0
        %v4884 = vadd.f32 0.0, %v4883
        %4885 = vmatmul.bf16.gmra.mxu0 %v4841
        %v4886 = vpop.f32.mrf.mxu0
        %v4887 = vadd.f32 0.0, %v4886
        %v4888 = vpop.f32.mrf.mxu0
        %v4889 = vadd.f32 0.0, %v4888
        %4890 = vmatmul.bf16.gmra.mxu0 %v4842
        %v4891 = vpop.f32.mrf.mxu0
        %v4892 = vadd.f32 0.0, %v4891
        %v4893 = vpop.f32.mrf.mxu0
        %v4894 = vadd.f32 0.0, %v4893
        %4895 = vmatmul.bf16.gmra.mxu0 %v4843
        %v4896 = vpop.f32.mrf.mxu0
        %v4897 = vadd.f32 0.0, %v4896
        %v4898 = vpop.f32.mrf.mxu0
        %v4899 = vadd.f32 0.0, %v4898
        %4900 = vdwg.mxu0
        %vm4901 = vcmp.gt.f32.partialorder %v4862, 0.0
        %vm4902 = vcmp.gt.f32.partialorder %v4864, 0.0
        %vm4903 = vcmp.gt.f32.partialorder %v4867, 0.0
        %vm4904 = vcmp.gt.f32.partialorder %v4869, 0.0
        %vm4905 = vcmp.gt.f32.partialorder %v4872, 0.0
        %vm4906 = vcmp.gt.f32.partialorder %v4874, 0.0
        %vm4907 = vcmp.gt.f32.partialorder %v4877, 0.0
        %vm4908 = vcmp.gt.f32.partialorder %v4879, 0.0
        %vm4909 = vcmp.gt.f32.partialorder %v4882, 0.0
        %vm4910 = vcmp.gt.f32.partialorder %v4884, 0.0
        %vm4911 = vcmp.gt.f32.partialorder %v4887, 0.0
        %vm4912 = vcmp.gt.f32.partialorder %v4889, 0.0
        %vm4913 = vcmp.gt.f32.partialorder %v4892, 0.0
        %vm4914 = vcmp.gt.f32.partialorder %v4894, 0.0
        %vm4915 = vcmp.gt.f32.partialorder %v4897, 0.0
        %vm4916 = vcmp.gt.f32.partialorder %v4899, 0.0
        %v4917 = vsel %vm4901, %v4862, 1.0
        %v4918 = vsel %vm4902, %v4864, 1.0
        %v4919 = vsel %vm4903, %v4867, 1.0
        %v4920 = vsel %vm4904, %v4869, 1.0
        %v4921 = vsel %vm4905, %v4872, 1.0
        %v4922 = vsel %vm4906, %v4874, 1.0
        %v4923 = vsel %vm4907, %v4877, 1.0
        %v4924 = vsel %vm4908, %v4879, 1.0
        %v4925 = vsel %vm4909, %v4882, 1.0
        %v4926 = vsel %vm4910, %v4884, 1.0
        %v4927 = vsel %vm4911, %v4887, 1.0
        %v4928 = vsel %vm4912, %v4889, 1.0
        %v4929 = vsel %vm4913, %v4892, 1.0
        %v4930 = vsel %vm4914, %v4894, 1.0
        %v4931 = vsel %vm4915, %v4897, 1.0
        %v4932 = vsel %vm4916, %v4899, 1.0
        %v4933 = vrcp.pop %v4917
        %v4934 = vrcp.pop %v4918
        %v4935 = vrcp.pop %v4919
        %v4936 = vrcp.pop %v4920
        %v4937 = vrcp.pop %v4921
        %v4938 = vrcp.pop %v4922
        %v4939 = vrcp.pop %v4923
        %v4940 = vrcp.pop %v4924
        %v4941 = vrcp.pop %v4925
        %v4942 = vrcp.pop %v4926
        %v4943 = vrcp.pop %v4927
        %v4944 = vrcp.pop %v4928
        %v4945 = vrcp.pop %v4929
        %v4946 = vrcp.pop %v4930
        %v4947 = vrcp.pop %v4931
        %v4948 = vrcp.pop %v4932
        %4965 = vrot.lane.b32.xlu0 %v4933, 96
        %v4966 = vpop.permute.xlu0 %4965
        %4967 = vrot.lane.b32.xlu0 %v4934, 96
        %v4968 = vpop.permute.xlu0 %4967
        %4969 = vrot.lane.b32.xlu0 %v4935, 96
        %v4970 = vpop.permute.xlu0 %4969
        %4971 = vrot.lane.b32.xlu0 %v4936, 96
        %v4972 = vpop.permute.xlu0 %4971
        %4973 = vrot.lane.b32.xlu0 %v4937, 96
        %v4974 = vpop.permute.xlu0 %4973
        %4975 = vrot.lane.b32.xlu0 %v4938, 96
        %v4976 = vpop.permute.xlu0 %4975
        %4977 = vrot.lane.b32.xlu0 %v4939, 96
        %v4978 = vpop.permute.xlu0 %4977
        %4979 = vrot.lane.b32.xlu0 %v4940, 96
        %v4980 = vpop.permute.xlu0 %4979
        %4981 = vrot.lane.b32.xlu0 %v4941, 96
        %v4982 = vpop.permute.xlu0 %4981
        %4983 = vrot.lane.b32.xlu0 %v4942, 96
        %v4984 = vpop.permute.xlu0 %4983
        %4985 = vrot.lane.b32.xlu0 %v4943, 96
        %v4986 = vpop.permute.xlu0 %4985
        %4987 = vrot.lane.b32.xlu0 %v4944, 96
        %v4988 = vpop.permute.xlu0 %4987
        %4989 = vrot.lane.b32.xlu0 %v4945, 96
        %v4990 = vpop.permute.xlu0 %4989
        %4991 = vrot.lane.b32.xlu0 %v4946, 96
        %v4992 = vpop.permute.xlu0 %4991
        %4993 = vrot.lane.b32.xlu0 %v4947, 96
        %v4994 = vpop.permute.xlu0 %4993
        %4995 = vrot.lane.b32.xlu0 %v4948, 96
        %v4996 = vpop.permute.xlu0 %4995
        %v5013 = vmul.f32 %v4862, %v4966
        %v5014 = vmul.f32 %v4864, %v4968
        %v5015 = vmul.f32 %v4867, %v4970
        %v5016 = vmul.f32 %v4869, %v4972
        %v5017 = vmul.f32 %v4872, %v4974
        %v5018 = vmul.f32 %v4874, %v4976
        %v5019 = vmul.f32 %v4877, %v4978
        %v5020 = vmul.f32 %v4879, %v4980
        %v5021 = vmul.f32 %v4882, %v4982
        %v5022 = vmul.f32 %v4884, %v4984
        %v5023 = vmul.f32 %v4887, %v4986
        %v5024 = vmul.f32 %v4889, %v4988
        %v5025 = vmul.f32 %v4892, %v4990
        %v5026 = vmul.f32 %v4894, %v4992
        %v5027 = vmul.f32 %v4897, %v4994
        %v5028 = vmul.f32 %v4899, %v4996
        %v5029 = vpack.c.bf16 %v5014, %v5013
        %v5030 = vpack.c.bf16 %v5016, %v5015
        %v5031 = vpack.c.bf16 %v5018, %v5017
        %v5032 = vpack.c.bf16 %v5020, %v5019
        %v5033 = vpack.c.bf16 %v5022, %v5021
        %v5034 = vpack.c.bf16 %v5024, %v5023
        %v5035 = vpack.c.bf16 %v5026, %v5025
        %v5036 = vpack.c.bf16 %v5028, %v5027
        %s5037 = smul.addr %s4273, 4
        %s5038 = scalar_lea.vmem %s11, %s5037
        %v5039 = vld [vmem:[%s5038] sm:$0xf]
        %v5040 = vld [vmem:[%s5038 + $0x4] sm:$0xf]
        %v5041 = vld [vmem:[%s5038 + $0x8] sm:$0xf]
        %v5042 = vld [vmem:[%s5038 + $0xc] sm:$0xf]
        %s5043 = scalar_lea.vmem %s12, %s34
        %v5044 = vld [vmem:[%s5043] sm:$0x1]
        %v5046 = vperm.slane %v5044, 0
        %v5052 = vunpack.c.l.b16 %v5039
        %v5053 = vunpack.c.l.b16 %v5040
        %v5054 = vunpack.c.l.b16 %v5041
        %v5055 = vunpack.c.l.b16 %v5042
        %v5056 = vpack.c.b16 %v5053, %v5052
        %v5057 = vpack.c.b16 %v5055, %v5054
        %v5061 = vsel %vm4292, %v5029, 0
        %v5064 = vsel %vm4292, %v5030, 0
        %v5067 = vsel %vm4292, %v5031, 0
        %v5070 = vsel %vm4292, %v5032, 0
        %v5073 = vsel %vm4292, %v5033, 0
        %v5076 = vsel %vm4292, %v5034, 0
        %v5079 = vsel %vm4292, %v5035, 0
        %v5082 = vsel %vm4292, %v5036, 0
        %5084 = vmatpush.bf16.msra.mxu0 0
        %5085 = vmatpush.bf16.msra.mxu0 0
        %5086 = vmatpush.bf16.msra.mxu0 0
        %5087 = vmatpush.bf16.msra.mxu0 0
        %5088 = vmatpush.bf16.msra.mxu0 0
        %5089 = vmatpush.bf16.msra.mxu0 0
        %5090 = vmatpush.bf16.msra.mxu0 %v5057
        %5091 = vmatpush.bf16.msra.mxu0 %v5056
        %5092 = vmatmul.bf16.gmra.mxu0 %v5061
        %v5093 = vpop.f32.mrf.mxu0
        %v5094 = vadd.f32 %v5046, %v5093
        %v5095 = vpop.f32.mrf.mxu0
        %v5096 = vadd.f32 %v5046, %v5095
        %5097 = vmatmul.bf16.gmra.mxu0 %v5064
        %v5098 = vpop.f32.mrf.mxu0
        %v5099 = vadd.f32 %v5046, %v5098
        %v5100 = vpop.f32.mrf.mxu0
        %v5101 = vadd.f32 %v5046, %v5100
        %5102 = vmatmul.bf16.gmra.mxu0 %v5067
        %v5103 = vpop.f32.mrf.mxu0
        %v5104 = vadd.f32 %v5046, %v5103
        %v5105 = vpop.f32.mrf.mxu0
        %v5106 = vadd.f32 %v5046, %v5105
        %5107 = vmatmul.bf16.gmra.mxu0 %v5070
        %v5108 = vpop.f32.mrf.mxu0
        %v5109 = vadd.f32 %v5046, %v5108
        %v5110 = vpop.f32.mrf.mxu0
        %v5111 = vadd.f32 %v5046, %v5110
        %5112 = vmatmul.bf16.gmra.mxu0 %v5073
        %v5113 = vpop.f32.mrf.mxu0
        %v5114 = vadd.f32 %v5046, %v5113
        %v5115 = vpop.f32.mrf.mxu0
        %v5116 = vadd.f32 %v5046, %v5115
        %5117 = vmatmul.bf16.gmra.mxu0 %v5076
        %v5118 = vpop.f32.mrf.mxu0
        %v5119 = vadd.f32 %v5046, %v5118
        %v5120 = vpop.f32.mrf.mxu0
        %v5121 = vadd.f32 %v5046, %v5120
        %5122 = vmatmul.bf16.gmra.mxu0 %v5079
        %v5123 = vpop.f32.mrf.mxu0
        %v5124 = vadd.f32 %v5046, %v5123
        %v5125 = vpop.f32.mrf.mxu0
        %v5126 = vadd.f32 %v5046, %v5125
        %5127 = vmatmul.bf16.gmra.mxu0 %v5082
        %v5128 = vpop.f32.mrf.mxu0
        %v5129 = vadd.f32 %v5046, %v5128
        %v5130 = vpop.f32.mrf.mxu0
        %v5131 = vadd.f32 %v5046, %v5130
        %5132 = vdwg.mxu0
        %v5133 = vmax.f32 %v5094, 0.0
        %v5134 = vmax.f32 %v5096, 0.0
        %v5135 = vmax.f32 %v5099, 0.0
        %v5136 = vmax.f32 %v5101, 0.0
        %v5137 = vmax.f32 %v5104, 0.0
        %v5138 = vmax.f32 %v5106, 0.0
        %v5139 = vmax.f32 %v5109, 0.0
        %v5140 = vmax.f32 %v5111, 0.0
        %v5141 = vmax.f32 %v5114, 0.0
        %v5142 = vmax.f32 %v5116, 0.0
        %v5143 = vmax.f32 %v5119, 0.0
        %v5144 = vmax.f32 %v5121, 0.0
        %v5145 = vmax.f32 %v5124, 0.0
        %v5146 = vmax.f32 %v5126, 0.0
        %v5147 = vmax.f32 %v5129, 0.0
        %v5148 = vmax.f32 %v5131, 0.0
        %v5149 = vand.u32 2147483647, %v5094
        %v5150 = vand.u32 2147483647, %v5096
        %v5151 = vand.u32 2147483647, %v5099
        %v5152 = vand.u32 2147483647, %v5101
        %v5153 = vand.u32 2147483647, %v5104
        %v5154 = vand.u32 2147483647, %v5106
        %v5155 = vand.u32 2147483647, %v5109
        %v5156 = vand.u32 2147483647, %v5111
        %v5157 = vand.u32 2147483647, %v5114
        %v5158 = vand.u32 2147483647, %v5116
        %v5159 = vand.u32 2147483647, %v5119
        %v5160 = vand.u32 2147483647, %v5121
        %v5161 = vand.u32 2147483647, %v5124
        %v5162 = vand.u32 2147483647, %v5126
        %v5163 = vand.u32 2147483647, %v5129
        %v5164 = vand.u32 2147483647, %v5131
        %v5165 = vsub.f32 0.0, %v5149
        %v5166 = vsub.f32 0.0, %v5150
        %v5167 = vsub.f32 0.0, %v5151
        %v5168 = vsub.f32 0.0, %v5152
        %v5169 = vsub.f32 0.0, %v5153
        %v5170 = vsub.f32 0.0, %v5154
        %v5171 = vsub.f32 0.0, %v5155
        %v5172 = vsub.f32 0.0, %v5156
        %v5173 = vsub.f32 0.0, %v5157
        %v5174 = vsub.f32 0.0, %v5158
        %v5175 = vsub.f32 0.0, %v5159
        %v5176 = vsub.f32 0.0, %v5160
        %v5177 = vsub.f32 0.0, %v5161
        %v5178 = vsub.f32 0.0, %v5162
        %v5179 = vsub.f32 0.0, %v5163
        %v5180 = vsub.f32 0.0, %v5164
        %v5181 = vmul.f32 %v5165, 1.442695
        %v5182 = vpow.pop %v5181
        %v5183 = vmul.f32 %v5166, 1.442695
        %v5184 = vpow.pop %v5183
        %v5185 = vmul.f32 %v5167, 1.442695
        %v5186 = vpow.pop %v5185
        %v5187 = vmul.f32 %v5168, 1.442695
        %v5188 = vpow.pop %v5187
        %v5189 = vmul.f32 %v5169, 1.442695
        %v5190 = vpow.pop %v5189
        %v5191 = vmul.f32 %v5170, 1.442695
        %v5192 = vpow.pop %v5191
        %v5193 = vmul.f32 %v5171, 1.442695
        %v5194 = vpow.pop %v5193
        %v5195 = vmul.f32 %v5172, 1.442695
        %v5196 = vpow.pop %v5195
        %v5197 = vmul.f32 %v5173, 1.442695
        %v5198 = vpow.pop %v5197
        %v5199 = vmul.f32 %v5174, 1.442695
        %v5200 = vpow.pop %v5199
        %v5201 = vmul.f32 %v5175, 1.442695
        %v5202 = vpow.pop %v5201
        %v5203 = vmul.f32 %v5176, 1.442695
        %v5204 = vpow.pop %v5203
        %v5205 = vmul.f32 %v5177, 1.442695
        %v5206 = vpow.pop %v5205
        %v5207 = vmul.f32 %v5178, 1.442695
        %v5208 = vpow.pop %v5207
        %v5209 = vmul.f32 %v5179, 1.442695
        %v5210 = vpow.pop %v5209
        %v5211 = vmul.f32 %v5180, 1.442695
        %v5212 = vpow.pop %v5211
        %v5213 = vadd.f32 %v5182, 1.0
        %v5214 = vadd.f32 %v5184, 1.0
        %v5215 = vadd.f32 %v5186, 1.0
        %v5216 = vadd.f32 %v5188, 1.0
        %v5217 = vadd.f32 %v5190, 1.0
        %v5218 = vadd.f32 %v5192, 1.0
        %v5219 = vadd.f32 %v5194, 1.0
        %v5220 = vadd.f32 %v5196, 1.0
        %v5221 = vadd.f32 %v5198, 1.0
        %v5222 = vadd.f32 %v5200, 1.0
        %v5223 = vadd.f32 %v5202, 1.0
        %v5224 = vadd.f32 %v5204, 1.0
        %v5225 = vadd.f32 %v5206, 1.0
        %v5226 = vadd.f32 %v5208, 1.0
        %v5227 = vadd.f32 %v5210, 1.0
        %v5228 = vadd.f32 %v5212, 1.0
        %v5229 = vlog2.pop %v5213
        %v5230 = vmul.f32 %v5229, 0.6931472
        %v5231 = vlog2.pop %v5214
        %v5232 = vmul.f32 %v5231, 0.6931472
        %v5233 = vlog2.pop %v5215
        %v5234 = vmul.f32 %v5233, 0.6931472
        %v5235 = vlog2.pop %v5216
        %v5236 = vmul.f32 %v5235, 0.6931472
        %v5237 = vlog2.pop %v5217
        %v5238 = vmul.f32 %v5237, 0.6931472
        %v5239 = vlog2.pop %v5218
        %v5240 = vmul.f32 %v5239, 0.6931472
        %v5241 = vlog2.pop %v5219
        %v5242 = vmul.f32 %v5241, 0.6931472
        %v5243 = vlog2.pop %v5220
        %v5244 = vmul.f32 %v5243, 0.6931472
        %v5245 = vlog2.pop %v5221
        %v5246 = vmul.f32 %v5245, 0.6931472
        %v5247 = vlog2.pop %v5222
        %v5248 = vmul.f32 %v5247, 0.6931472
        %v5249 = vlog2.pop %v5223
        %v5250 = vmul.f32 %v5249, 0.6931472
        %v5251 = vlog2.pop %v5224
        %v5252 = vmul.f32 %v5251, 0.6931472
        %v5253 = vlog2.pop %v5225
        %v5254 = vmul.f32 %v5253, 0.6931472
        %v5255 = vlog2.pop %v5226
        %v5256 = vmul.f32 %v5255, 0.6931472
        %v5257 = vlog2.pop %v5227
        %v5258 = vmul.f32 %v5257, 0.6931472
        %v5259 = vlog2.pop %v5228
        %v5260 = vmul.f32 %v5259, 0.6931472
        %v5261 = vadd.f32 %v5133, %v5230
        %v5262 = vadd.f32 %v5134, %v5232
        %v5263 = vadd.f32 %v5135, %v5234
        %v5264 = vadd.f32 %v5136, %v5236
        %v5265 = vadd.f32 %v5137, %v5238
        %v5266 = vadd.f32 %v5138, %v5240
        %v5267 = vadd.f32 %v5139, %v5242
        %v5268 = vadd.f32 %v5140, %v5244
        %v5269 = vadd.f32 %v5141, %v5246
        %v5270 = vadd.f32 %v5142, %v5248
        %v5271 = vadd.f32 %v5143, %v5250
        %v5272 = vadd.f32 %v5144, %v5252
        %v5273 = vadd.f32 %v5145, %v5254
        %v5274 = vadd.f32 %v5146, %v5256
        %v5275 = vadd.f32 %v5147, %v5258
        %v5276 = vadd.f32 %v5148, %v5260
        %v5277 = vsub.f32 %v5261, 0.6931472
        %v5278 = vsub.f32 %v5262, 0.6931472
        %v5279 = vsub.f32 %v5263, 0.6931472
        %v5280 = vsub.f32 %v5264, 0.6931472
        %v5281 = vsub.f32 %v5265, 0.6931472
        %v5282 = vsub.f32 %v5266, 0.6931472
        %v5283 = vsub.f32 %v5267, 0.6931472
        %v5284 = vsub.f32 %v5268, 0.6931472
        %v5285 = vsub.f32 %v5269, 0.6931472
        %v5286 = vsub.f32 %v5270, 0.6931472
        %v5287 = vsub.f32 %v5271, 0.6931472
        %v5288 = vsub.f32 %v5272, 0.6931472
        %v5289 = vsub.f32 %v5273, 0.6931472
        %v5290 = vsub.f32 %v5274, 0.6931472
        %v5291 = vsub.f32 %v5275, 0.6931472
        %v5292 = vsub.f32 %v5276, 0.6931472
        %v5293 = vpack.c.bf16 %v5278, %v5277
        %v5294 = vpack.c.bf16 %v5280, %v5279
        %v5295 = vpack.c.bf16 %v5282, %v5281
        %v5296 = vpack.c.bf16 %v5284, %v5283
        %v5297 = vpack.c.bf16 %v5286, %v5285
        %v5298 = vpack.c.bf16 %v5288, %v5287
        %v5299 = vpack.c.bf16 %v5290, %v5289
        %v5300 = vpack.c.bf16 %v5292, %v5291
        %s5301 = smul.addr %s4273, 4
        %s5302 = scalar_lea.vmem [#allocation9], %s5301
        %v5303 = vld [vmem:[%s5302] sm:$0xf]
        %v5304 = vld [vmem:[%s5302 + $0x4] sm:$0xf]
        %v5305 = vld [vmem:[%s5302 + $0x8] sm:$0xf]
        %v5306 = vld [vmem:[%s5302 + $0xc] sm:$0xf]
        %s5307 = scalar_lea.vmem %s14, %s34
        %v5308 = vld [vmem:[%s5307] sm:$0x1]
        %v5310 = vperm.slane %v5308, 0
        %v5316 = vunpack.c.l.b16 %v5303
        %v5317 = vunpack.c.l.b16 %v5304
        %v5318 = vunpack.c.l.b16 %v5305
        %v5319 = vunpack.c.l.b16 %v5306
        %v5320 = vpack.c.b16 %v5317, %v5316
        %v5321 = vpack.c.b16 %v5319, %v5318
        %v5325 = vsel %vm4292, %v5293, 0
        %v5328 = vsel %vm4292, %v5294, 0
        %v5331 = vsel %vm4292, %v5295, 0
        %v5334 = vsel %vm4292, %v5296, 0
        %v5337 = vsel %vm4292, %v5297, 0
        %v5340 = vsel %vm4292, %v5298, 0
        %v5343 = vsel %vm4292, %v5299, 0
        %v5346 = vsel %vm4292, %v5300, 0
        %5348 = vmatpush.bf16.msra.mxu0 0
        %5349 = vmatpush.bf16.msra.mxu0 0
        %5350 = vmatpush.bf16.msra.mxu0 0
        %5351 = vmatpush.bf16.msra.mxu0 0
        %5352 = vmatpush.bf16.msra.mxu0 0
        %5353 = vmatpush.bf16.msra.mxu0 0
        %5354 = vmatpush.bf16.msra.mxu0 %v5321
        %5355 = vmatpush.bf16.msra.mxu0 %v5320
        %5356 = vmatmul.bf16.gmra.mxu0 %v5325
        %v5357 = vpop.f32.mrf.mxu0
        %v5358 = vadd.f32 %v5310, %v5357
        %v5359 = vpop.f32.mrf.mxu0
        %v5360 = vadd.f32 %v5310, %v5359
        %5361 = vmatmul.bf16.gmra.mxu0 %v5328
        %v5362 = vpop.f32.mrf.mxu0
        %v5363 = vadd.f32 %v5310, %v5362
        %v5364 = vpop.f32.mrf.mxu0
        %v5365 = vadd.f32 %v5310, %v5364
        %5366 = vmatmul.bf16.gmra.mxu0 %v5331
        %v5367 = vpop.f32.mrf.mxu0
        %v5368 = vadd.f32 %v5310, %v5367
        %v5369 = vpop.f32.mrf.mxu0
        %v5370 = vadd.f32 %v5310, %v5369
        %5371 = vmatmul.bf16.gmra.mxu0 %v5334
        %v5372 = vpop.f32.mrf.mxu0
        %v5373 = vadd.f32 %v5310, %v5372
        %v5374 = vpop.f32.mrf.mxu0
        %v5375 = vadd.f32 %v5310, %v5374
        %5376 = vmatmul.bf16.gmra.mxu0 %v5337
        %v5377 = vpop.f32.mrf.mxu0
        %v5378 = vadd.f32 %v5310, %v5377
        %v5379 = vpop.f32.mrf.mxu0
        %v5380 = vadd.f32 %v5310, %v5379
        %5381 = vmatmul.bf16.gmra.mxu0 %v5340
        %v5382 = vpop.f32.mrf.mxu0
        %v5383 = vadd.f32 %v5310, %v5382
        %v5384 = vpop.f32.mrf.mxu0
        %v5385 = vadd.f32 %v5310, %v5384
        %5386 = vmatmul.bf16.gmra.mxu0 %v5343
        %v5387 = vpop.f32.mrf.mxu0
        %v5388 = vadd.f32 %v5310, %v5387
        %v5389 = vpop.f32.mrf.mxu0
        %v5390 = vadd.f32 %v5310, %v5389
        %5391 = vmatmul.bf16.gmra.mxu0 %v5346
        %v5392 = vpop.f32.mrf.mxu0
        %v5393 = vadd.f32 %v5310, %v5392
        %v5394 = vpop.f32.mrf.mxu0
        %v5395 = vadd.f32 %v5310, %v5394
        %5396 = vdwg.mxu0
        %v5397 = vadd.f32 %v4198, %v5358
        %v5398 = vadd.f32 %v4199, %v5360
        %v5399 = vadd.f32 %v4200, %v5363
        %v5400 = vadd.f32 %v4201, %v5365
        %v5401 = vadd.f32 %v4202, %v5368
        %v5402 = vadd.f32 %v4203, %v5370
        %v5403 = vadd.f32 %v4204, %v5373
        %v5404 = vadd.f32 %v4205, %v5375
        %v5405 = vadd.f32 %v4206, %v5378
        %v5406 = vadd.f32 %v4207, %v5380
        %v5407 = vadd.f32 %v4208, %v5383
        %v5408 = vadd.f32 %v4209, %v5385
        %v5409 = vadd.f32 %v4210, %v5388
        %v5410 = vadd.f32 %v4211, %v5390
        %v5411 = vadd.f32 %v4212, %v5393
        %v5412 = vadd.f32 %v4213, %v5395
        %5413 = vst.msk [vmem:[#allocation2] sm:$0xff] %vm4292, %v5397
        %5414 = vst.msk [vmem:[#allocation2 + $0x8] sm:$0xff] %vm4292, %v5398
        %5415 = vst.msk [vmem:[#allocation2 + $0x10] sm:$0xff] %vm4292, %v5399
        %5416 = vst.msk [vmem:[#allocation2 + $0x18] sm:$0xff] %vm4292, %v5400
        %5417 = vst.msk [vmem:[#allocation2 + $0x20] sm:$0xff] %vm4292, %v5401
        %5418 = vst.msk [vmem:[#allocation2 + $0x28] sm:$0xff] %vm4292, %v5402
        %5419 = vst.msk [vmem:[#allocation2 + $0x30] sm:$0xff] %vm4292, %v5403
        %5420 = vst.msk [vmem:[#allocation2 + $0x38] sm:$0xff] %vm4292, %v5404
        %5421 = vst.msk [vmem:[#allocation2 + $0x40] sm:$0xff] %vm4292, %v5405
        %5422 = vst.msk [vmem:[#allocation2 + $0x48] sm:$0xff] %vm4292, %v5406
        %5423 = vst.msk [vmem:[#allocation2 + $0x50] sm:$0xff] %vm4292, %v5407
        %5424 = vst.msk [vmem:[#allocation2 + $0x58] sm:$0xff] %vm4292, %v5408
        %5425 = vst.msk [vmem:[#allocation2 + $0x60] sm:$0xff] %vm4292, %v5409
        %5426 = vst.msk [vmem:[#allocation2 + $0x68] sm:$0xff] %vm4292, %v5410
        %5427 = vst.msk [vmem:[#allocation2 + $0x70] sm:$0xff] %vm4292, %v5411
        %5428 = vst.msk [vmem:[#allocation2 + $0x78] sm:$0xff] %vm4292, %v5412
        %p5429 = scmp.eq.s32.totalorder %s34, 2
        // Predicated region
        $region113: #{tpu_custom_call.1} parent=95 // pred_check
          %p5430 = pneg %p5429
        $region114: #{tpu_custom_call.1} parent=95 // pred_check_branch
          %5432 = sbr.rel (%p5430) target = $region116
        $region115: #{tpu_custom_call.1} parent=95 // pred_region
          %v5433 = vpack.c.bf16 %v5398, %v5397
          %v5434 = vpack.c.bf16 %v5400, %v5399
          %v5435 = vpack.c.bf16 %v5402, %v5401
          %v5436 = vpack.c.bf16 %v5404, %v5403
          %v5437 = vpack.c.bf16 %v5406, %v5405
          %v5438 = vpack.c.bf16 %v5408, %v5407
          %v5439 = vpack.c.bf16 %v5410, %v5409
          %v5440 = vpack.c.bf16 %v5412, %v5411
          %v5441 = vld [vmem:[%s15] sm:$0xf]
          %v5442 = vld [vmem:[%s15 + $0x4] sm:$0xf]
          %v5443 = vld [vmem:[%s15 + $0x8] sm:$0xf]
          %v5444 = vld [vmem:[%s15 + $0xc] sm:$0xf]
          %v5445 = vld [vmem:[%s16] sm:$0x1]
          %v5447 = vperm.slane %v5445, 0
          %v5453 = vunpack.c.l.b16 %v5441
          %v5454 = vunpack.c.l.b16 %v5442
          %v5455 = vunpack.c.l.b16 %v5443
          %v5456 = vunpack.c.l.b16 %v5444
          %v5457 = vpack.c.b16 %v5454, %v5453
          %v5458 = vpack.c.b16 %v5456, %v5455
          %v5462 = vsel %vm4292, %v5433, 0
          %v5465 = vsel %vm4292, %v5434, 0
          %v5468 = vsel %vm4292, %v5435, 0
          %v5471 = vsel %vm4292, %v5436, 0
          %v5474 = vsel %vm4292, %v5437, 0
          %v5477 = vsel %vm4292, %v5438, 0
          %v5480 = vsel %vm4292, %v5439, 0
          %v5483 = vsel %vm4292, %v5440, 0
          %5485 = vmatpush.bf16.msra.mxu0 0
          %5486 = vmatpush.bf16.msra.mxu0 0
          %5487 = vmatpush.bf16.msra.mxu0 0
          %5488 = vmatpush.bf16.msra.mxu0 0
          %5489 = vmatpush.bf16.msra.mxu0 0
          %5490 = vmatpush.bf16.msra.mxu0 0
          %5491 = vmatpush.bf16.msra.mxu0 %v5458
          %5492 = vmatpush.bf16.msra.mxu0 %v5457
          %5493 = vmatmul.bf16.gmra.mxu0 %v5462
          %v5494 = vpop.f32.mrf.mxu0
          %v5495 = vadd.f32 %v5447, %v5494
          %v5496 = vpop.f32.mrf.mxu0
          %v5497 = vadd.f32 %v5447, %v5496
          %5498 = vmatmul.bf16.gmra.mxu0 %v5465
          %v5499 = vpop.f32.mrf.mxu0
          %v5500 = vadd.f32 %v5447, %v5499
          %v5501 = vpop.f32.mrf.mxu0
          %v5502 = vadd.f32 %v5447, %v5501
          %5503 = vmatmul.bf16.gmra.mxu0 %v5468
          %v5504 = vpop.f32.mrf.mxu0
          %v5505 = vadd.f32 %v5447, %v5504
          %v5506 = vpop.f32.mrf.mxu0
          %v5507 = vadd.f32 %v5447, %v5506
          %5508 = vmatmul.bf16.gmra.mxu0 %v5471
          %v5509 = vpop.f32.mrf.mxu0
          %v5510 = vadd.f32 %v5447, %v5509
          %v5511 = vpop.f32.mrf.mxu0
          %v5512 = vadd.f32 %v5447, %v5511
          %5513 = vmatmul.bf16.gmra.mxu0 %v5474
          %v5514 = vpop.f32.mrf.mxu0
          %v5515 = vadd.f32 %v5447, %v5514
          %v5516 = vpop.f32.mrf.mxu0
          %v5517 = vadd.f32 %v5447, %v5516
          %5518 = vmatmul.bf16.gmra.mxu0 %v5477
          %v5519 = vpop.f32.mrf.mxu0
          %v5520 = vadd.f32 %v5447, %v5519
          %v5521 = vpop.f32.mrf.mxu0
          %v5522 = vadd.f32 %v5447, %v5521
          %5523 = vmatmul.bf16.gmra.mxu0 %v5480
          %v5524 = vpop.f32.mrf.mxu0
          %v5525 = vadd.f32 %v5447, %v5524
          %v5526 = vpop.f32.mrf.mxu0
          %v5527 = vadd.f32 %v5447, %v5526
          %5528 = vmatmul.bf16.gmra.mxu0 %v5483
          %v5529 = vpop.f32.mrf.mxu0
          %v5530 = vadd.f32 %v5447, %v5529
          %v5531 = vpop.f32.mrf.mxu0
          %v5532 = vadd.f32 %v5447, %v5531
          %5533 = vdwg.mxu0
          %v5534 = vmax.f32 %v5495, 0.0
          %v5535 = vmax.f32 %v5497, 0.0
          %v5536 = vmax.f32 %v5500, 0.0
          %v5537 = vmax.f32 %v5502, 0.0
          %v5538 = vmax.f32 %v5505, 0.0
          %v5539 = vmax.f32 %v5507, 0.0
          %v5540 = vmax.f32 %v5510, 0.0
          %v5541 = vmax.f32 %v5512, 0.0
          %v5542 = vmax.f32 %v5515, 0.0
          %v5543 = vmax.f32 %v5517, 0.0
          %v5544 = vmax.f32 %v5520, 0.0
          %v5545 = vmax.f32 %v5522, 0.0
          %v5546 = vmax.f32 %v5525, 0.0
          %v5547 = vmax.f32 %v5527, 0.0
          %v5548 = vmax.f32 %v5530, 0.0
          %v5549 = vmax.f32 %v5532, 0.0
          %v5550 = vand.u32 2147483647, %v5495
          %v5551 = vand.u32 2147483647, %v5497
          %v5552 = vand.u32 2147483647, %v5500
          %v5553 = vand.u32 2147483647, %v5502
          %v5554 = vand.u32 2147483647, %v5505
          %v5555 = vand.u32 2147483647, %v5507
          %v5556 = vand.u32 2147483647, %v5510
          %v5557 = vand.u32 2147483647, %v5512
          %v5558 = vand.u32 2147483647, %v5515
          %v5559 = vand.u32 2147483647, %v5517
          %v5560 = vand.u32 2147483647, %v5520
          %v5561 = vand.u32 2147483647, %v5522
          %v5562 = vand.u32 2147483647, %v5525
          %v5563 = vand.u32 2147483647, %v5527
          %v5564 = vand.u32 2147483647, %v5530
          %v5565 = vand.u32 2147483647, %v5532
          %v5566 = vsub.f32 0.0, %v5550
          %v5567 = vsub.f32 0.0, %v5551
          %v5568 = vsub.f32 0.0, %v5552
          %v5569 = vsub.f32 0.0, %v5553
          %v5570 = vsub.f32 0.0, %v5554
          %v5571 = vsub.f32 0.0, %v5555
          %v5572 = vsub.f32 0.0, %v5556
          %v5573 = vsub.f32 0.0, %v5557
          %v5574 = vsub.f32 0.0, %v5558
          %v5575 = vsub.f32 0.0, %v5559
          %v5576 = vsub.f32 0.0, %v5560
          %v5577 = vsub.f32 0.0, %v5561
          %v5578 = vsub.f32 0.0, %v5562
          %v5579 = vsub.f32 0.0, %v5563
          %v5580 = vsub.f32 0.0, %v5564
          %v5581 = vsub.f32 0.0, %v5565
          %v5582 = vmul.f32 %v5566, 1.442695
          %v5583 = vpow.pop %v5582
          %v5584 = vmul.f32 %v5567, 1.442695
          %v5585 = vpow.pop %v5584
          %v5586 = vmul.f32 %v5568, 1.442695
          %v5587 = vpow.pop %v5586
          %v5588 = vmul.f32 %v5569, 1.442695
          %v5589 = vpow.pop %v5588
          %v5590 = vmul.f32 %v5570, 1.442695
          %v5591 = vpow.pop %v5590
          %v5592 = vmul.f32 %v5571, 1.442695
          %v5593 = vpow.pop %v5592
          %v5594 = vmul.f32 %v5572, 1.442695
          %v5595 = vpow.pop %v5594
          %v5596 = vmul.f32 %v5573, 1.442695
          %v5597 = vpow.pop %v5596
          %v5598 = vmul.f32 %v5574, 1.442695
          %v5599 = vpow.pop %v5598
          %v5600 = vmul.f32 %v5575, 1.442695
          %v5601 = vpow.pop %v5600
          %v5602 = vmul.f32 %v5576, 1.442695
          %v5603 = vpow.pop %v5602
          %v5604 = vmul.f32 %v5577, 1.442695
          %v5605 = vpow.pop %v5604
          %v5606 = vmul.f32 %v5578, 1.442695
          %v5607 = vpow.pop %v5606
          %v5608 = vmul.f32 %v5579, 1.442695
          %v5609 = vpow.pop %v5608
          %v5610 = vmul.f32 %v5580, 1.442695
          %v5611 = vpow.pop %v5610
          %v5612 = vmul.f32 %v5581, 1.442695
          %v5613 = vpow.pop %v5612
          %v5614 = vadd.f32 %v5583, 1.0
          %v5615 = vadd.f32 %v5585, 1.0
          %v5616 = vadd.f32 %v5587, 1.0
          %v5617 = vadd.f32 %v5589, 1.0
          %v5618 = vadd.f32 %v5591, 1.0
          %v5619 = vadd.f32 %v5593, 1.0
          %v5620 = vadd.f32 %v5595, 1.0
          %v5621 = vadd.f32 %v5597, 1.0
          %v5622 = vadd.f32 %v5599, 1.0
          %v5623 = vadd.f32 %v5601, 1.0
          %v5624 = vadd.f32 %v5603, 1.0
          %v5625 = vadd.f32 %v5605, 1.0
          %v5626 = vadd.f32 %v5607, 1.0
          %v5627 = vadd.f32 %v5609, 1.0
          %v5628 = vadd.f32 %v5611, 1.0
          %v5629 = vadd.f32 %v5613, 1.0
          %v5630 = vlog2.pop %v5614
          %v5631 = vmul.f32 %v5630, 0.6931472
          %v5632 = vlog2.pop %v5615
          %v5633 = vmul.f32 %v5632, 0.6931472
          %v5634 = vlog2.pop %v5616
          %v5635 = vmul.f32 %v5634, 0.6931472
          %v5636 = vlog2.pop %v5617
          %v5637 = vmul.f32 %v5636, 0.6931472
          %v5638 = vlog2.pop %v5618
          %v5639 = vmul.f32 %v5638, 0.6931472
          %v5640 = vlog2.pop %v5619
          %v5641 = vmul.f32 %v5640, 0.6931472
          %v5642 = vlog2.pop %v5620
          %v5643 = vmul.f32 %v5642, 0.6931472
          %v5644 = vlog2.pop %v5621
          %v5645 = vmul.f32 %v5644, 0.6931472
          %v5646 = vlog2.pop %v5622
          %v5647 = vmul.f32 %v5646, 0.6931472
          %v5648 = vlog2.pop %v5623
          %v5649 = vmul.f32 %v5648, 0.6931472
          %v5650 = vlog2.pop %v5624
          %v5651 = vmul.f32 %v5650, 0.6931472
          %v5652 = vlog2.pop %v5625
          %v5653 = vmul.f32 %v5652, 0.6931472
          %v5654 = vlog2.pop %v5626
          %v5655 = vmul.f32 %v5654, 0.6931472
          %v5656 = vlog2.pop %v5627
          %v5657 = vmul.f32 %v5656, 0.6931472
          %v5658 = vlog2.pop %v5628
          %v5659 = vmul.f32 %v5658, 0.6931472
          %v5660 = vlog2.pop %v5629
          %v5661 = vmul.f32 %v5660, 0.6931472
          %v5662 = vadd.f32 %v5534, %v5631
          %v5663 = vadd.f32 %v5535, %v5633
          %v5664 = vadd.f32 %v5536, %v5635
          %v5665 = vadd.f32 %v5537, %v5637
          %v5666 = vadd.f32 %v5538, %v5639
          %v5667 = vadd.f32 %v5539, %v5641
          %v5668 = vadd.f32 %v5540, %v5643
          %v5669 = vadd.f32 %v5541, %v5645
          %v5670 = vadd.f32 %v5542, %v5647
          %v5671 = vadd.f32 %v5543, %v5649
          %v5672 = vadd.f32 %v5544, %v5651
          %v5673 = vadd.f32 %v5545, %v5653
          %v5674 = vadd.f32 %v5546, %v5655
          %v5675 = vadd.f32 %v5547, %v5657
          %v5676 = vadd.f32 %v5548, %v5659
          %v5677 = vadd.f32 %v5549, %v5661
          %v5678 = vsub.f32 %v5662, 0.6931472
          %v5679 = vsub.f32 %v5663, 0.6931472
          %v5680 = vsub.f32 %v5664, 0.6931472
          %v5681 = vsub.f32 %v5665, 0.6931472
          %v5682 = vsub.f32 %v5666, 0.6931472
          %v5683 = vsub.f32 %v5667, 0.6931472
          %v5684 = vsub.f32 %v5668, 0.6931472
          %v5685 = vsub.f32 %v5669, 0.6931472
          %v5686 = vsub.f32 %v5670, 0.6931472
          %v5687 = vsub.f32 %v5671, 0.6931472
          %v5688 = vsub.f32 %v5672, 0.6931472
          %v5689 = vsub.f32 %v5673, 0.6931472
          %v5690 = vsub.f32 %v5674, 0.6931472
          %v5691 = vsub.f32 %v5675, 0.6931472
          %v5692 = vsub.f32 %v5676, 0.6931472
          %v5693 = vsub.f32 %v5677, 0.6931472
          %v5694 = vpack.c.bf16 %v5679, %v5678
          %v5695 = vpack.c.bf16 %v5681, %v5680
          %v5696 = vpack.c.bf16 %v5683, %v5682
          %v5697 = vpack.c.bf16 %v5685, %v5684
          %v5698 = vpack.c.bf16 %v5687, %v5686
          %v5699 = vpack.c.bf16 %v5689, %v5688
          %v5700 = vpack.c.bf16 %v5691, %v5690
          %v5701 = vpack.c.bf16 %v5693, %v5692
          %v5702 = vld [vmem:[%s17] sm:$0xf]
          %v5703 = vld [vmem:[%s17 + $0x4] sm:$0xf]
          %v5704 = vld [vmem:[#allocation4] sm:$0x1]
          %v5706 = vperm.slane %v5704, 0
          %v5710 = vunpack.c.l.b16 %v5702
          %v5711 = vunpack.c.l.b16 %v5703
          %v5712 = vpack.c.b16 %v5711, %v5710
          %vm5714 = vcmask 130048
          %v5716 = vsel %vm5714, %v5694, 0
          %v5719 = vsel %vm5714, %v5695, 0
          %v5722 = vsel %vm5714, %v5696, 0
          %v5725 = vsel %vm5714, %v5697, 0
          %v5728 = vsel %vm5714, %v5698, 0
          %v5731 = vsel %vm5714, %v5699, 0
          %v5734 = vsel %vm5714, %v5700, 0
          %v5737 = vsel %vm5714, %v5701, 0
          %5739 = vmatpush.bf16.msra.mxu0 0
          %5740 = vmatpush.bf16.msra.mxu0 0
          %5741 = vmatpush.bf16.msra.mxu0 0
          %5742 = vmatpush.bf16.msra.mxu0 0
          %5743 = vmatpush.bf16.msra.mxu0 0
          %5744 = vmatpush.bf16.msra.mxu0 0
          %5745 = vmatpush.bf16.msra.mxu0 0
          %5746 = vmatpush.bf16.msra.mxu0 %v5712
          %5747 = vmatmul.bf16.gmra.mxu0 %v5716
          %v5748 = vpop.f32.mrf.mxu0
          %v5749 = vadd.f32 %v5706, %v5748
          %v5750 = vpop.f32.mrf.mxu0
          %v5751 = vadd.f32 %v5706, %v5750
          %5752 = vmatmul.bf16.gmra.mxu0 %v5719
          %v5753 = vpop.f32.mrf.mxu0
          %v5754 = vadd.f32 %v5706, %v5753
          %v5755 = vpop.f32.mrf.mxu0
          %v5756 = vadd.f32 %v5706, %v5755
          %5757 = vmatmul.bf16.gmra.mxu0 %v5722
          %v5758 = vpop.f32.mrf.mxu0
          %v5759 = vadd.f32 %v5706, %v5758
          %v5760 = vpop.f32.mrf.mxu0
          %v5761 = vadd.f32 %v5706, %v5760
          %5762 = vmatmul.bf16.gmra.mxu0 %v5725
          %v5763 = vpop.f32.mrf.mxu0
          %v5764 = vadd.f32 %v5706, %v5763
          %v5765 = vpop.f32.mrf.mxu0
          %v5766 = vadd.f32 %v5706, %v5765
          %5767 = vmatmul.bf16.gmra.mxu0 %v5728
          %v5768 = vpop.f32.mrf.mxu0
          %v5769 = vadd.f32 %v5706, %v5768
          %v5770 = vpop.f32.mrf.mxu0
          %v5771 = vadd.f32 %v5706, %v5770
          %5772 = vmatmul.bf16.gmra.mxu0 %v5731
          %v5773 = vpop.f32.mrf.mxu0
          %v5774 = vadd.f32 %v5706, %v5773
          %v5775 = vpop.f32.mrf.mxu0
          %v5776 = vadd.f32 %v5706, %v5775
          %5777 = vmatmul.bf16.gmra.mxu0 %v5734
          %v5778 = vpop.f32.mrf.mxu0
          %v5779 = vadd.f32 %v5706, %v5778
          %v5780 = vpop.f32.mrf.mxu0
          %v5781 = vadd.f32 %v5706, %v5780
          %5782 = vmatmul.bf16.gmra.mxu0 %v5737
          %v5783 = vpop.f32.mrf.mxu0
          %v5784 = vadd.f32 %v5706, %v5783
          %v5785 = vpop.f32.mrf.mxu0
          %v5786 = vadd.f32 %v5706, %v5785
          %5787 = vdwg.mxu0
          %v5788 = vld [vmem:[#allocation5] sm:$0x3]
          %5789 = vmatpush.msra.mxu0 %v5786
          %5790 = vmatpush.msra.mxu0 %v5784
          %5791 = vmatpush.msra.mxu0 %v5781
          %5792 = vmatpush.msra.mxu0 %v5779
          %5793 = vmatpush.msra.mxu0 %v5776
          %5794 = vmatpush.msra.mxu0 %v5774
          %5795 = vmatpush.msra.mxu0 %v5771
          %5796 = vmatpush.msra.mxu0 %v5769
          %5797 = vmatpush.msra.mxu0 %v5766
          %5798 = vmatpush.msra.mxu0 %v5764
          %5799 = vmatpush.msra.mxu0 %v5761
          %5800 = vmatpush.msra.mxu0 %v5759
          %5801 = vmatpush.msra.mxu0 %v5756
          %5802 = vmatpush.msra.mxu0 %v5754
          %5803 = vmatpush.msra.mxu0 %v5751
          %5804 = vmatpush.msra.mxu0 %v5749
          %5805 = vmatmul.f32.gmra.mxu0 %v5788
          %v5806 = vpop.f32.mrf.mxu0
          %v5807 = vadd.f32 0.0, %v5806
          %5808 = vdwg.mxu0
          %vm5809 = vcmask 1024
          %5810 = vst.msk [vmem:[%s19] sm:$0x3] %vm5809, %v5807
        $region116: #{tpu_custom_call.1} parent=95 // pred_fallthru
          _
        // Predicated region
        $region117: #{tpu_custom_call.1} parent=95 // pred_check
          %p5811 = pneg %p446
        $region118: #{tpu_custom_call.1} parent=95 // pred_check_branch
          %5813 = sbr.rel (%p5811) target = $region120
        $region119: #{tpu_custom_call.1} parent=95 // pred_region
          _
        $region120: #{tpu_custom_call.1} parent=95 // pred_fallthru
          _
        // Predicated region
        $region121: #{tpu_custom_call.1} parent=95 // pred_check
          %p5814 = pneg %p446
        $region122: #{tpu_custom_call.1} parent=95 // pred_check_branch
          %5816 = sbr.rel (%p5814) target = $region124
        $region123: #{tpu_custom_call.1} parent=95 // pred_region
          _
        $region124: #{tpu_custom_call.1} parent=95 // pred_fallthru
          _
      $region96: #{tpu_custom_call.1} parent=5 // pred_fallthru
        _
      %p5817 = scmp.le.s32.totalorder 2, %s29
      // Predicated region
      $region125: #{tpu_custom_call.1} parent=5 // pred_check
        %p5818 = pneg %p5817
      $region126: #{tpu_custom_call.1} parent=5 // pred_check_branch
        %5820 = sbr.rel (%p5818) target = $region128
      $region127: #{tpu_custom_call.1} parent=5 // pred_region
        %s5821 = ssub.s32 %s29, 2
      $region128: #{tpu_custom_call.1} parent=5 // pred_fallthru
        _
    $region6: #{tpu_custom_call.1} parent=1 // loop_footer
      %s33 = sadd.s32 1, %s29
    $region7: #{tpu_custom_call.1} parent=1 // loop_footer_branch
      %28 = sbr.rel target = $region3
    $region8: #{tpu_custom_call.1} parent=1 // loop_exit
      _
    %5822 = vsyncpa [#allocation6], 1
    %s5823 = scalar_lea.sflag [#allocation6], 1
    %5824 = vsyncpa %s5823, 1
    %5825 = vsyncpa [#allocation8], 1

</llo_original>
